<compile_context>
chip_gen: v6e
topology: v6e:2x2x1
jax: 0.10.0
libtpu: 0.0.40
codegen_flags: <defaults>
</compile_context>

<pallas_src>
import functools

import jax
import jax.numpy as jnp
import numpy as np
from jax.experimental import pallas as pl
from jax.experimental.pallas import tpu as pltpu


# ----------------------------------------------------------------------------
# Static parameter packing.
#   mats  : (NM, C, C)      -- [optional group-agg matrix], resnet w1/w2, attn wp
#   vecs  : (C, NV)         -- per-channel columns (GN gamma/beta, conv biases)
#   wqkv  : (n_layer, 3C, C) -- fused [wq*scale; wk; wv] per attention layer
#   bqkv  : (n_layer, 3C, 1) -- fused [bq*scale; bk; bv]
# ops: tuple of ("res"|"attn", mat_base, vec_base, qkv_index)
# ----------------------------------------------------------------------------
def _pack_params(resnets, attns, C, num_groups):
    n_layer = len(attns)
    gs = C // num_groups
    scale = float(C) ** -0.5

    mats, vecs, wqkv, bqkv, ops = [], [], [], [], []

    if gs > 1:  # group aggregation matrix only needed when groups span >1 channel
        grp = np.arange(C) // gs
        agg = (grp[:, None] == grp[None, :]).astype(np.float32)
        mats.append(jnp.asarray(agg))
        agg_idx = 0
    else:
        agg_idx = -1

    def add_res(p):
        mb, vb = len(mats), len(vecs)
        mats.extend([p["w1"], p["w2"]])
        vecs.extend([p["g1"], p["b1"], p["c1"], p["g2"], p["b2"], p["c2"]])
        ops.append(("res", mb, vb, -1))

    def add_attn(p):
        mb, vb = len(mats), len(vecs)
        mats.append(p["wp"])
        vecs.extend([p["g"], p["b"], p["bp"]])
        # fold the 1/sqrt(C) softmax scale into the q projection at pack time
        wqkv.append(jnp.concatenate([p["wq"] * scale, p["wk"], p["wv"]], axis=0))
        bqkv.append(jnp.concatenate([p["bq"] * scale, p["bk"], p["bv"]], axis=0))
        ops.append(("attn", mb, vb, len(wqkv) - 1))

    add_res(resnets[0])
    for l in range(n_layer):
        add_attn(attns[l])
        add_res(resnets[l + 1])

    mats = jnp.stack(mats, axis=0).astype(jnp.float32)          # (NM, C, C)
    vecs = jnp.stack(vecs, axis=1).astype(jnp.float32)          # (C, NV)
    wqkv = jnp.stack(wqkv, axis=0).astype(jnp.float32)          # (n_layer, 3C, C)
    bqkv = jnp.stack(bqkv, axis=0).astype(jnp.float32)[..., None]  # (n_layer, 3C, 1)
    return mats, vecs, wqkv, bqkv, tuple(ops), agg_idx


# ----------------------------------------------------------------------------
# Fused kernel: one batch element per grid step, (C, HW) token layout
# (channels on sublanes, 256-wide token axis lane-dense).
# ----------------------------------------------------------------------------
def _fused_kernel(x_ref, mask_ref, mats_ref, vecs_ref, wqkv_ref, bqkv_ref, o_ref, *,
                  ops, C, HW, group_size, agg_idx, n_layer,
                  mask_update_mode, apply_mask, reweight):
    x = x_ref[0]                          # (C, HW) f32
    vecs = vecs_ref[...]                  # (C, NV)
    inv_n = 1.0 / float(HW * group_size)

    def col(j):                           # per-channel parameter as (C, 1)
        return vecs[:, j:j + 1]

    def gnorm(h, vb):                     # GroupNorm(num_groups, C, eps=1e-6), single-pass stats
        s = jnp.sum(h, axis=1, keepdims=True)                       # (C, 1)
        ss = jnp.sum(h * h, axis=1, keepdims=True)                  # (C, 1)
        if group_size > 1:
            s = jnp.dot(mats_ref[agg_idx], s, preferred_element_type=jnp.float32)
            ss = jnp.dot(mats_ref[agg_idx], ss, preferred_element_type=jnp.float32)
        mean = s * inv_n
        var = ss * inv_n - mean * mean                              # E[x^2] - mean^2
        inv = jax.lax.rsqrt(var + 1e-6)
        scale = inv * col(vb)                                       # (C, 1)
        shift = col(vb + 1) - mean * scale                          # (C, 1)
        return h * scale + shift                                    # two full-tile ops

    def conv1x1(h, mi, bj):               # 1x1 conv == (C,C) @ (C,HW) MXU matmul + bias column
        return jnp.dot(mats_ref[mi], h, preferred_element_type=jnp.float32) + col(bj)

    def silu(h):
        return h * jax.nn.sigmoid(h)

    def resnet(h_in, mb, vb):             # ResnetBlock_kernel_1 (kernel_size=1, temb=None)
        h = conv1x1(silu(gnorm(h_in, vb)), mb, vb + 2)
        # TODO(synk): nn.Dropout is identity in eval/inference mode; no stochastic dropout here.
        h = conv1x1(silu(gnorm(h, vb + 3)), mb + 1, vb + 5)
        return h_in + h

    def attn(h_in, mb, vb, qi, m_cur):    # (Biased)SelfAttnBlock, fused QKV projection
        h = gnorm(h_in, vb)
        # single (3C, C) @ (C, HW) MXU push; q already carries the softmax scale
        qkv = jnp.dot(wqkv_ref[qi], h, preferred_element_type=jnp.float32) + bqkv_ref[qi]
        q = qkv[0:C]                      # (C, HWq)   static sublane slices (free)
        k = qkv[C:2 * C]                  # (C, HWk)
        v = qkv[2 * C:3 * C]              # (C, HWk)
        # scores s[k_idx, q_idx] = <k_col, q_col>: contract channel axis 0 of both
        # operands so the MXU consumes the transposed operand directly (no vxpose).
        s = jax.lax.dot_general(
            k.astype(jnp.bfloat16), q.astype(jnp.bfloat16),
            dimension_numbers=(((0,), (0,)), ((), ())),
            preferred_element_type=jnp.float32)                     # (HWk, HWq)
        s = s - jnp.max(s, axis=0, keepdims=True)    # per-query max (softmax over keys)
        p = jnp.exp(s)                               # unnormalized attention, f32
        if apply_mask and reweight:
            # renormalized biased attention: denom = sum_k mask[k] * p[k, q]
            denom = jnp.dot(m_cur, p, preferred_element_type=jnp.float32)   # (1, HWq)
        else:
            denom = jnp.sum(p, axis=0, keepdims=True)                       # (1, HWq)
        v_eff = v * m_cur if apply_mask else v       # mask folded into v, never the (HW,HW) tile
        o = jnp.dot(v_eff.astype(jnp.bfloat16), p.astype(jnp.bfloat16),
                    preferred_element_type=jnp.float32)                     # (C, HWq)
        o = o * pl.reciprocal(denom, approx=True)    # per-query normalization on EUP
        return h_in + conv1x1(o, mb, vb + 2)

    # --- in-kernel mask schedule (mask stays a tiny (1, HW) row) ---
    m = mask_ref[0]
    orig = m
    if mask_update_mode in ("square", "cube"):
        m = m + 0.02 * (1.0 - m)
    gain = (1.0 / (n_layer - 1)) if (mask_update_mode == "linear" and n_layer > 1) else 0.0

    h = x
    attn_done = 0
    for kind, mb, vb, qi in ops:
        if kind == "res":
            h = resnet(h, mb, vb)
        else:
            h = attn(h, mb, vb, qi, m)
            attn_done += 1
            if mask_update_mode == "const":
                pass
            elif mask_update_mode == "square":
                m = jnp.sqrt(m)
            elif mask_update_mode == "cube":
                m = jnp.power(m, 1.0 / 3.0)
            elif mask_update_mode == "linear":
                m = orig + attn_done * gain * (1.0 - orig)
            else:
                raise ValueError("Invalid mask update mode")
    o_ref[0] = h


# ----------------------------------------------------------------------------
# TokenReconstruction forward (single pallas_call)
# ----------------------------------------------------------------------------
def token_reconstruction_forward(x_nchw, mask, resnets, attns, *,
                                 mask_update_mode="square",
                                 attn_type="bias-self-attn",
                                 reweight=False, num_groups=32):
    B, C, H, W = x_nchw.shape
    HW = H * W
    n_layer = len(attns)
    gs = C // num_groups

    # NCHW is already channel-major: reshaping to (B, C, HW) keeps C on sublanes
    # and the 256-wide token axis lane-dense -- no transpose needed.
    x_tok = x_nchw.reshape(B, C, HW).astype(jnp.float32)
    mask3 = mask.reshape(B, 1, HW).astype(jnp.float32)
    mats, vecs, wqkv, bqkv, ops, agg_idx = _pack_params(resnets, attns, C, num_groups)
    NM, NV = mats.shape[0], vecs.shape[1]

    kernel = functools.partial(
        _fused_kernel, ops=ops, C=C, HW=HW, group_size=gs, agg_idx=agg_idx,
        n_layer=n_layer, mask_update_mode=mask_update_mode,
        apply_mask=(attn_type == "bias-self-attn"), reweight=reweight)

    out = pl.pallas_call(
        kernel,
        out_shape=jax.ShapeDtypeStruct((B, C, HW), jnp.float32),
        grid=(B,),
        in_specs=[
            pl.BlockSpec((1, C, HW), lambda b: (b, 0, 0)),          # x (per-batch block)
            pl.BlockSpec((1, 1, HW), lambda b: (b, 0, 0)),          # mask
            pl.BlockSpec((NM, C, C), lambda b: (0, 0, 0)),          # packed (C,C) matrices
            pl.BlockSpec((C, NV), lambda b: (0, 0)),                # packed per-channel vectors
            pl.BlockSpec((n_layer, 3 * C, C), lambda b: (0, 0, 0)),  # fused QKV weights
            pl.BlockSpec((n_layer, 3 * C, 1), lambda b: (0, 0, 0)),  # fused QKV biases
        ],
        out_specs=pl.BlockSpec((1, C, HW), lambda b: (b, 0, 0)),
        compiler_params=pltpu.CompilerParams(
            dimension_semantics=("parallel",)),                     # batch -> TCs on v7x
    )(x_tok, mask3, mats, vecs, wqkv, bqkv)
    return out.reshape(B, C, H, W)


# ----------------------------------------------------------------------------
# Pure-JAX reference (for correctness check)
# ----------------------------------------------------------------------------
def _ref_gn(x_tok, gamma, beta, num_groups, eps=1e-6):
    B, HW, C = x_tok.shape
    gs = C // num_groups
    xg = x_tok.reshape(B, HW, num_groups, gs)
    mean = xg.mean(axis=(1, 3), keepdims=True)
    var = xg.var(axis=(1, 3), keepdims=True)
    y = ((xg - mean) / jnp.sqrt(var + eps)).reshape(B, HW, C)
    return y * gamma + beta


def _ref_resnet(x, p, num_groups):
    h = _ref_gn(x, p["g1"], p["b1"], num_groups)
    h = h * jax.nn.sigmoid(h)
    h = h @ p["w1"].T + p["c1"]
    h = _ref_gn(h, p["g2"], p["b2"], num_groups)
    h = h * jax.nn.sigmoid(h)
    h = h @ p["w2"].T + p["c2"]
    return x + h


def _ref_attn(x, mask, p, num_groups, apply_mask, reweight):
    B, HW, C = x.shape
    h = _ref_gn(x, p["g"], p["b"], num_groups)
    q = h @ p["wq"].T + p["bq"]
    k = h @ p["wk"].T + p["bk"]
    v = h @ p["wv"].T + p["bv"]
    att = jnp.einsum("bqc,bkc->bqk", q, k) * (float(C) ** -0.5)
    att = jax.nn.softmax(att, axis=-1)
    if apply_mask:
        att = att * mask[:, None, :]
        if reweight:
            att = att / jnp.sum(att, axis=-1, keepdims=True)
    o = jnp.einsum("bqk,bkc->bqc", att, v)
    return x + (o @ p["wp"].T + p["bp"])


def ref_forward(x_nchw, mask, resnets, attns, *, mask_update_mode="square",
                attn_type="bias-self-attn", reweight=False, num_groups=32):
    B, C, H, W = x_nchw.shape
    n_layer = len(attns)
    x = jnp.transpose(x_nchw, (0, 2, 3, 1)).reshape(B, H * W, C)
    original_mask = mask
    gain = 1.0 / (n_layer - 1) if n_layer > 1 else 0.0
    if mask_update_mode in ("square", "cube"):
        mask = mask + 0.02 * (1.0 - mask)
    apply_mask = (attn_type == "bias-self-attn")
    x = _ref_resnet(x, resnets[0], num_groups)
    for l in range(n_layer):
        x = _ref_attn(x, mask, attns[l], num_groups, apply_mask, reweight)
        if mask_update_mode == "square":
            mask = jnp.sqrt(mask)
        elif mask_update_mode == "cube":
            mask = jnp.power(mask, 1.0 / 3.0)
        elif mask_update_mode == "linear":
            mask = original_mask + (l + 1) * gain * (1.0 - original_mask)
        x = _ref_resnet(x, resnets[l + 1], num_groups)
    return jnp.transpose(x.reshape(B, H, W, C), (0, 3, 1, 2))


# ----------------------------------------------------------------------------
# Deterministic synthetic parameters (match module shapes; conv weight = (out, in))
# ----------------------------------------------------------------------------
def init_params(key, C, n_layer):
    keys = iter(jax.random.split(key, 64))

    def gn_p():
        g = 1.0 + 0.05 * jax.random.normal(next(keys), (C,), jnp.float32)
        b = 0.02 * jax.random.normal(next(keys), (C,), jnp.float32)
        return g, b

    def conv_p():
        w = 0.1 * jax.random.normal(next(keys), (C, C), jnp.float32)    # (C_out, C_in)
        b = 0.02 * jax.random.normal(next(keys), (C,), jnp.float32)
        return w, b

    def resnet_p():
        g1, b1 = gn_p(); w1, c1 = conv_p(); g2, b2 = gn_p(); w2, c2 = conv_p()
        return dict(g1=g1, b1=b1, w1=w1, c1=c1, g2=g2, b2=b2, w2=w2, c2=c2)

    def attn_p():
        g, b = gn_p(); wq, bq = conv_p(); wk, bk = conv_p(); wv, bv = conv_p(); wp, bp = conv_p()
        return dict(g=g, b=b, wq=wq, bq=bq, wk=wk, bk=bk, wv=wv, bv=bv, wp=wp, bp=bp)

    resnets = [resnet_p() for _ in range(n_layer + 1)]
    attns = [attn_p() for _ in range(n_layer)]
    return resnets, attns


# ----------------------------------------------------------------------------
if __name__ == "__main__":
    B, C, H, W = 2, 32, 16, 16       # input_dim=32 (GroupNorm(32, C) => group size 1)
    n_layer = 2
    num_groups = 32

    key = jax.random.PRNGKey(0)
    k_x, k_m, k_p = jax.random.split(key, 3)
    x = jax.random.normal(k_x, (B, C, H, W), jnp.float32)
    mask = (jax.random.uniform(k_m, (B, H * W)) > 0.5).astype(jnp.float32)
    resnets, attns = init_params(k_p, C, n_layer)

    fwd = jax.jit(functools.partial(
        token_reconstruction_forward,
        mask_update_mode="square", attn_type="bias-self-attn",
        reweight=False, num_groups=num_groups))

    out = jax.block_until_ready(fwd(x, mask, resnets, attns))

    ref = jax.block_until_ready(ref_forward(
        x, mask, resnets, attns,
        mask_update_mode="square", attn_type="bias-self-attn",
        reweight=False, num_groups=num_groups))

    assert out.shape == (B, C, H, W) and out.dtype == jnp.float32
    np.testing.assert_allclose(np.asarray(out), np.asarray(ref), rtol=1e-2, atol=1e-2)
    print("KERNEL_OK")
</pallas_src>

<mosaic_0001>
module attributes {stable_mosaic.version = 11 : i64} {
  func.func @_fused_kernel(%arg0: i32, %arg1: memref<1x32x256xf32, #tpu.memory_space<vmem>>, %arg2: memref<1x1x256xf32, #tpu.memory_space<vmem>>, %arg3: memref<8x32x32xf32, #tpu.memory_space<vmem>>, %arg4: memref<32x24xf32, #tpu.memory_space<vmem>>, %arg5: memref<2x96x32xf32, #tpu.memory_space<vmem>>, %arg6: memref<2x96x1xf32, #tpu.memory_space<vmem>>, %arg7: memref<1x32x256xf32, #tpu.memory_space<vmem>>) attributes {dimension_semantics = [#tpu.dimension_semantics<parallel>], iteration_bounds = array<i64: 2>, scalar_prefetch = 0 : i64, scratch_operands = 0 : i64, tpu.core_type = #tpu.core_type<tc>, window_params = [{transform_indices = @transform_0, window_bounds = array<i64: 1, 32, 256>}, {transform_indices = @transform_1, window_bounds = array<i64: 1, 1, 256>}, {pipeline_mode = #tpu.pipeline_mode<synchronous>, transform_indices = @transform_2, window_bounds = array<i64: 8, 32, 32>}, {pipeline_mode = #tpu.pipeline_mode<synchronous>, transform_indices = @transform_3, window_bounds = array<i64: 32, 24>}, {pipeline_mode = #tpu.pipeline_mode<synchronous>, transform_indices = @transform_4, window_bounds = array<i64: 2, 96, 32>}, {pipeline_mode = #tpu.pipeline_mode<synchronous>, transform_indices = @transform_5, window_bounds = array<i64: 2, 96, 1>}, {transform_indices = @transform_6, window_bounds = array<i64: 1, 32, 256>}]} {
    %c0 = arith.constant 0 : index
    %c0_0 = arith.constant 0 : index
    %c0_1 = arith.constant 0 : index
    %0 = vector.load %arg1[%c0, %c0_0, %c0_1] : memref<1x32x256xf32, #tpu.memory_space<vmem>>, vector<1x32x256xf32>
    %1 = vector.shape_cast %0 : vector<1x32x256xf32> to vector<32x256xf32>
    %c0_2 = arith.constant 0 : index
    %c0_3 = arith.constant 0 : index
    %2 = vector.load %arg4[%c0_2, %c0_3] : memref<32x24xf32, #tpu.memory_space<vmem>>, vector<32x24xf32>
    %c0_4 = arith.constant 0 : index
    %c0_5 = arith.constant 0 : index
    %c0_6 = arith.constant 0 : index
    %3 = vector.load %arg2[%c0_4, %c0_5, %c0_6] : memref<1x1x256xf32, #tpu.memory_space<vmem>>, vector<1x1x256xf32>
    %4 = vector.shape_cast %3 : vector<1x1x256xf32> to vector<1x256xf32>
    %cst = arith.constant 1.000000e+00 : f32
    %5 = vector.broadcast %cst : f32 to vector<1x256xf32>
    %6 = arith.subf %5, %4 : vector<1x256xf32>
    %cst_7 = arith.constant 2.000000e-02 : f32
    %7 = vector.broadcast %cst_7 : f32 to vector<1x256xf32>
    %8 = arith.mulf %7, %6 : vector<1x256xf32>
    %9 = arith.addf %4, %8 : vector<1x256xf32>
    %cst_8 = arith.constant dense<0.000000e+00> : vector<32xf32>
    %10 = vector.multi_reduction <add>, %1, %cst_8 [1] : vector<32x256xf32> to vector<32xf32>
    %11 = vector.shape_cast %10 : vector<32xf32> to vector<32x1xf32>
    %12 = arith.mulf %1, %1 : vector<32x256xf32>
    %cst_9 = arith.constant dense<0.000000e+00> : vector<32xf32>
    %13 = vector.multi_reduction <add>, %12, %cst_9 [1] : vector<32x256xf32> to vector<32xf32>
    %14 = vector.shape_cast %13 : vector<32xf32> to vector<32x1xf32>
    %cst_10 = arith.constant 3.906250e-03 : f32
    %15 = vector.broadcast %cst_10 : f32 to vector<32x1xf32>
    %16 = arith.mulf %11, %15 : vector<32x1xf32>
    %cst_11 = arith.constant 3.906250e-03 : f32
    %17 = vector.broadcast %cst_11 : f32 to vector<32x1xf32>
    %18 = arith.mulf %14, %17 : vector<32x1xf32>
    %19 = arith.mulf %16, %16 : vector<32x1xf32>
    %20 = arith.subf %18, %19 : vector<32x1xf32>
    %cst_12 = arith.constant 9.99999997E-7 : f32
    %21 = vector.broadcast %cst_12 : f32 to vector<32x1xf32>
    %22 = arith.addf %20, %21 : vector<32x1xf32>
    %23 = math.rsqrt %22 : vector<32x1xf32>
    %24 = vector.extract_strided_slice %2 {offsets = [0, 0], sizes = [32, 1], strides = [1, 1]} : vector<32x24xf32> to vector<32x1xf32>
    %25 = arith.mulf %23, %24 : vector<32x1xf32>
    %26 = vector.extract_strided_slice %2 {offsets = [0, 1], sizes = [32, 1], strides = [1, 1]} : vector<32x24xf32> to vector<32x1xf32>
    %27 = arith.mulf %16, %25 : vector<32x1xf32>
    %28 = arith.subf %26, %27 : vector<32x1xf32>
    %29 = vector.broadcast %25 : vector<32x1xf32> to vector<32x256xf32>
    %30 = arith.mulf %1, %29 : vector<32x256xf32>
    %31 = vector.broadcast %28 : vector<32x1xf32> to vector<32x256xf32>
    %32 = arith.addf %30, %31 : vector<32x256xf32>
    %33 = arith.negf %32 : vector<32x256xf32>
    %34 = math.exp %33 : vector<32x256xf32>
    %cst_13 = arith.constant 1.000000e+00 : f32
    %35 = vector.broadcast %cst_13 : f32 to vector<32x256xf32>
    %36 = arith.addf %35, %34 : vector<32x256xf32>
    %37 = arith.divf %35, %36 : vector<32x256xf32>
    %38 = arith.mulf %32, %37 : vector<32x256xf32>
    %c0_14 = arith.constant 0 : index
    %c0_15 = arith.constant 0 : index
    %c0_16 = arith.constant 0 : index
    %39 = vector.load %arg3[%c0_14, %c0_15, %c0_16] : memref<8x32x32xf32, #tpu.memory_space<vmem>>, vector<1x32x32xf32>
    %40 = vector.shape_cast %39 : vector<1x32x32xf32> to vector<32x32xf32>
    %cst_17 = arith.constant dense<0.000000e+00> : vector<32x256xf32>
    %41 = tpu.matmul %40, %38, %cst_17 {dimension_numbers = #tpu.dot_dimension_numbers<[1], [0], [0], [1], [0, 0, 1, 1], [], []>} : vector<32x32xf32>, vector<32x256xf32>, vector<32x256xf32> -> vector<32x256xf32>
    %42 = vector.extract_strided_slice %2 {offsets = [0, 2], sizes = [32, 1], strides = [1, 1]} : vector<32x24xf32> to vector<32x1xf32>
    %43 = vector.broadcast %42 : vector<32x1xf32> to vector<32x256xf32>
    %44 = arith.addf %41, %43 : vector<32x256xf32>
    %cst_18 = arith.constant dense<0.000000e+00> : vector<32xf32>
    %45 = vector.multi_reduction <add>, %44, %cst_18 [1] : vector<32x256xf32> to vector<32xf32>
    %46 = vector.shape_cast %45 : vector<32xf32> to vector<32x1xf32>
    %47 = arith.mulf %44, %44 : vector<32x256xf32>
    %cst_19 = arith.constant dense<0.000000e+00> : vector<32xf32>
    %48 = vector.multi_reduction <add>, %47, %cst_19 [1] : vector<32x256xf32> to vector<32xf32>
    %49 = vector.shape_cast %48 : vector<32xf32> to vector<32x1xf32>
    %cst_20 = arith.constant 3.906250e-03 : f32
    %50 = vector.broadcast %cst_20 : f32 to vector<32x1xf32>
    %51 = arith.mulf %46, %50 : vector<32x1xf32>
    %cst_21 = arith.constant 3.906250e-03 : f32
    %52 = vector.broadcast %cst_21 : f32 to vector<32x1xf32>
    %53 = arith.mulf %49, %52 : vector<32x1xf32>
    %54 = arith.mulf %51, %51 : vector<32x1xf32>
    %55 = arith.subf %53, %54 : vector<32x1xf32>
    %cst_22 = arith.constant 9.99999997E-7 : f32
    %56 = vector.broadcast %cst_22 : f32 to vector<32x1xf32>
    %57 = arith.addf %55, %56 : vector<32x1xf32>
    %58 = math.rsqrt %57 : vector<32x1xf32>
    %59 = vector.extract_strided_slice %2 {offsets = [0, 3], sizes = [32, 1], strides = [1, 1]} : vector<32x24xf32> to vector<32x1xf32>
    %60 = arith.mulf %58, %59 : vector<32x1xf32>
    %61 = vector.extract_strided_slice %2 {offsets = [0, 4], sizes = [32, 1], strides = [1, 1]} : vector<32x24xf32> to vector<32x1xf32>
    %62 = arith.mulf %51, %60 : vector<32x1xf32>
    %63 = arith.subf %61, %62 : vector<32x1xf32>
    %64 = vector.broadcast %60 : vector<32x1xf32> to vector<32x256xf32>
    %65 = arith.mulf %44, %64 : vector<32x256xf32>
    %66 = vector.broadcast %63 : vector<32x1xf32> to vector<32x256xf32>
    %67 = arith.addf %65, %66 : vector<32x256xf32>
    %68 = arith.negf %67 : vector<32x256xf32>
    %69 = math.exp %68 : vector<32x256xf32>
    %cst_23 = arith.constant 1.000000e+00 : f32
    %70 = vector.broadcast %cst_23 : f32 to vector<32x256xf32>
    %71 = arith.addf %70, %69 : vector<32x256xf32>
    %72 = arith.divf %70, %71 : vector<32x256xf32>
    %73 = arith.mulf %67, %72 : vector<32x256xf32>
    %c1 = arith.constant 1 : index
    %c0_24 = arith.constant 0 : index
    %c0_25 = arith.constant 0 : index
    %74 = vector.load %arg3[%c1, %c0_24, %c0_25] : memref<8x32x32xf32, #tpu.memory_space<vmem>>, vector<1x32x32xf32>
    %75 = vector.shape_cast %74 : vector<1x32x32xf32> to vector<32x32xf32>
    %cst_26 = arith.constant dense<0.000000e+00> : vector<32x256xf32>
    %76 = tpu.matmul %75, %73, %cst_26 {dimension_numbers = #tpu.dot_dimension_numbers<[1], [0], [0], [1], [0, 0, 1, 1], [], []>} : vector<32x32xf32>, vector<32x256xf32>, vector<32x256xf32> -> vector<32x256xf32>
    %77 = vector.extract_strided_slice %2 {offsets = [0, 5], sizes = [32, 1], strides = [1, 1]} : vector<32x24xf32> to vector<32x1xf32>
    %78 = vector.broadcast %77 : vector<32x1xf32> to vector<32x256xf32>
    %79 = arith.addf %76, %78 : vector<32x256xf32>
    %80 = arith.addf %1, %79 : vector<32x256xf32>
    %cst_27 = arith.constant dense<0.000000e+00> : vector<32xf32>
    %81 = vector.multi_reduction <add>, %80, %cst_27 [1] : vector<32x256xf32> to vector<32xf32>
    %82 = vector.shape_cast %81 : vector<32xf32> to vector<32x1xf32>
    %83 = arith.mulf %80, %80 : vector<32x256xf32>
    %cst_28 = arith.constant dense<0.000000e+00> : vector<32xf32>
    %84 = vector.multi_reduction <add>, %83, %cst_28 [1] : vector<32x256xf32> to vector<32xf32>
    %85 = vector.shape_cast %84 : vector<32xf32> to vector<32x1xf32>
    %cst_29 = arith.constant 3.906250e-03 : f32
    %86 = vector.broadcast %cst_29 : f32 to vector<32x1xf32>
    %87 = arith.mulf %82, %86 : vector<32x1xf32>
    %cst_30 = arith.constant 3.906250e-03 : f32
    %88 = vector.broadcast %cst_30 : f32 to vector<32x1xf32>
    %89 = arith.mulf %85, %88 : vector<32x1xf32>
    %90 = arith.mulf %87, %87 : vector<32x1xf32>
    %91 = arith.subf %89, %90 : vector<32x1xf32>
    %cst_31 = arith.constant 9.99999997E-7 : f32
    %92 = vector.broadcast %cst_31 : f32 to vector<32x1xf32>
    %93 = arith.addf %91, %92 : vector<32x1xf32>
    %94 = math.rsqrt %93 : vector<32x1xf32>
    %95 = vector.extract_strided_slice %2 {offsets = [0, 6], sizes = [32, 1], strides = [1, 1]} : vector<32x24xf32> to vector<32x1xf32>
    %96 = arith.mulf %94, %95 : vector<32x1xf32>
    %97 = vector.extract_strided_slice %2 {offsets = [0, 7], sizes = [32, 1], strides = [1, 1]} : vector<32x24xf32> to vector<32x1xf32>
    %98 = arith.mulf %87, %96 : vector<32x1xf32>
    %99 = arith.subf %97, %98 : vector<32x1xf32>
    %100 = vector.broadcast %96 : vector<32x1xf32> to vector<32x256xf32>
    %101 = arith.mulf %80, %100 : vector<32x256xf32>
    %102 = vector.broadcast %99 : vector<32x1xf32> to vector<32x256xf32>
    %103 = arith.addf %101, %102 : vector<32x256xf32>
    %c0_32 = arith.constant 0 : index
    %c0_33 = arith.constant 0 : index
    %c0_34 = arith.constant 0 : index
    %104 = vector.load %arg5[%c0_32, %c0_33, %c0_34] : memref<2x96x32xf32, #tpu.memory_space<vmem>>, vector<1x96x32xf32>
    %105 = vector.shape_cast %104 : vector<1x96x32xf32> to vector<96x32xf32>
    %cst_35 = arith.constant dense<0.000000e+00> : vector<96x256xf32>
    %106 = tpu.matmul %105, %103, %cst_35 {dimension_numbers = #tpu.dot_dimension_numbers<[1], [0], [0], [1], [0, 0, 1, 1], [], []>} : vector<96x32xf32>, vector<32x256xf32>, vector<96x256xf32> -> vector<96x256xf32>
    %c0_36 = arith.constant 0 : index
    %c0_37 = arith.constant 0 : index
    %c0_38 = arith.constant 0 : index
    %107 = vector.load %arg6[%c0_36, %c0_37, %c0_38] : memref<2x96x1xf32, #tpu.memory_space<vmem>>, vector<1x96x1xf32>
    %108 = vector.shape_cast %107 : vector<1x96x1xf32> to vector<96x1xf32>
    %109 = vector.broadcast %108 : vector<96x1xf32> to vector<96x256xf32>
    %110 = arith.addf %106, %109 : vector<96x256xf32>
    %111 = vector.extract_strided_slice %110 {offsets = [0, 0], sizes = [32, 256], strides = [1, 1]} : vector<96x256xf32> to vector<32x256xf32>
    %112 = vector.extract_strided_slice %110 {offsets = [32, 0], sizes = [32, 256], strides = [1, 1]} : vector<96x256xf32> to vector<32x256xf32>
    %113 = vector.extract_strided_slice %110 {offsets = [64, 0], sizes = [32, 256], strides = [1, 1]} : vector<96x256xf32> to vector<32x256xf32>
    %114 = arith.truncf %112 : vector<32x256xf32> to vector<32x256xbf16>
    %115 = arith.truncf %111 : vector<32x256xf32> to vector<32x256xbf16>
    %cst_39 = arith.constant dense<0.000000e+00> : vector<256x256xf32>
    %116 = tpu.matmul %114, %115, %cst_39 {dimension_numbers = #tpu.dot_dimension_numbers<[0], [0], [1], [1], [0, 1, 1, 1], [], []>} : vector<32x256xbf16>, vector<32x256xbf16>, vector<256x256xf32> -> vector<256x256xf32>
    %cst_40 = arith.constant dense<0xFF800000> : vector<256xf32>
    %117 = vector.multi_reduction <maximumf>, %116, %cst_40 [0] : vector<256x256xf32> to vector<256xf32>
    %118 = vector.shape_cast %117 : vector<256xf32> to vector<1x256xf32>
    %119 = vector.broadcast %118 : vector<1x256xf32> to vector<256x256xf32>
    %120 = arith.subf %116, %119 : vector<256x256xf32>
    %121 = math.exp %120 : vector<256x256xf32>
    %cst_41 = arith.constant dense<0.000000e+00> : vector<256xf32>
    %122 = vector.multi_reduction <add>, %121, %cst_41 [0] : vector<256x256xf32> to vector<256xf32>
    %123 = vector.shape_cast %122 : vector<256xf32> to vector<1x256xf32>
    %124 = vector.broadcast %9 : vector<1x256xf32> to vector<32x256xf32>
    %125 = arith.mulf %113, %124 : vector<32x256xf32>
    %126 = arith.truncf %125 : vector<32x256xf32> to vector<32x256xbf16>
    %127 = arith.truncf %121 : vector<256x256xf32> to vector<256x256xbf16>
    %cst_42 = arith.constant dense<0.000000e+00> : vector<32x256xf32>
    %128 = tpu.matmul %126, %127, %cst_42 {dimension_numbers = #tpu.dot_dimension_numbers<[1], [0], [0], [1], [0, 0, 1, 1], [], []>} : vector<32x256xbf16>, vector<256x256xbf16>, vector<32x256xf32> -> vector<32x256xf32>
    %129 = tpu.reciprocal %123 {approx = true} : vector<1x256xf32> -> vector<1x256xf32>
    %130 = vector.broadcast %129 : vector<1x256xf32> to vector<32x256xf32>
    %131 = arith.mulf %128, %130 : vector<32x256xf32>
    %c2 = arith.constant 2 : index
    %c0_43 = arith.constant 0 : index
    %c0_44 = arith.constant 0 : index
    %132 = vector.load %arg3[%c2, %c0_43, %c0_44] : memref<8x32x32xf32, #tpu.memory_space<vmem>>, vector<1x32x32xf32>
    %133 = vector.shape_cast %132 : vector<1x32x32xf32> to vector<32x32xf32>
    %cst_45 = arith.constant dense<0.000000e+00> : vector<32x256xf32>
    %134 = tpu.matmul %133, %131, %cst_45 {dimension_numbers = #tpu.dot_dimension_numbers<[1], [0], [0], [1], [0, 0, 1, 1], [], []>} : vector<32x32xf32>, vector<32x256xf32>, vector<32x256xf32> -> vector<32x256xf32>
    %135 = vector.extract_strided_slice %2 {offsets = [0, 8], sizes = [32, 1], strides = [1, 1]} : vector<32x24xf32> to vector<32x1xf32>
    %136 = vector.broadcast %135 : vector<32x1xf32> to vector<32x256xf32>
    %137 = arith.addf %134, %136 : vector<32x256xf32>
    %138 = arith.addf %80, %137 : vector<32x256xf32>
    %139 = math.sqrt %9 : vector<1x256xf32>
    %cst_46 = arith.constant dense<0.000000e+00> : vector<32xf32>
    %140 = vector.multi_reduction <add>, %138, %cst_46 [1] : vector<32x256xf32> to vector<32xf32>
    %141 = vector.shape_cast %140 : vector<32xf32> to vector<32x1xf32>
    %142 = arith.mulf %138, %138 : vector<32x256xf32>
    %cst_47 = arith.constant dense<0.000000e+00> : vector<32xf32>
    %143 = vector.multi_reduction <add>, %142, %cst_47 [1] : vector<32x256xf32> to vector<32xf32>
    %144 = vector.shape_cast %143 : vector<32xf32> to vector<32x1xf32>
    %cst_48 = arith.constant 3.906250e-03 : f32
    %145 = vector.broadcast %cst_48 : f32 to vector<32x1xf32>
    %146 = arith.mulf %141, %145 : vector<32x1xf32>
    %cst_49 = arith.constant 3.906250e-03 : f32
    %147 = vector.broadcast %cst_49 : f32 to vector<32x1xf32>
    %148 = arith.mulf %144, %147 : vector<32x1xf32>
    %149 = arith.mulf %146, %146 : vector<32x1xf32>
    %150 = arith.subf %148, %149 : vector<32x1xf32>
    %cst_50 = arith.constant 9.99999997E-7 : f32
    %151 = vector.broadcast %cst_50 : f32 to vector<32x1xf32>
    %152 = arith.addf %150, %151 : vector<32x1xf32>
    %153 = math.rsqrt %152 : vector<32x1xf32>
    %154 = vector.extract_strided_slice %2 {offsets = [0, 9], sizes = [32, 1], strides = [1, 1]} : vector<32x24xf32> to vector<32x1xf32>
    %155 = arith.mulf %153, %154 : vector<32x1xf32>
    %156 = vector.extract_strided_slice %2 {offsets = [0, 10], sizes = [32, 1], strides = [1, 1]} : vector<32x24xf32> to vector<32x1xf32>
    %157 = arith.mulf %146, %155 : vector<32x1xf32>
    %158 = arith.subf %156, %157 : vector<32x1xf32>
    %159 = vector.broadcast %155 : vector<32x1xf32> to vector<32x256xf32>
    %160 = arith.mulf %138, %159 : vector<32x256xf32>
    %161 = vector.broadcast %158 : vector<32x1xf32> to vector<32x256xf32>
    %162 = arith.addf %160, %161 : vector<32x256xf32>
    %163 = arith.negf %162 : vector<32x256xf32>
    %164 = math.exp %163 : vector<32x256xf32>
    %cst_51 = arith.constant 1.000000e+00 : f32
    %165 = vector.broadcast %cst_51 : f32 to vector<32x256xf32>
    %166 = arith.addf %165, %164 : vector<32x256xf32>
    %167 = arith.divf %165, %166 : vector<32x256xf32>
    %168 = arith.mulf %162, %167 : vector<32x256xf32>
    %c3 = arith.constant 3 : index
    %c0_52 = arith.constant 0 : index
    %c0_53 = arith.constant 0 : index
    %169 = vector.load %arg3[%c3, %c0_52, %c0_53] : memref<8x32x32xf32, #tpu.memory_space<vmem>>, vector<1x32x32xf32>
    %170 = vector.shape_cast %169 : vector<1x32x32xf32> to vector<32x32xf32>
    %cst_54 = arith.constant dense<0.000000e+00> : vector<32x256xf32>
    %171 = tpu.matmul %170, %168, %cst_54 {dimension_numbers = #tpu.dot_dimension_numbers<[1], [0], [0], [1], [0, 0, 1, 1], [], []>} : vector<32x32xf32>, vector<32x256xf32>, vector<32x256xf32> -> vector<32x256xf32>
    %172 = vector.extract_strided_slice %2 {offsets = [0, 11], sizes = [32, 1], strides = [1, 1]} : vector<32x24xf32> to vector<32x1xf32>
    %173 = vector.broadcast %172 : vector<32x1xf32> to vector<32x256xf32>
    %174 = arith.addf %171, %173 : vector<32x256xf32>
    %cst_55 = arith.constant dense<0.000000e+00> : vector<32xf32>
    %175 = vector.multi_reduction <add>, %174, %cst_55 [1] : vector<32x256xf32> to vector<32xf32>
    %176 = vector.shape_cast %175 : vector<32xf32> to vector<32x1xf32>
    %177 = arith.mulf %174, %174 : vector<32x256xf32>
    %cst_56 = arith.constant dense<0.000000e+00> : vector<32xf32>
    %178 = vector.multi_reduction <add>, %177, %cst_56 [1] : vector<32x256xf32> to vector<32xf32>
    %179 = vector.shape_cast %178 : vector<32xf32> to vector<32x1xf32>
    %cst_57 = arith.constant 3.906250e-03 : f32
    %180 = vector.broadcast %cst_57 : f32 to vector<32x1xf32>
    %181 = arith.mulf %176, %180 : vector<32x1xf32>
    %cst_58 = arith.constant 3.906250e-03 : f32
    %182 = vector.broadcast %cst_58 : f32 to vector<32x1xf32>
    %183 = arith.mulf %179, %182 : vector<32x1xf32>
    %184 = arith.mulf %181, %181 : vector<32x1xf32>
    %185 = arith.subf %183, %184 : vector<32x1xf32>
    %cst_59 = arith.constant 9.99999997E-7 : f32
    %186 = vector.broadcast %cst_59 : f32 to vector<32x1xf32>
    %187 = arith.addf %185, %186 : vector<32x1xf32>
    %188 = math.rsqrt %187 : vector<32x1xf32>
    %189 = vector.extract_strided_slice %2 {offsets = [0, 12], sizes = [32, 1], strides = [1, 1]} : vector<32x24xf32> to vector<32x1xf32>
    %190 = arith.mulf %188, %189 : vector<32x1xf32>
    %191 = vector.extract_strided_slice %2 {offsets = [0, 13], sizes = [32, 1], strides = [1, 1]} : vector<32x24xf32> to vector<32x1xf32>
    %192 = arith.mulf %181, %190 : vector<32x1xf32>
    %193 = arith.subf %191, %192 : vector<32x1xf32>
    %194 = vector.broadcast %190 : vector<32x1xf32> to vector<32x256xf32>
    %195 = arith.mulf %174, %194 : vector<32x256xf32>
    %196 = vector.broadcast %193 : vector<32x1xf32> to vector<32x256xf32>
    %197 = arith.addf %195, %196 : vector<32x256xf32>
    %198 = arith.negf %197 : vector<32x256xf32>
    %199 = math.exp %198 : vector<32x256xf32>
    %cst_60 = arith.constant 1.000000e+00 : f32
    %200 = vector.broadcast %cst_60 : f32 to vector<32x256xf32>
    %201 = arith.addf %200, %199 : vector<32x256xf32>
    %202 = arith.divf %200, %201 : vector<32x256xf32>
    %203 = arith.mulf %197, %202 : vector<32x256xf32>
    %c4 = arith.constant 4 : index
    %c0_61 = arith.constant 0 : index
    %c0_62 = arith.constant 0 : index
    %204 = vector.load %arg3[%c4, %c0_61, %c0_62] : memref<8x32x32xf32, #tpu.memory_space<vmem>>, vector<1x32x32xf32>
    %205 = vector.shape_cast %204 : vector<1x32x32xf32> to vector<32x32xf32>
    %cst_63 = arith.constant dense<0.000000e+00> : vector<32x256xf32>
    %206 = tpu.matmul %205, %203, %cst_63 {dimension_numbers = #tpu.dot_dimension_numbers<[1], [0], [0], [1], [0, 0, 1, 1], [], []>} : vector<32x32xf32>, vector<32x256xf32>, vector<32x256xf32> -> vector<32x256xf32>
    %207 = vector.extract_strided_slice %2 {offsets = [0, 14], sizes = [32, 1], strides = [1, 1]} : vector<32x24xf32> to vector<32x1xf32>
    %208 = vector.broadcast %207 : vector<32x1xf32> to vector<32x256xf32>
    %209 = arith.addf %206, %208 : vector<32x256xf32>
    %210 = arith.addf %138, %209 : vector<32x256xf32>
    %cst_64 = arith.constant dense<0.000000e+00> : vector<32xf32>
    %211 = vector.multi_reduction <add>, %210, %cst_64 [1] : vector<32x256xf32> to vector<32xf32>
    %212 = vector.shape_cast %211 : vector<32xf32> to vector<32x1xf32>
    %213 = arith.mulf %210, %210 : vector<32x256xf32>
    %cst_65 = arith.constant dense<0.000000e+00> : vector<32xf32>
    %214 = vector.multi_reduction <add>, %213, %cst_65 [1] : vector<32x256xf32> to vector<32xf32>
    %215 = vector.shape_cast %214 : vector<32xf32> to vector<32x1xf32>
    %cst_66 = arith.constant 3.906250e-03 : f32
    %216 = vector.broadcast %cst_66 : f32 to vector<32x1xf32>
    %217 = arith.mulf %212, %216 : vector<32x1xf32>
    %cst_67 = arith.constant 3.906250e-03 : f32
    %218 = vector.broadcast %cst_67 : f32 to vector<32x1xf32>
    %219 = arith.mulf %215, %218 : vector<32x1xf32>
    %220 = arith.mulf %217, %217 : vector<32x1xf32>
    %221 = arith.subf %219, %220 : vector<32x1xf32>
    %cst_68 = arith.constant 9.99999997E-7 : f32
    %222 = vector.broadcast %cst_68 : f32 to vector<32x1xf32>
    %223 = arith.addf %221, %222 : vector<32x1xf32>
    %224 = math.rsqrt %223 : vector<32x1xf32>
    %225 = vector.extract_strided_slice %2 {offsets = [0, 15], sizes = [32, 1], strides = [1, 1]} : vector<32x24xf32> to vector<32x1xf32>
    %226 = arith.mulf %224, %225 : vector<32x1xf32>
    %227 = vector.extract_strided_slice %2 {offsets = [0, 16], sizes = [32, 1], strides = [1, 1]} : vector<32x24xf32> to vector<32x1xf32>
    %228 = arith.mulf %217, %226 : vector<32x1xf32>
    %229 = arith.subf %227, %228 : vector<32x1xf32>
    %230 = vector.broadcast %226 : vector<32x1xf32> to vector<32x256xf32>
    %231 = arith.mulf %210, %230 : vector<32x256xf32>
    %232 = vector.broadcast %229 : vector<32x1xf32> to vector<32x256xf32>
    %233 = arith.addf %231, %232 : vector<32x256xf32>
    %c1_69 = arith.constant 1 : index
    %c0_70 = arith.constant 0 : index
    %c0_71 = arith.constant 0 : index
    %234 = vector.load %arg5[%c1_69, %c0_70, %c0_71] : memref<2x96x32xf32, #tpu.memory_space<vmem>>, vector<1x96x32xf32>
    %235 = vector.shape_cast %234 : vector<1x96x32xf32> to vector<96x32xf32>
    %cst_72 = arith.constant dense<0.000000e+00> : vector<96x256xf32>
    %236 = tpu.matmul %235, %233, %cst_72 {dimension_numbers = #tpu.dot_dimension_numbers<[1], [0], [0], [1], [0, 0, 1, 1], [], []>} : vector<96x32xf32>, vector<32x256xf32>, vector<96x256xf32> -> vector<96x256xf32>
    %c1_73 = arith.constant 1 : index
    %c0_74 = arith.constant 0 : index
    %c0_75 = arith.constant 0 : index
    %237 = vector.load %arg6[%c1_73, %c0_74, %c0_75] : memref<2x96x1xf32, #tpu.memory_space<vmem>>, vector<1x96x1xf32>
    %238 = vector.shape_cast %237 : vector<1x96x1xf32> to vector<96x1xf32>
    %239 = vector.broadcast %238 : vector<96x1xf32> to vector<96x256xf32>
    %240 = arith.addf %236, %239 : vector<96x256xf32>
    %241 = vector.extract_strided_slice %240 {offsets = [0, 0], sizes = [32, 256], strides = [1, 1]} : vector<96x256xf32> to vector<32x256xf32>
    %242 = vector.extract_strided_slice %240 {offsets = [32, 0], sizes = [32, 256], strides = [1, 1]} : vector<96x256xf32> to vector<32x256xf32>
    %243 = vector.extract_strided_slice %240 {offsets = [64, 0], sizes = [32, 256], strides = [1, 1]} : vector<96x256xf32> to vector<32x256xf32>
    %244 = arith.truncf %242 : vector<32x256xf32> to vector<32x256xbf16>
    %245 = arith.truncf %241 : vector<32x256xf32> to vector<32x256xbf16>
    %cst_76 = arith.constant dense<0.000000e+00> : vector<256x256xf32>
    %246 = tpu.matmul %244, %245, %cst_76 {dimension_numbers = #tpu.dot_dimension_numbers<[0], [0], [1], [1], [0, 1, 1, 1], [], []>} : vector<32x256xbf16>, vector<32x256xbf16>, vector<256x256xf32> -> vector<256x256xf32>
    %cst_77 = arith.constant dense<0xFF800000> : vector<256xf32>
    %247 = vector.multi_reduction <maximumf>, %246, %cst_77 [0] : vector<256x256xf32> to vector<256xf32>
    %248 = vector.shape_cast %247 : vector<256xf32> to vector<1x256xf32>
    %249 = vector.broadcast %248 : vector<1x256xf32> to vector<256x256xf32>
    %250 = arith.subf %246, %249 : vector<256x256xf32>
    %251 = math.exp %250 : vector<256x256xf32>
    %cst_78 = arith.constant dense<0.000000e+00> : vector<256xf32>
    %252 = vector.multi_reduction <add>, %251, %cst_78 [0] : vector<256x256xf32> to vector<256xf32>
    %253 = vector.shape_cast %252 : vector<256xf32> to vector<1x256xf32>
    %254 = vector.broadcast %139 : vector<1x256xf32> to vector<32x256xf32>
    %255 = arith.mulf %243, %254 : vector<32x256xf32>
    %256 = arith.truncf %255 : vector<32x256xf32> to vector<32x256xbf16>
    %257 = arith.truncf %251 : vector<256x256xf32> to vector<256x256xbf16>
    %cst_79 = arith.constant dense<0.000000e+00> : vector<32x256xf32>
    %258 = tpu.matmul %256, %257, %cst_79 {dimension_numbers = #tpu.dot_dimension_numbers<[1], [0], [0], [1], [0, 0, 1, 1], [], []>} : vector<32x256xbf16>, vector<256x256xbf16>, vector<32x256xf32> -> vector<32x256xf32>
    %259 = tpu.reciprocal %253 {approx = true} : vector<1x256xf32> -> vector<1x256xf32>
    %260 = vector.broadcast %259 : vector<1x256xf32> to vector<32x256xf32>
    %261 = arith.mulf %258, %260 : vector<32x256xf32>
    %c5 = arith.constant 5 : index
    %c0_80 = arith.constant 0 : index
    %c0_81 = arith.constant 0 : index
    %262 = vector.load %arg3[%c5, %c0_80, %c0_81] : memref<8x32x32xf32, #tpu.memory_space<vmem>>, vector<1x32x32xf32>
    %263 = vector.shape_cast %262 : vector<1x32x32xf32> to vector<32x32xf32>
    %cst_82 = arith.constant dense<0.000000e+00> : vector<32x256xf32>
    %264 = tpu.matmul %263, %261, %cst_82 {dimension_numbers = #tpu.dot_dimension_numbers<[1], [0], [0], [1], [0, 0, 1, 1], [], []>} : vector<32x32xf32>, vector<32x256xf32>, vector<32x256xf32> -> vector<32x256xf32>
    %265 = vector.extract_strided_slice %2 {offsets = [0, 17], sizes = [32, 1], strides = [1, 1]} : vector<32x24xf32> to vector<32x1xf32>
    %266 = vector.broadcast %265 : vector<32x1xf32> to vector<32x256xf32>
    %267 = arith.addf %264, %266 : vector<32x256xf32>
    %268 = arith.addf %210, %267 : vector<32x256xf32>
    %cst_83 = arith.constant dense<0.000000e+00> : vector<32xf32>
    %269 = vector.multi_reduction <add>, %268, %cst_83 [1] : vector<32x256xf32> to vector<32xf32>
    %270 = vector.shape_cast %269 : vector<32xf32> to vector<32x1xf32>
    %271 = arith.mulf %268, %268 : vector<32x256xf32>
    %cst_84 = arith.constant dense<0.000000e+00> : vector<32xf32>
    %272 = vector.multi_reduction <add>, %271, %cst_84 [1] : vector<32x256xf32> to vector<32xf32>
    %273 = vector.shape_cast %272 : vector<32xf32> to vector<32x1xf32>
    %cst_85 = arith.constant 3.906250e-03 : f32
    %274 = vector.broadcast %cst_85 : f32 to vector<32x1xf32>
    %275 = arith.mulf %270, %274 : vector<32x1xf32>
    %cst_86 = arith.constant 3.906250e-03 : f32
    %276 = vector.broadcast %cst_86 : f32 to vector<32x1xf32>
    %277 = arith.mulf %273, %276 : vector<32x1xf32>
    %278 = arith.mulf %275, %275 : vector<32x1xf32>
    %279 = arith.subf %277, %278 : vector<32x1xf32>
    %cst_87 = arith.constant 9.99999997E-7 : f32
    %280 = vector.broadcast %cst_87 : f32 to vector<32x1xf32>
    %281 = arith.addf %279, %280 : vector<32x1xf32>
    %282 = math.rsqrt %281 : vector<32x1xf32>
    %283 = vector.extract_strided_slice %2 {offsets = [0, 18], sizes = [32, 1], strides = [1, 1]} : vector<32x24xf32> to vector<32x1xf32>
    %284 = arith.mulf %282, %283 : vector<32x1xf32>
    %285 = vector.extract_strided_slice %2 {offsets = [0, 19], sizes = [32, 1], strides = [1, 1]} : vector<32x24xf32> to vector<32x1xf32>
    %286 = arith.mulf %275, %284 : vector<32x1xf32>
    %287 = arith.subf %285, %286 : vector<32x1xf32>
    %288 = vector.broadcast %284 : vector<32x1xf32> to vector<32x256xf32>
    %289 = arith.mulf %268, %288 : vector<32x256xf32>
    %290 = vector.broadcast %287 : vector<32x1xf32> to vector<32x256xf32>
    %291 = arith.addf %289, %290 : vector<32x256xf32>
    %292 = arith.negf %291 : vector<32x256xf32>
    %293 = math.exp %292 : vector<32x256xf32>
    %cst_88 = arith.constant 1.000000e+00 : f32
    %294 = vector.broadcast %cst_88 : f32 to vector<32x256xf32>
    %295 = arith.addf %294, %293 : vector<32x256xf32>
    %296 = arith.divf %294, %295 : vector<32x256xf32>
    %297 = arith.mulf %291, %296 : vector<32x256xf32>
    %c6 = arith.constant 6 : index
    %c0_89 = arith.constant 0 : index
    %c0_90 = arith.constant 0 : index
    %298 = vector.load %arg3[%c6, %c0_89, %c0_90] : memref<8x32x32xf32, #tpu.memory_space<vmem>>, vector<1x32x32xf32>
    %299 = vector.shape_cast %298 : vector<1x32x32xf32> to vector<32x32xf32>
    %cst_91 = arith.constant dense<0.000000e+00> : vector<32x256xf32>
    %300 = tpu.matmul %299, %297, %cst_91 {dimension_numbers = #tpu.dot_dimension_numbers<[1], [0], [0], [1], [0, 0, 1, 1], [], []>} : vector<32x32xf32>, vector<32x256xf32>, vector<32x256xf32> -> vector<32x256xf32>
    %301 = vector.extract_strided_slice %2 {offsets = [0, 20], sizes = [32, 1], strides = [1, 1]} : vector<32x24xf32> to vector<32x1xf32>
    %302 = vector.broadcast %301 : vector<32x1xf32> to vector<32x256xf32>
    %303 = arith.addf %300, %302 : vector<32x256xf32>
    %cst_92 = arith.constant dense<0.000000e+00> : vector<32xf32>
    %304 = vector.multi_reduction <add>, %303, %cst_92 [1] : vector<32x256xf32> to vector<32xf32>
    %305 = vector.shape_cast %304 : vector<32xf32> to vector<32x1xf32>
    %306 = arith.mulf %303, %303 : vector<32x256xf32>
    %cst_93 = arith.constant dense<0.000000e+00> : vector<32xf32>
    %307 = vector.multi_reduction <add>, %306, %cst_93 [1] : vector<32x256xf32> to vector<32xf32>
    %308 = vector.shape_cast %307 : vector<32xf32> to vector<32x1xf32>
    %cst_94 = arith.constant 3.906250e-03 : f32
    %309 = vector.broadcast %cst_94 : f32 to vector<32x1xf32>
    %310 = arith.mulf %305, %309 : vector<32x1xf32>
    %cst_95 = arith.constant 3.906250e-03 : f32
    %311 = vector.broadcast %cst_95 : f32 to vector<32x1xf32>
    %312 = arith.mulf %308, %311 : vector<32x1xf32>
    %313 = arith.mulf %310, %310 : vector<32x1xf32>
    %314 = arith.subf %312, %313 : vector<32x1xf32>
    %cst_96 = arith.constant 9.99999997E-7 : f32
    %315 = vector.broadcast %cst_96 : f32 to vector<32x1xf32>
    %316 = arith.addf %314, %315 : vector<32x1xf32>
    %317 = math.rsqrt %316 : vector<32x1xf32>
    %318 = vector.extract_strided_slice %2 {offsets = [0, 21], sizes = [32, 1], strides = [1, 1]} : vector<32x24xf32> to vector<32x1xf32>
    %319 = arith.mulf %317, %318 : vector<32x1xf32>
    %320 = vector.extract_strided_slice %2 {offsets = [0, 22], sizes = [32, 1], strides = [1, 1]} : vector<32x24xf32> to vector<32x1xf32>
    %321 = arith.mulf %310, %319 : vector<32x1xf32>
    %322 = arith.subf %320, %321 : vector<32x1xf32>
    %323 = vector.broadcast %319 : vector<32x1xf32> to vector<32x256xf32>
    %324 = arith.mulf %303, %323 : vector<32x256xf32>
    %325 = vector.broadcast %322 : vector<32x1xf32> to vector<32x256xf32>
    %326 = arith.addf %324, %325 : vector<32x256xf32>
    %327 = arith.negf %326 : vector<32x256xf32>
    %328 = math.exp %327 : vector<32x256xf32>
    %cst_97 = arith.constant 1.000000e+00 : f32
    %329 = vector.broadcast %cst_97 : f32 to vector<32x256xf32>
    %330 = arith.addf %329, %328 : vector<32x256xf32>
    %331 = arith.divf %329, %330 : vector<32x256xf32>
    %332 = arith.mulf %326, %331 : vector<32x256xf32>
    %c7 = arith.constant 7 : index
    %c0_98 = arith.constant 0 : index
    %c0_99 = arith.constant 0 : index
    %333 = vector.load %arg3[%c7, %c0_98, %c0_99] : memref<8x32x32xf32, #tpu.memory_space<vmem>>, vector<1x32x32xf32>
    %334 = vector.shape_cast %333 : vector<1x32x32xf32> to vector<32x32xf32>
    %cst_100 = arith.constant dense<0.000000e+00> : vector<32x256xf32>
    %335 = tpu.matmul %334, %332, %cst_100 {dimension_numbers = #tpu.dot_dimension_numbers<[1], [0], [0], [1], [0, 0, 1, 1], [], []>} : vector<32x32xf32>, vector<32x256xf32>, vector<32x256xf32> -> vector<32x256xf32>
    %336 = vector.extract_strided_slice %2 {offsets = [0, 23], sizes = [32, 1], strides = [1, 1]} : vector<32x24xf32> to vector<32x1xf32>
    %337 = vector.broadcast %336 : vector<32x1xf32> to vector<32x256xf32>
    %338 = arith.addf %335, %337 : vector<32x256xf32>
    %339 = arith.addf %268, %338 : vector<32x256xf32>
    %c0_101 = arith.constant 0 : index
    %c0_102 = arith.constant 0 : index
    %c0_103 = arith.constant 0 : index
    %340 = vector.load %arg7[%c0_101, %c0_102, %c0_103] : memref<1x32x256xf32, #tpu.memory_space<vmem>>, vector<1x32x256xf32>
    %341 = vector.shape_cast %340 : vector<1x32x256xf32> to vector<32x256xf32>
    %342 = vector.shape_cast %339 : vector<32x256xf32> to vector<1x32x256xf32>
    tpu.vector_store %arg7[%c0_101, %c0_102, %c0_103], %342 {strides = array<i32>} : memref<1x32x256xf32, #tpu.memory_space<vmem>>, vector<1x32x256xf32>,
    return
  }
  func.func @transform_0(%arg0: i32) -> (i32, i32, i32) {
    %c0_i32 = arith.constant 0 : i32
    %c0_i32_0 = arith.constant 0 : i32
    %c0_i32_1 = arith.constant 0 : i32
    return %arg0, %c0_i32, %c0_i32_0 : i32, i32, i32
  }
  func.func @transform_1(%arg0: i32) -> (i32, i32, i32) {
    %c0_i32 = arith.constant 0 : i32
    %c0_i32_0 = arith.constant 0 : i32
    %c0_i32_1 = arith.constant 0 : i32
    return %arg0, %c0_i32, %c0_i32_0 : i32, i32, i32
  }
  func.func @transform_2(%arg0: i32) -> (i32, i32, i32) {
    %c0_i32 = arith.constant 0 : i32
    %c0_i32_0 = arith.constant 0 : i32
    %c0_i32_1 = arith.constant 0 : i32
    %c0_i32_2 = arith.constant 0 : i32
    return %c0_i32, %c0_i32_0, %c0_i32_1 : i32, i32, i32
  }
  func.func @transform_3(%arg0: i32) -> (i32, i32) {
    %c0_i32 = arith.constant 0 : i32
    %c0_i32_0 = arith.constant 0 : i32
    %c0_i32_1 = arith.constant 0 : i32
    return %c0_i32, %c0_i32_0 : i32, i32
  }
  func.func @transform_4(%arg0: i32) -> (i32, i32, i32) {
    %c0_i32 = arith.constant 0 : i32
    %c0_i32_0 = arith.constant 0 : i32
    %c0_i32_1 = arith.constant 0 : i32
    %c0_i32_2 = arith.constant 0 : i32
    return %c0_i32, %c0_i32_0, %c0_i32_1 : i32, i32, i32
  }
  func.func @transform_5(%arg0: i32) -> (i32, i32, i32) {
    %c0_i32 = arith.constant 0 : i32
    %c0_i32_0 = arith.constant 0 : i32
    %c0_i32_1 = arith.constant 0 : i32
    %c0_i32_2 = arith.constant 0 : i32
    return %c0_i32, %c0_i32_0, %c0_i32_1 : i32, i32, i32
  }
  func.func @transform_6(%arg0: i32) -> (i32, i32, i32) {
    %c0_i32 = arith.constant 0 : i32
    %c0_i32_0 = arith.constant 0 : i32
    %c0_i32_1 = arith.constant 0 : i32
    return %arg0, %c0_i32, %c0_i32_0 : i32, i32, i32
  }
}

</mosaic_0001>

<llo_original>
// kernel: token_reconstruction_forward.1
$region0: #{token_reconstruction_forward.1}
  #allocation0 [shape = 'u32[]', space=smem, size = 0x4, offset = 0x4, fixed_abs, tag = 'smem constant byte address 0x4 - core index']
  #allocation1 [shape = 'u32[144,128]{1,0:T(1,128)}', space=vmem, size = 0x12000, scoped, tag = 'internal scratch']
  %s0 = inlined_call_operand.vmem [shape: f32[2,32,256], index: 0, kind: input, shape index: {}]
  %s1 = inlined_call_operand.vmem [shape: f32[2,1,256], index: 1, kind: input, shape index: {}]
  %s2 = inlined_call_operand.vmem [shape: f32[8,32,32], index: 2, kind: input, shape index: {}]
  %s3 = inlined_call_operand.vmem [shape: f32[32,24], index: 3, kind: input, shape index: {}]
  %s4 = inlined_call_operand.vmem [shape: f32[2,96,32], index: 4, kind: input, shape index: {}]
  %s5 = inlined_call_operand.vmem [shape: f32[2,96,1], index: 5, kind: input, shape index: {}]
  %s6 = inlined_call_operand.vmem [shape: f32[2,32,256], index: 6, kind: output, shape index: {}]
  %s7 = sld [smem:[#allocation0]]
  $region57: #{token_reconstruction_forward.1} parent=0
    _
  %s9 = ssub.s32 1, %s7
  %s10 = scalar_select 0, %s9, %s7
  loop: start=0, step=1, limit=4
  $region2: #{token_reconstruction_forward.1} parent=0 // loop_pre_header
    _
  $region3: #{token_reconstruction_forward.1} parent=0 // loop_header
    %s12 = sphi 0, %s16
    %p13 = scmp.ge.s32.totalorder %s12, 4
    %s22 = sphi 0, %s24
    %s25 = sphi 0, %s22
    %s26 = sphi 0, %s25
    %s42 = sphi 0, %s26
    %s48 = sphi 0, %s50
    %s51 = sphi 0, %s48
    %s52 = sphi 0, %s51
    %s68 = sphi 0, %s52
    %s72 = sphi 0, %s72
    %s74 = sphi 0, %s72
    %s75 = sphi 0, %s74
    %s89 = sphi 0, %s75
    %s93 = sphi 0, %s93
    %s95 = sphi 0, %s93
    %s96 = sphi 0, %s95
    %s110 = sphi 0, %s96
    %s114 = sphi 0, %s114
    %s116 = sphi 0, %s114
    %s117 = sphi 0, %s116
    %s131 = sphi 0, %s117
    %s135 = sphi 0, %s135
    %s137 = sphi 0, %s135
    %s138 = sphi 0, %s137
    %s152 = sphi 0, %s138
    %s158 = sphi 0, %s160
    %s161 = sphi 0, %s158
    %s162 = sphi 0, %s161
    %s178 = sphi 0, %s162
  $region4: #{token_reconstruction_forward.1} parent=0 // loop_header_branch
    %15 = sbr.rel (%p13) target = $region8
  $region5: #{token_reconstruction_forward.1} parent=0 // loop_body
    %s17 = ssub.s32 %s12, 1
    %s18 = ssub.s32 %s12, 2
    %s19 = sadd.s32 %s12, 1
    %s20 = ssub.s32 %s12, %s19
    %p21 = scmp.eq.s32.totalorder %s20, 0
    %s23 = sadd.s32 %s22, 1
    %s24 = scalar_select %p21, %s22, %s23
    %p27 = pneg %p21
    %p28 = scmp.eq.s32.totalorder %s12, 1
    %p29 = por %p27, %p28
    %p30 = scmp.ne.s32.totalorder %s22, %s25
    %p31 = scmp.eq.s32.totalorder %s12, 0
    %p32 = por %p30, %p31
    %p33 = scmp.ne.s32.totalorder %s22, %s25
    %p34 = scmp.eq.s32.totalorder %s17, 1
    %p35 = por %p33, %p34
    %p36 = scmp.ne.s32.totalorder %s25, %s26
    %p37 = scmp.eq.s32.totalorder %s17, 0
    %p38 = por %p36, %p37
    %p39 = scmp.ne.s32.totalorder %s25, %s26
    %p40 = scmp.eq.s32.totalorder %s18, 1
    %p41 = por %p39, %p40
    %p43 = scmp.ne.s32.totalorder %s26, %s42
    %p44 = scmp.eq.s32.totalorder %s18, 0
    %p45 = por %p43, %p44
    %s46 = ssub.s32 %s12, %s19
    %p47 = scmp.eq.s32.totalorder %s46, 0
    %s49 = sadd.s32 %s48, 1
    %s50 = scalar_select %p47, %s48, %s49
    %p53 = pneg %p47
    %p54 = scmp.eq.s32.totalorder %s12, 1
    %p55 = por %p53, %p54
    %p56 = scmp.ne.s32.totalorder %s48, %s51
    %p57 = scmp.eq.s32.totalorder %s12, 0
    %p58 = por %p56, %p57
    %p59 = scmp.ne.s32.totalorder %s48, %s51
    %p60 = scmp.eq.s32.totalorder %s17, 1
    %p61 = por %p59, %p60
    %p62 = scmp.ne.s32.totalorder %s51, %s52
    %p63 = scmp.eq.s32.totalorder %s17, 0
    %p64 = por %p62, %p63
    %p65 = scmp.ne.s32.totalorder %s51, %s52
    %p66 = scmp.eq.s32.totalorder %s18, 1
    %p67 = por %p65, %p66
    %p69 = scmp.ne.s32.totalorder %s52, %s68
    %p70 = scmp.eq.s32.totalorder %s18, 0
    %p71 = por %p69, %p70
    %s73 = sadd.s32 %s72, 1
    %p76 = scmp.eq.s32.totalorder %s12, 1
    %p77 = scmp.ne.s32.totalorder %s72, %s74
    %p78 = scmp.eq.s32.totalorder %s12, 0
    %p79 = por %p77, %p78
    %p80 = scmp.ne.s32.totalorder %s72, %s74
    %p81 = scmp.eq.s32.totalorder %s17, 1
    %p82 = por %p80, %p81
    %p83 = scmp.ne.s32.totalorder %s74, %s75
    %p84 = scmp.eq.s32.totalorder %s17, 0
    %p85 = por %p83, %p84
    %p86 = scmp.ne.s32.totalorder %s74, %s75
    %p87 = scmp.eq.s32.totalorder %s18, 1
    %p88 = por %p86, %p87
    %p90 = scmp.ne.s32.totalorder %s75, %s89
    %p91 = scmp.eq.s32.totalorder %s18, 0
    %p92 = por %p90, %p91
    %s94 = sadd.s32 %s93, 1
    %p97 = scmp.eq.s32.totalorder %s12, 1
    %p98 = scmp.ne.s32.totalorder %s93, %s95
    %p99 = scmp.eq.s32.totalorder %s12, 0
    %p100 = por %p98, %p99
    %p101 = scmp.ne.s32.totalorder %s93, %s95
    %p102 = scmp.eq.s32.totalorder %s17, 1
    %p103 = por %p101, %p102
    %p104 = scmp.ne.s32.totalorder %s95, %s96
    %p105 = scmp.eq.s32.totalorder %s17, 0
    %p106 = por %p104, %p105
    %p107 = scmp.ne.s32.totalorder %s95, %s96
    %p108 = scmp.eq.s32.totalorder %s18, 1
    %p109 = por %p107, %p108
    %p111 = scmp.ne.s32.totalorder %s96, %s110
    %p112 = scmp.eq.s32.totalorder %s18, 0
    %p113 = por %p111, %p112
    %s115 = sadd.s32 %s114, 1
    %p118 = scmp.eq.s32.totalorder %s12, 1
    %p119 = scmp.ne.s32.totalorder %s114, %s116
    %p120 = scmp.eq.s32.totalorder %s12, 0
    %p121 = por %p119, %p120
    %p122 = scmp.ne.s32.totalorder %s114, %s116
    %p123 = scmp.eq.s32.totalorder %s17, 1
    %p124 = por %p122, %p123
    %p125 = scmp.ne.s32.totalorder %s116, %s117
    %p126 = scmp.eq.s32.totalorder %s17, 0
    %p127 = por %p125, %p126
    %p128 = scmp.ne.s32.totalorder %s116, %s117
    %p129 = scmp.eq.s32.totalorder %s18, 1
    %p130 = por %p128, %p129
    %p132 = scmp.ne.s32.totalorder %s117, %s131
    %p133 = scmp.eq.s32.totalorder %s18, 0
    %p134 = por %p132, %p133
    %s136 = sadd.s32 %s135, 1
    %p139 = scmp.eq.s32.totalorder %s12, 1
    %p140 = scmp.ne.s32.totalorder %s135, %s137
    %p141 = scmp.eq.s32.totalorder %s12, 0
    %p142 = por %p140, %p141
    %p143 = scmp.ne.s32.totalorder %s135, %s137
    %p144 = scmp.eq.s32.totalorder %s17, 1
    %p145 = por %p143, %p144
    %p146 = scmp.ne.s32.totalorder %s137, %s138
    %p147 = scmp.eq.s32.totalorder %s17, 0
    %p148 = por %p146, %p147
    %p149 = scmp.ne.s32.totalorder %s137, %s138
    %p150 = scmp.eq.s32.totalorder %s18, 1
    %p151 = por %p149, %p150
    %p153 = scmp.ne.s32.totalorder %s138, %s152
    %p154 = scmp.eq.s32.totalorder %s18, 0
    %p155 = por %p153, %p154
    %s156 = ssub.s32 %s12, %s19
    %p157 = scmp.eq.s32.totalorder %s156, 0
    %s159 = sadd.s32 %s158, 1
    %s160 = scalar_select %p157, %s158, %s159
    %p163 = pneg %p157
    %p164 = scmp.eq.s32.totalorder %s12, 1
    %p165 = por %p163, %p164
    %p166 = scmp.ne.s32.totalorder %s158, %s161
    %p167 = scmp.eq.s32.totalorder %s12, 0
    %p168 = por %p166, %p167
    %p169 = scmp.ne.s32.totalorder %s158, %s161
    %p170 = scmp.eq.s32.totalorder %s17, 1
    %p171 = por %p169, %p170
    %p172 = scmp.ne.s32.totalorder %s161, %s162
    %p173 = scmp.eq.s32.totalorder %s17, 0
    %p174 = por %p172, %p173
    %p175 = scmp.ne.s32.totalorder %s161, %s162
    %p176 = scmp.eq.s32.totalorder %s18, 1
    %p177 = por %p175, %p176
    %p179 = scmp.ne.s32.totalorder %s162, %s178
    %p180 = scmp.eq.s32.totalorder %s18, 0
    %p181 = por %p179, %p180
    %p182 = scmp.le.s32.totalorder 1, %s12
    %p183 = scmp.lt.s32.totalorder %s12, 3
    %p184 = pnand %p182, %p183
    %p185 = pneg %p184
    // Predicated region
    $region9: #{token_reconstruction_forward.1} parent=5 // pred_check
      _
    $region10: #{token_reconstruction_forward.1} parent=5 // pred_check_branch
      %187 = sbr.rel (%p184) target = $region12
    $region11: #{token_reconstruction_forward.1} parent=5 // pred_region
      %s188 = ssub.s32 %s12, 1
      // Predicated region
      $region13: #{token_reconstruction_forward.1} parent=11 // pred_check
        %p189 = pneg %p85
      $region14: #{token_reconstruction_forward.1} parent=11 // pred_check_branch
        %191 = sbr.rel (%p189) target = $region16
      $region15: #{token_reconstruction_forward.1} parent=11 // pred_region
        _
      $region16: #{token_reconstruction_forward.1} parent=11 // pred_fallthru
        _
      // Predicated region
      $region17: #{token_reconstruction_forward.1} parent=11 // pred_check
        %p192 = pneg %p106
      $region18: #{token_reconstruction_forward.1} parent=11 // pred_check_branch
        %194 = sbr.rel (%p192) target = $region20
      $region19: #{token_reconstruction_forward.1} parent=11 // pred_region
        _
      $region20: #{token_reconstruction_forward.1} parent=11 // pred_fallthru
        _
      // Predicated region
      $region21: #{token_reconstruction_forward.1} parent=11 // pred_check
        %p195 = pneg %p127
      $region22: #{token_reconstruction_forward.1} parent=11 // pred_check_branch
        %197 = sbr.rel (%p195) target = $region24
      $region23: #{token_reconstruction_forward.1} parent=11 // pred_region
        _
      $region24: #{token_reconstruction_forward.1} parent=11 // pred_fallthru
        _
      // Predicated region
      $region25: #{token_reconstruction_forward.1} parent=11 // pred_check
        %p198 = pneg %p148
      $region26: #{token_reconstruction_forward.1} parent=11 // pred_check_branch
        %200 = sbr.rel (%p198) target = $region28
      $region27: #{token_reconstruction_forward.1} parent=11 // pred_region
        _
      $region28: #{token_reconstruction_forward.1} parent=11 // pred_fallthru
        _
    $region12: #{token_reconstruction_forward.1} parent=5 // pred_fallthru
      _
    %p201 = scmp.lt.s32.totalorder %s12, 2
    // Predicated region
    $region29: #{token_reconstruction_forward.1} parent=5 // pred_check
      %p202 = pneg %p201
    $region30: #{token_reconstruction_forward.1} parent=5 // pred_check_branch
      %204 = sbr.rel (%p202) target = $region32
    $region31: #{token_reconstruction_forward.1} parent=5 // pred_region
      // Predicated region
      $region33: #{token_reconstruction_forward.1} parent=31 // pred_check
        %p205 = pneg %p32
      $region34: #{token_reconstruction_forward.1} parent=31 // pred_check_branch
        %207 = sbr.rel (%p205) target = $region36
      $region35: #{token_reconstruction_forward.1} parent=31 // pred_region
        %p208 = scmp.lt.s32.totalorder %s12, 1
        %s209 = scalar_select %p208, %s12, 1
        %s210 = smul.addr %s209, 8
        %s211 = smul.addr %s210, 8
        %s212 = scalar_lea.vmem %s0, %s211
      $region36: #{token_reconstruction_forward.1} parent=31 // pred_fallthru
        _
      // Predicated region
      $region37: #{token_reconstruction_forward.1} parent=31 // pred_check
        %p213 = pneg %p58
      $region38: #{token_reconstruction_forward.1} parent=31 // pred_check_branch
        %215 = sbr.rel (%p213) target = $region40
      $region39: #{token_reconstruction_forward.1} parent=31 // pred_region
        %p216 = scmp.lt.s32.totalorder %s12, 1
        %s217 = scalar_select %p216, %s12, 1
        %s218 = smul.addr %s217, 2
        %s219 = scalar_lea.vmem %s1, %s218
      $region40: #{token_reconstruction_forward.1} parent=31 // pred_fallthru
        _
    $region32: #{token_reconstruction_forward.1} parent=5 // pred_fallthru
      _
    %p220 = scmp.le.s32.totalorder 1, %s12
    %p221 = scmp.lt.s32.totalorder %s12, 3
    %p222 = pnand %p220, %p221
    %p223 = pneg %p222
    // Predicated region
    $region41: #{token_reconstruction_forward.1} parent=5 // pred_check
      _
    $region42: #{token_reconstruction_forward.1} parent=5 // pred_check_branch
      %225 = sbr.rel (%p222) target = $region44
    $region43: #{token_reconstruction_forward.1} parent=5 // pred_region
      %s226 = ssub.s32 %s12, 1
      %p227 = scmp.lt.s32.totalorder %s17, 1
      %s228 = scalar_select %p227, %s17, 1
      %s229 = smul.addr %s228, 8
      %s230 = smul.addr %s229, 8
      %s231 = scalar_lea.vmem %s0, %s230
      %p232 = pneg %p38
      %p233 = pneg %p35
      %p234 = scmp.lt.s32.totalorder %s17, 1
      %s235 = scalar_select %p234, %s17, 1
      %s236 = smul.addr %s235, 2
      %s237 = scalar_lea.vmem %s1, %s236
      %p238 = pneg %p64
      %p239 = pneg %p61
      %p240 = pneg %p85
      %p241 = pneg %p82
      %p242 = pneg %p106
      %p243 = pneg %p103
      %p244 = pneg %p127
      %p245 = pneg %p124
      %p246 = pneg %p148
      %p247 = pneg %p145
      %p248 = pneg %p174
      %p249 = pneg %p171
      %p250 = scmp.lt.s32.totalorder %s17, 1
      %s251 = scalar_select %p250, %s17, 1
      %s252 = smul.addr %s251, 8
      %s253 = smul.addr %s252, 8
      %s254 = scalar_lea.vmem %s6, %s253
      %p255 = scmp.lt.s32.totalorder %s17, 1
      %s256 = scalar_select %p255, %s17, 1
      %s257 = smul.addr %s256, 8
      %s258 = smul.addr %s257, 8
      %s259 = scalar_lea.vmem %s0, %s258
      %p260 = scmp.lt.s32.totalorder %s17, 1
      %s261 = scalar_select %p260, %s17, 1
      %s262 = smul.addr %s261, 2
      %s263 = scalar_lea.vmem %s1, %s262
      %p264 = scmp.lt.s32.totalorder %s17, 1
      %s265 = scalar_select %p264, %s17, 1
      %s266 = smul.addr %s265, 8
      %s267 = smul.addr %s266, 8
      %s268 = scalar_lea.vmem %s6, %s267
      %v270 = vld [vmem:[%s259] sm:$0xff]
      %v271 = vld [vmem:[%s259 + $0x8] sm:$0xff]
      %v272 = vld [vmem:[%s259 + $0x10] sm:$0xff]
      %v273 = vld [vmem:[%s259 + $0x18] sm:$0xff]
      %v274 = vld [vmem:[%s259 + $0x20] sm:$0xff]
      %v275 = vld [vmem:[%s259 + $0x28] sm:$0xff]
      %v276 = vld [vmem:[%s259 + $0x30] sm:$0xff]
      %v277 = vld [vmem:[%s259 + $0x38] sm:$0xff]
      %v278 = vld [vmem:[%s3] sm:$0xff]
      %v279 = vld [vmem:[%s3 + $0x8] sm:$0xff]
      %v280 = vld [vmem:[%s3 + $0x10] sm:$0xff]
      %v281 = vld [vmem:[%s3 + $0x18] sm:$0xff]
      %v282 = vld [vmem:[%s263] sm:$0x3]
      %v283 = vsub.f32 1.0, %v282
      %v284 = vmul.f32 %v283, 0.02
      %v285 = vadd.f32 %v282, %v284
      %v286 = vadd.f32 %v270, %v271
      %287 = vadd.xlane.f32.xlu0 %v286
      %v288 = vpop.xlane.xlu0 %287
      %v289 = vadd.f32 %v272, %v273
      %290 = vadd.xlane.f32.xlu0 %v289
      %v291 = vpop.xlane.xlu0 %290
      %v292 = vadd.f32 %v274, %v275
      %293 = vadd.xlane.f32.xlu0 %v292
      %v294 = vpop.xlane.xlu0 %293
      %v295 = vadd.f32 %v276, %v277
      %296 = vadd.xlane.f32.xlu0 %v295
      %v297 = vpop.xlane.xlu0 %296
      %v298 = vmul.f32 %v270, %v270
      %v299 = vmul.f32 %v271, %v271
      %v300 = vmul.f32 %v272, %v272
      %v301 = vmul.f32 %v273, %v273
      %v302 = vmul.f32 %v274, %v274
      %v303 = vmul.f32 %v275, %v275
      %v304 = vmul.f32 %v276, %v276
      %v305 = vmul.f32 %v277, %v277
      %v306 = vadd.f32 %v298, %v299
      %307 = vadd.xlane.f32.xlu0 %v306
      %v308 = vpop.xlane.xlu0 %307
      %v309 = vadd.f32 %v300, %v301
      %310 = vadd.xlane.f32.xlu0 %v309
      %v311 = vpop.xlane.xlu0 %310
      %v312 = vadd.f32 %v302, %v303
      %313 = vadd.xlane.f32.xlu0 %v312
      %v314 = vpop.xlane.xlu0 %313
      %v315 = vadd.f32 %v304, %v305
      %316 = vadd.xlane.f32.xlu0 %v315
      %v317 = vpop.xlane.xlu0 %316
      %v318 = vmul.f32 %v288, 0.00390625
      %v319 = vmul.f32 %v291, 0.00390625
      %v320 = vmul.f32 %v294, 0.00390625
      %v321 = vmul.f32 %v297, 0.00390625
      %v322 = vmul.f32 %v308, 0.00390625
      %v323 = vmul.f32 %v311, 0.00390625
      %v324 = vmul.f32 %v314, 0.00390625
      %v325 = vmul.f32 %v317, 0.00390625
      %v326 = vmul.f32 %v318, %v318
      %v327 = vmul.f32 %v319, %v319
      %v328 = vmul.f32 %v320, %v320
      %v329 = vmul.f32 %v321, %v321
      %v330 = vsub.f32 %v322, %v326
      %v331 = vsub.f32 %v323, %v327
      %v332 = vsub.f32 %v324, %v328
      %v333 = vsub.f32 %v325, %v329
      %v334 = vadd.f32 %v330, 1e-06
      %v335 = vadd.f32 %v331, 1e-06
      %v336 = vadd.f32 %v332, 1e-06
      %v337 = vadd.f32 %v333, 1e-06
      %v338 = vrsqrt.pop %v334
      %v339 = vrsqrt.pop %v335
      %v340 = vrsqrt.pop %v336
      %v341 = vrsqrt.pop %v337
      %v342 = vmul.f32 %v338, %v278
      %v343 = vmul.f32 %v339, %v279
      %v344 = vmul.f32 %v340, %v280
      %v345 = vmul.f32 %v341, %v281
      %v346 = vmul.f32 %v318, %v342
      %v347 = vmul.f32 %v319, %v343
      %v348 = vmul.f32 %v320, %v344
      %v349 = vmul.f32 %v321, %v345
      %354 = vrot.lane.b32.xlu0 %v346, 1
      %v355 = vpop.permute.xlu0 %354
      %356 = vrot.lane.b32.xlu0 %v347, 1
      %v357 = vpop.permute.xlu0 %356
      %358 = vrot.lane.b32.xlu0 %v348, 1
      %v359 = vpop.permute.xlu0 %358
      %360 = vrot.lane.b32.xlu0 %v349, 1
      %v361 = vpop.permute.xlu0 %360
      %v366 = vsub.f32 %v278, %v355
      %v367 = vsub.f32 %v279, %v357
      %v368 = vsub.f32 %v280, %v359
      %v369 = vsub.f32 %v281, %v361
      %371 = vset.pattern.permute.xlu0 0
      %372 = vperm.xlu0 %371, %v342
      %v373 = vpop.permute.xlu0 %372
      %376 = vset.pattern.permute.xlu0 0
      %377 = vperm.xlu0 %376, %v343
      %v378 = vpop.permute.xlu0 %377
      %381 = vset.pattern.permute.xlu0 0
      %382 = vperm.xlu0 %381, %v344
      %v383 = vpop.permute.xlu0 %382
      %386 = vset.pattern.permute.xlu0 0
      %387 = vperm.xlu0 %386, %v345
      %v388 = vpop.permute.xlu0 %387
      %v390 = vmul.f32 %v270, %v373
      %v391 = vmul.f32 %v271, %v373
      %v392 = vmul.f32 %v272, %v378
      %v393 = vmul.f32 %v273, %v378
      %v394 = vmul.f32 %v274, %v383
      %v395 = vmul.f32 %v275, %v383
      %v396 = vmul.f32 %v276, %v388
      %v397 = vmul.f32 %v277, %v388
      %399 = vset.pattern.permute.xlu0 1
      %400 = vperm.xlu0 %399, %v366
      %v401 = vpop.permute.xlu0 %400
      %404 = vset.pattern.permute.xlu0 1
      %405 = vperm.xlu0 %404, %v367
      %v406 = vpop.permute.xlu0 %405
      %409 = vset.pattern.permute.xlu0 1
      %410 = vperm.xlu0 %409, %v368
      %v411 = vpop.permute.xlu0 %410
      %414 = vset.pattern.permute.xlu0 1
      %415 = vperm.xlu0 %414, %v369
      %v416 = vpop.permute.xlu0 %415
      %v418 = vadd.f32 %v390, %v401
      %v419 = vadd.f32 %v391, %v401
      %v420 = vadd.f32 %v392, %v406
      %v421 = vadd.f32 %v393, %v406
      %v422 = vadd.f32 %v394, %v411
      %v423 = vadd.f32 %v395, %v411
      %v424 = vadd.f32 %v396, %v416
      %v425 = vadd.f32 %v397, %v416
      %v426 = vxor.u32 %v418, 2147483648
      %v427 = vxor.u32 %v419, 2147483648
      %v428 = vxor.u32 %v420, 2147483648
      %v429 = vxor.u32 %v421, 2147483648
      %v430 = vxor.u32 %v422, 2147483648
      %v431 = vxor.u32 %v423, 2147483648
      %v432 = vxor.u32 %v424, 2147483648
      %v433 = vxor.u32 %v425, 2147483648
      %v434 = vmul.f32 %v426, 1.442695
      %v435 = vpow.pop %v434
      %v436 = vmul.f32 %v427, 1.442695
      %v437 = vpow.pop %v436
      %v438 = vmul.f32 %v428, 1.442695
      %v439 = vpow.pop %v438
      %v440 = vmul.f32 %v429, 1.442695
      %v441 = vpow.pop %v440
      %v442 = vmul.f32 %v430, 1.442695
      %v443 = vpow.pop %v442
      %v444 = vmul.f32 %v431, 1.442695
      %v445 = vpow.pop %v444
      %v446 = vmul.f32 %v432, 1.442695
      %v447 = vpow.pop %v446
      %v448 = vmul.f32 %v433, 1.442695
      %v449 = vpow.pop %v448
      %v450 = vadd.f32 %v435, 1.0
      %v451 = vadd.f32 %v437, 1.0
      %v452 = vadd.f32 %v439, 1.0
      %v453 = vadd.f32 %v441, 1.0
      %v454 = vadd.f32 %v443, 1.0
      %v455 = vadd.f32 %v445, 1.0
      %v456 = vadd.f32 %v447, 1.0
      %v457 = vadd.f32 %v449, 1.0
      %v458 = vrcp.pop %v450
      %v459 = vmul.f32 1.0, %v458
      %v460 = vrcp.pop %v451
      %v461 = vmul.f32 1.0, %v460
      %v462 = vrcp.pop %v452
      %v463 = vmul.f32 1.0, %v462
      %v464 = vrcp.pop %v453
      %v465 = vmul.f32 1.0, %v464
      %v466 = vrcp.pop %v454
      %v467 = vmul.f32 1.0, %v466
      %v468 = vrcp.pop %v455
      %v469 = vmul.f32 1.0, %v468
      %v470 = vrcp.pop %v456
      %v471 = vmul.f32 1.0, %v470
      %v472 = vrcp.pop %v457
      %v473 = vmul.f32 1.0, %v472
      %v474 = vmul.f32 %v418, %v459
      %v475 = vmul.f32 %v419, %v461
      %v476 = vmul.f32 %v420, %v463
      %v477 = vmul.f32 %v421, %v465
      %v478 = vmul.f32 %v422, %v467
      %v479 = vmul.f32 %v423, %v469
      %v480 = vmul.f32 %v424, %v471
      %v481 = vmul.f32 %v425, %v473
      %v482 = vld [vmem:[%s2] sm:$0xff]
      %v483 = vld [vmem:[%s2 + $0x8] sm:$0xff]
      %v484 = vld [vmem:[%s2 + $0x10] sm:$0xff]
      %v485 = vld [vmem:[%s2 + $0x18] sm:$0xff]
      %487 = vset.pattern.permute.xlu0 2
      %488 = vperm.xlu0 %487, %v278
      %v489 = vpop.permute.xlu0 %488
      %492 = vset.pattern.permute.xlu0 2
      %493 = vperm.xlu0 %492, %v279
      %v494 = vpop.permute.xlu0 %493
      %497 = vset.pattern.permute.xlu0 2
      %498 = vperm.xlu0 %497, %v280
      %v499 = vpop.permute.xlu0 %498
      %502 = vset.pattern.permute.xlu0 2
      %503 = vperm.xlu0 %502, %v281
      %v504 = vpop.permute.xlu0 %503
      %vm506 = vcmask 261120
      %v508 = vsel %vm506, %v482, 0
      %v511 = vsel %vm506, %v483, 0
      %v514 = vsel %vm506, %v484, 0
      %v517 = vsel %vm506, %v485, 0
      %519 = vmatprep.subr.mxu0 0.0
      %520 = vmatpush1.msra.mxu0 0.0
      %521 = vmatprep.subr.mxu0 0.0
      %522 = vmatpush1.msra.mxu0 0.0
      %523 = vmatprep.subr.mxu0 0.0
      %524 = vmatpush1.msra.mxu0 0.0
      %525 = vmatprep.subr.mxu0 0.0
      %526 = vmatpush1.msra.mxu0 0.0
      %527 = vmatprep.subr.mxu0 0.0
      %528 = vmatpush1.msra.mxu0 0.0
      %529 = vmatprep.subr.mxu0 0.0
      %530 = vmatpush1.msra.mxu0 0.0
      %531 = vmatprep.subr.mxu0 0.0
      %532 = vmatpush1.msra.mxu0 0.0
      %533 = vmatprep.subr.mxu0 0.0
      %534 = vmatpush1.msra.mxu0 0.0
      %535 = vmatprep.subr.mxu0 0.0
      %536 = vmatpush1.msra.mxu0 0.0
      %537 = vmatprep.subr.mxu0 0.0
      %538 = vmatpush1.msra.mxu0 0.0
      %539 = vmatprep.subr.mxu0 0.0
      %540 = vmatpush1.msra.mxu0 0.0
      %541 = vmatprep.subr.mxu0 0.0
      %542 = vmatpush1.msra.mxu0 0.0
      %543 = vmatprep.subr.mxu0 %v481
      %544 = vmatpush1.msra.mxu0 %v480
      %545 = vmatprep.subr.mxu0 %v479
      %546 = vmatpush1.msra.mxu0 %v478
      %547 = vmatprep.subr.mxu0 %v477
      %548 = vmatpush1.msra.mxu0 %v476
      %549 = vmatprep.subr.mxu0 %v475
      %550 = vmatpush1.msra.mxu0 %v474
      %551 = vmatprep.subr.mxu0 0.0
      %552 = vmatpush2.msra.mxu0 0.0
      %553 = vmatprep.subr.mxu0 0.0
      %554 = vmatpush2.msra.mxu0 0.0
      %555 = vmatprep.subr.mxu0 0.0
      %556 = vmatpush2.msra.mxu0 0.0
      %557 = vmatprep.subr.mxu0 0.0
      %558 = vmatpush2.msra.mxu0 0.0
      %559 = vmatprep.subr.mxu0 0.0
      %560 = vmatpush2.msra.mxu0 0.0
      %561 = vmatprep.subr.mxu0 0.0
      %562 = vmatpush2.msra.mxu0 0.0
      %563 = vmatprep.subr.mxu0 0.0
      %564 = vmatpush2.msra.mxu0 0.0
      %565 = vmatprep.subr.mxu0 0.0
      %566 = vmatpush2.msra.mxu0 0.0
      %567 = vmatprep.subr.mxu0 0.0
      %568 = vmatpush2.msra.mxu0 0.0
      %569 = vmatprep.subr.mxu0 0.0
      %570 = vmatpush2.msra.mxu0 0.0
      %571 = vmatprep.subr.mxu0 0.0
      %572 = vmatpush2.msra.mxu0 0.0
      %573 = vmatprep.subr.mxu0 0.0
      %574 = vmatpush2.msra.mxu0 0.0
      %575 = vmatprep.subr.mxu0 0.0
      %576 = vmatpush2.msra.mxu0 0.0
      %577 = vmatprep.subr.mxu0 0.0
      %578 = vmatpush2.msra.mxu0 0.0
      %579 = vmatprep.subr.mxu0 0.0
      %580 = vmatpush2.msra.mxu0 0.0
      %581 = vmatprep.subr.mxu0 0.0
      %582 = vmatpush2.msra.mxu0 0.0
      %583 = vmatprep.mubr.f32.mxu0 0.0
      %584 = vmatmul.mubr.f32.gmra.mxu0 %v508
      %v585 = vpop.f32.mrf.mxu0
      %v586 = vadd.f32 %v489, %v585
      %v587 = vpop.f32.mrf.mxu0
      %v588 = vadd.f32 %v489, %v587
      %589 = vmatprep.mubr.f32.mxu0 0.0
      %590 = vmatmul.mubr.f32.gmra.mxu0 %v511
      %v591 = vpop.f32.mrf.mxu0
      %v592 = vadd.f32 %v494, %v591
      %v593 = vpop.f32.mrf.mxu0
      %v594 = vadd.f32 %v494, %v593
      %595 = vmatprep.mubr.f32.mxu0 0.0
      %596 = vmatmul.mubr.f32.gmra.mxu0 %v514
      %v597 = vpop.f32.mrf.mxu0
      %v598 = vadd.f32 %v499, %v597
      %v599 = vpop.f32.mrf.mxu0
      %v600 = vadd.f32 %v499, %v599
      %601 = vmatprep.mubr.f32.mxu0 0.0
      %602 = vmatmul.mubr.f32.gmra.mxu0 %v517
      %v603 = vpop.f32.mrf.mxu0
      %v604 = vadd.f32 %v504, %v603
      %v605 = vpop.f32.mrf.mxu0
      %v606 = vadd.f32 %v504, %v605
      %607 = vdwg.mxu0
      %v608 = vadd.f32 %v586, %v588
      %609 = vadd.xlane.f32.xlu0 %v608
      %v610 = vpop.xlane.xlu0 %609
      %v611 = vadd.f32 %v592, %v594
      %612 = vadd.xlane.f32.xlu0 %v611
      %v613 = vpop.xlane.xlu0 %612
      %v614 = vadd.f32 %v598, %v600
      %615 = vadd.xlane.f32.xlu0 %v614
      %v616 = vpop.xlane.xlu0 %615
      %v617 = vadd.f32 %v604, %v606
      %618 = vadd.xlane.f32.xlu0 %v617
      %v619 = vpop.xlane.xlu0 %618
      %v620 = vmul.f32 %v586, %v586
      %v621 = vmul.f32 %v588, %v588
      %v622 = vmul.f32 %v592, %v592
      %v623 = vmul.f32 %v594, %v594
      %v624 = vmul.f32 %v598, %v598
      %v625 = vmul.f32 %v600, %v600
      %v626 = vmul.f32 %v604, %v604
      %v627 = vmul.f32 %v606, %v606
      %v628 = vadd.f32 %v620, %v621
      %629 = vadd.xlane.f32.xlu0 %v628
      %v630 = vpop.xlane.xlu0 %629
      %v631 = vadd.f32 %v622, %v623
      %632 = vadd.xlane.f32.xlu0 %v631
      %v633 = vpop.xlane.xlu0 %632
      %v634 = vadd.f32 %v624, %v625
      %635 = vadd.xlane.f32.xlu0 %v634
      %v636 = vpop.xlane.xlu0 %635
      %v637 = vadd.f32 %v626, %v627
      %638 = vadd.xlane.f32.xlu0 %v637
      %v639 = vpop.xlane.xlu0 %638
      %v640 = vmul.f32 %v610, 0.00390625
      %v641 = vmul.f32 %v613, 0.00390625
      %v642 = vmul.f32 %v616, 0.00390625
      %v643 = vmul.f32 %v619, 0.00390625
      %v644 = vmul.f32 %v630, 0.00390625
      %v645 = vmul.f32 %v633, 0.00390625
      %v646 = vmul.f32 %v636, 0.00390625
      %v647 = vmul.f32 %v639, 0.00390625
      %v648 = vmul.f32 %v640, %v640
      %v649 = vmul.f32 %v641, %v641
      %v650 = vmul.f32 %v642, %v642
      %v651 = vmul.f32 %v643, %v643
      %v652 = vsub.f32 %v644, %v648
      %v653 = vsub.f32 %v645, %v649
      %v654 = vsub.f32 %v646, %v650
      %v655 = vsub.f32 %v647, %v651
      %v656 = vadd.f32 %v652, 1e-06
      %v657 = vadd.f32 %v653, 1e-06
      %v658 = vadd.f32 %v654, 1e-06
      %v659 = vadd.f32 %v655, 1e-06
      %v660 = vrsqrt.pop %v656
      %v661 = vrsqrt.pop %v657
      %v662 = vrsqrt.pop %v658
      %v663 = vrsqrt.pop %v659
      %v664 = vmul.f32 %v660, %v278
      %v665 = vmul.f32 %v661, %v279
      %v666 = vmul.f32 %v662, %v280
      %v667 = vmul.f32 %v663, %v281
      %v668 = vmul.f32 %v640, %v664
      %v669 = vmul.f32 %v641, %v665
      %v670 = vmul.f32 %v642, %v666
      %v671 = vmul.f32 %v643, %v667
      %676 = vrot.lane.b32.xlu0 %v668, 1
      %v677 = vpop.permute.xlu0 %676
      %678 = vrot.lane.b32.xlu0 %v669, 1
      %v679 = vpop.permute.xlu0 %678
      %680 = vrot.lane.b32.xlu0 %v670, 1
      %v681 = vpop.permute.xlu0 %680
      %682 = vrot.lane.b32.xlu0 %v671, 1
      %v683 = vpop.permute.xlu0 %682
      %v688 = vsub.f32 %v278, %v677
      %v689 = vsub.f32 %v279, %v679
      %v690 = vsub.f32 %v280, %v681
      %v691 = vsub.f32 %v281, %v683
      %693 = vset.pattern.permute.xlu0 3
      %694 = vperm.xlu0 %693, %v664
      %v695 = vpop.permute.xlu0 %694
      %698 = vset.pattern.permute.xlu0 3
      %699 = vperm.xlu0 %698, %v665
      %v700 = vpop.permute.xlu0 %699
      %703 = vset.pattern.permute.xlu0 3
      %704 = vperm.xlu0 %703, %v666
      %v705 = vpop.permute.xlu0 %704
      %708 = vset.pattern.permute.xlu0 3
      %709 = vperm.xlu0 %708, %v667
      %v710 = vpop.permute.xlu0 %709
      %v712 = vmul.f32 %v586, %v695
      %v713 = vmul.f32 %v588, %v695
      %v714 = vmul.f32 %v592, %v700
      %v715 = vmul.f32 %v594, %v700
      %v716 = vmul.f32 %v598, %v705
      %v717 = vmul.f32 %v600, %v705
      %v718 = vmul.f32 %v604, %v710
      %v719 = vmul.f32 %v606, %v710
      %721 = vset.pattern.permute.xlu0 4
      %722 = vperm.xlu0 %721, %v688
      %v723 = vpop.permute.xlu0 %722
      %726 = vset.pattern.permute.xlu0 4
      %727 = vperm.xlu0 %726, %v689
      %v728 = vpop.permute.xlu0 %727
      %731 = vset.pattern.permute.xlu0 4
      %732 = vperm.xlu0 %731, %v690
      %v733 = vpop.permute.xlu0 %732
      %736 = vset.pattern.permute.xlu0 4
      %737 = vperm.xlu0 %736, %v691
      %v738 = vpop.permute.xlu0 %737
      %v740 = vadd.f32 %v712, %v723
      %v741 = vadd.f32 %v713, %v723
      %v742 = vadd.f32 %v714, %v728
      %v743 = vadd.f32 %v715, %v728
      %v744 = vadd.f32 %v716, %v733
      %v745 = vadd.f32 %v717, %v733
      %v746 = vadd.f32 %v718, %v738
      %v747 = vadd.f32 %v719, %v738
      %v748 = vxor.u32 %v740, 2147483648
      %v749 = vxor.u32 %v741, 2147483648
      %v750 = vxor.u32 %v742, 2147483648
      %v751 = vxor.u32 %v743, 2147483648
      %v752 = vxor.u32 %v744, 2147483648
      %v753 = vxor.u32 %v745, 2147483648
      %v754 = vxor.u32 %v746, 2147483648
      %v755 = vxor.u32 %v747, 2147483648
      %v756 = vmul.f32 %v748, 1.442695
      %v757 = vpow.pop %v756
      %v758 = vmul.f32 %v749, 1.442695
      %v759 = vpow.pop %v758
      %v760 = vmul.f32 %v750, 1.442695
      %v761 = vpow.pop %v760
      %v762 = vmul.f32 %v751, 1.442695
      %v763 = vpow.pop %v762
      %v764 = vmul.f32 %v752, 1.442695
      %v765 = vpow.pop %v764
      %v766 = vmul.f32 %v753, 1.442695
      %v767 = vpow.pop %v766
      %v768 = vmul.f32 %v754, 1.442695
      %v769 = vpow.pop %v768
      %v770 = vmul.f32 %v755, 1.442695
      %v771 = vpow.pop %v770
      %v772 = vadd.f32 %v757, 1.0
      %v773 = vadd.f32 %v759, 1.0
      %v774 = vadd.f32 %v761, 1.0
      %v775 = vadd.f32 %v763, 1.0
      %v776 = vadd.f32 %v765, 1.0
      %v777 = vadd.f32 %v767, 1.0
      %v778 = vadd.f32 %v769, 1.0
      %v779 = vadd.f32 %v771, 1.0
      %v780 = vrcp.pop %v772
      %v781 = vmul.f32 1.0, %v780
      %v782 = vrcp.pop %v773
      %v783 = vmul.f32 1.0, %v782
      %v784 = vrcp.pop %v774
      %v785 = vmul.f32 1.0, %v784
      %v786 = vrcp.pop %v775
      %v787 = vmul.f32 1.0, %v786
      %v788 = vrcp.pop %v776
      %v789 = vmul.f32 1.0, %v788
      %v790 = vrcp.pop %v777
      %v791 = vmul.f32 1.0, %v790
      %v792 = vrcp.pop %v778
      %v793 = vmul.f32 1.0, %v792
      %v794 = vrcp.pop %v779
      %v795 = vmul.f32 1.0, %v794
      %v796 = vmul.f32 %v740, %v781
      %v797 = vmul.f32 %v741, %v783
      %v798 = vmul.f32 %v742, %v785
      %v799 = vmul.f32 %v743, %v787
      %v800 = vmul.f32 %v744, %v789
      %v801 = vmul.f32 %v745, %v791
      %v802 = vmul.f32 %v746, %v793
      %v803 = vmul.f32 %v747, %v795
      %s804 = scalar_lea.vmem %s2, 32
      %v805 = vld [vmem:[%s804] sm:$0xff]
      %v806 = vld [vmem:[%s804 + $0x8] sm:$0xff]
      %v807 = vld [vmem:[%s804 + $0x10] sm:$0xff]
      %v808 = vld [vmem:[%s804 + $0x18] sm:$0xff]
      %809 = vset.pattern.permute.xlu0 5
      %810 = vperm.xlu0 %809, %v278
      %v811 = vpop.permute.xlu0 %810
      %813 = vset.pattern.permute.xlu0 5
      %814 = vperm.xlu0 %813, %v279
      %v815 = vpop.permute.xlu0 %814
      %817 = vset.pattern.permute.xlu0 5
      %818 = vperm.xlu0 %817, %v280
      %v819 = vpop.permute.xlu0 %818
      %821 = vset.pattern.permute.xlu0 5
      %822 = vperm.xlu0 %821, %v281
      %v823 = vpop.permute.xlu0 %822
      %v826 = vsel %vm506, %v805, 0
      %v829 = vsel %vm506, %v806, 0
      %v832 = vsel %vm506, %v807, 0
      %v835 = vsel %vm506, %v808, 0
      %837 = vmatprep.subr.mxu0 0.0
      %838 = vmatpush1.msra.mxu0 0.0
      %839 = vmatprep.subr.mxu0 0.0
      %840 = vmatpush1.msra.mxu0 0.0
      %841 = vmatprep.subr.mxu0 0.0
      %842 = vmatpush1.msra.mxu0 0.0
      %843 = vmatprep.subr.mxu0 0.0
      %844 = vmatpush1.msra.mxu0 0.0
      %845 = vmatprep.subr.mxu0 0.0
      %846 = vmatpush1.msra.mxu0 0.0
      %847 = vmatprep.subr.mxu0 0.0
      %848 = vmatpush1.msra.mxu0 0.0
      %849 = vmatprep.subr.mxu0 0.0
      %850 = vmatpush1.msra.mxu0 0.0
      %851 = vmatprep.subr.mxu0 0.0
      %852 = vmatpush1.msra.mxu0 0.0
      %853 = vmatprep.subr.mxu0 0.0
      %854 = vmatpush1.msra.mxu0 0.0
      %855 = vmatprep.subr.mxu0 0.0
      %856 = vmatpush1.msra.mxu0 0.0
      %857 = vmatprep.subr.mxu0 0.0
      %858 = vmatpush1.msra.mxu0 0.0
      %859 = vmatprep.subr.mxu0 0.0
      %860 = vmatpush1.msra.mxu0 0.0
      %861 = vmatprep.subr.mxu0 %v803
      %862 = vmatpush1.msra.mxu0 %v802
      %863 = vmatprep.subr.mxu0 %v801
      %864 = vmatpush1.msra.mxu0 %v800
      %865 = vmatprep.subr.mxu0 %v799
      %866 = vmatpush1.msra.mxu0 %v798
      %867 = vmatprep.subr.mxu0 %v797
      %868 = vmatpush1.msra.mxu0 %v796
      %869 = vmatprep.subr.mxu0 0.0
      %870 = vmatpush2.msra.mxu0 0.0
      %871 = vmatprep.subr.mxu0 0.0
      %872 = vmatpush2.msra.mxu0 0.0
      %873 = vmatprep.subr.mxu0 0.0
      %874 = vmatpush2.msra.mxu0 0.0
      %875 = vmatprep.subr.mxu0 0.0
      %876 = vmatpush2.msra.mxu0 0.0
      %877 = vmatprep.subr.mxu0 0.0
      %878 = vmatpush2.msra.mxu0 0.0
      %879 = vmatprep.subr.mxu0 0.0
      %880 = vmatpush2.msra.mxu0 0.0
      %881 = vmatprep.subr.mxu0 0.0
      %882 = vmatpush2.msra.mxu0 0.0
      %883 = vmatprep.subr.mxu0 0.0
      %884 = vmatpush2.msra.mxu0 0.0
      %885 = vmatprep.subr.mxu0 0.0
      %886 = vmatpush2.msra.mxu0 0.0
      %887 = vmatprep.subr.mxu0 0.0
      %888 = vmatpush2.msra.mxu0 0.0
      %889 = vmatprep.subr.mxu0 0.0
      %890 = vmatpush2.msra.mxu0 0.0
      %891 = vmatprep.subr.mxu0 0.0
      %892 = vmatpush2.msra.mxu0 0.0
      %893 = vmatprep.subr.mxu0 0.0
      %894 = vmatpush2.msra.mxu0 0.0
      %895 = vmatprep.subr.mxu0 0.0
      %896 = vmatpush2.msra.mxu0 0.0
      %897 = vmatprep.subr.mxu0 0.0
      %898 = vmatpush2.msra.mxu0 0.0
      %899 = vmatprep.subr.mxu0 0.0
      %900 = vmatpush2.msra.mxu0 0.0
      %901 = vmatprep.mubr.f32.mxu0 0.0
      %902 = vmatmul.mubr.f32.gmra.mxu0 %v826
      %v903 = vpop.f32.mrf.mxu0
      %v904 = vadd.f32 %v811, %v903
      %v905 = vpop.f32.mrf.mxu0
      %v906 = vadd.f32 %v811, %v905
      %907 = vmatprep.mubr.f32.mxu0 0.0
      %908 = vmatmul.mubr.f32.gmra.mxu0 %v829
      %v909 = vpop.f32.mrf.mxu0
      %v910 = vadd.f32 %v815, %v909
      %v911 = vpop.f32.mrf.mxu0
      %v912 = vadd.f32 %v815, %v911
      %913 = vmatprep.mubr.f32.mxu0 0.0
      %914 = vmatmul.mubr.f32.gmra.mxu0 %v832
      %v915 = vpop.f32.mrf.mxu0
      %v916 = vadd.f32 %v819, %v915
      %v917 = vpop.f32.mrf.mxu0
      %v918 = vadd.f32 %v819, %v917
      %919 = vmatprep.mubr.f32.mxu0 0.0
      %920 = vmatmul.mubr.f32.gmra.mxu0 %v835
      %v921 = vpop.f32.mrf.mxu0
      %v922 = vadd.f32 %v823, %v921
      %v923 = vpop.f32.mrf.mxu0
      %v924 = vadd.f32 %v823, %v923
      %925 = vdwg.mxu0
      %v926 = vadd.f32 %v270, %v904
      %v927 = vadd.f32 %v271, %v906
      %v928 = vadd.f32 %v272, %v910
      %v929 = vadd.f32 %v273, %v912
      %v930 = vadd.f32 %v274, %v916
      %v931 = vadd.f32 %v275, %v918
      %v932 = vadd.f32 %v276, %v922
      %v933 = vadd.f32 %v277, %v924
      %v934 = vadd.f32 %v926, %v927
      %935 = vadd.xlane.f32.xlu0 %v934
      %v936 = vpop.xlane.xlu0 %935
      %v937 = vadd.f32 %v928, %v929
      %938 = vadd.xlane.f32.xlu0 %v937
      %v939 = vpop.xlane.xlu0 %938
      %v940 = vadd.f32 %v930, %v931
      %941 = vadd.xlane.f32.xlu0 %v940
      %v942 = vpop.xlane.xlu0 %941
      %v943 = vadd.f32 %v932, %v933
      %944 = vadd.xlane.f32.xlu0 %v943
      %v945 = vpop.xlane.xlu0 %944
      %v946 = vmul.f32 %v926, %v926
      %v947 = vmul.f32 %v927, %v927
      %v948 = vmul.f32 %v928, %v928
      %v949 = vmul.f32 %v929, %v929
      %v950 = vmul.f32 %v930, %v930
      %v951 = vmul.f32 %v931, %v931
      %v952 = vmul.f32 %v932, %v932
      %v953 = vmul.f32 %v933, %v933
      %v954 = vadd.f32 %v946, %v947
      %955 = vadd.xlane.f32.xlu0 %v954
      %v956 = vpop.xlane.xlu0 %955
      %v957 = vadd.f32 %v948, %v949
      %958 = vadd.xlane.f32.xlu0 %v957
      %v959 = vpop.xlane.xlu0 %958
      %v960 = vadd.f32 %v950, %v951
      %961 = vadd.xlane.f32.xlu0 %v960
      %v962 = vpop.xlane.xlu0 %961
      %v963 = vadd.f32 %v952, %v953
      %964 = vadd.xlane.f32.xlu0 %v963
      %v965 = vpop.xlane.xlu0 %964
      %v966 = vmul.f32 %v936, 0.00390625
      %v967 = vmul.f32 %v939, 0.00390625
      %v968 = vmul.f32 %v942, 0.00390625
      %v969 = vmul.f32 %v945, 0.00390625
      %v970 = vmul.f32 %v956, 0.00390625
      %v971 = vmul.f32 %v959, 0.00390625
      %v972 = vmul.f32 %v962, 0.00390625
      %v973 = vmul.f32 %v965, 0.00390625
      %v974 = vmul.f32 %v966, %v966
      %v975 = vmul.f32 %v967, %v967
      %v976 = vmul.f32 %v968, %v968
      %v977 = vmul.f32 %v969, %v969
      %v978 = vsub.f32 %v970, %v974
      %v979 = vsub.f32 %v971, %v975
      %v980 = vsub.f32 %v972, %v976
      %v981 = vsub.f32 %v973, %v977
      %v982 = vadd.f32 %v978, 1e-06
      %v983 = vadd.f32 %v979, 1e-06
      %v984 = vadd.f32 %v980, 1e-06
      %v985 = vadd.f32 %v981, 1e-06
      %v986 = vrsqrt.pop %v982
      %v987 = vrsqrt.pop %v983
      %v988 = vrsqrt.pop %v984
      %v989 = vrsqrt.pop %v985
      %v990 = vmul.f32 %v986, %v278
      %v991 = vmul.f32 %v987, %v279
      %v992 = vmul.f32 %v988, %v280
      %v993 = vmul.f32 %v989, %v281
      %v994 = vmul.f32 %v966, %v990
      %v995 = vmul.f32 %v967, %v991
      %v996 = vmul.f32 %v968, %v992
      %v997 = vmul.f32 %v969, %v993
      %1002 = vrot.lane.b32.xlu0 %v994, 1
      %v1003 = vpop.permute.xlu0 %1002
      %1004 = vrot.lane.b32.xlu0 %v995, 1
      %v1005 = vpop.permute.xlu0 %1004
      %1006 = vrot.lane.b32.xlu0 %v996, 1
      %v1007 = vpop.permute.xlu0 %1006
      %1008 = vrot.lane.b32.xlu0 %v997, 1
      %v1009 = vpop.permute.xlu0 %1008
      %v1014 = vsub.f32 %v278, %v1003
      %v1015 = vsub.f32 %v279, %v1005
      %v1016 = vsub.f32 %v280, %v1007
      %v1017 = vsub.f32 %v281, %v1009
      %1019 = vset.pattern.permute.xlu0 6
      %1020 = vperm.xlu0 %1019, %v990
      %v1021 = vpop.permute.xlu0 %1020
      %1024 = vset.pattern.permute.xlu0 6
      %1025 = vperm.xlu0 %1024, %v991
      %v1026 = vpop.permute.xlu0 %1025
      %1029 = vset.pattern.permute.xlu0 6
      %1030 = vperm.xlu0 %1029, %v992
      %v1031 = vpop.permute.xlu0 %1030
      %1034 = vset.pattern.permute.xlu0 6
      %1035 = vperm.xlu0 %1034, %v993
      %v1036 = vpop.permute.xlu0 %1035
      %v1038 = vmul.f32 %v926, %v1021
      %v1039 = vmul.f32 %v927, %v1021
      %v1040 = vmul.f32 %v928, %v1026
      %v1041 = vmul.f32 %v929, %v1026
      %v1042 = vmul.f32 %v930, %v1031
      %v1043 = vmul.f32 %v931, %v1031
      %v1044 = vmul.f32 %v932, %v1036
      %v1045 = vmul.f32 %v933, %v1036
      %1047 = vset.pattern.permute.xlu0 7
      %1048 = vperm.xlu0 %1047, %v1014
      %v1049 = vpop.permute.xlu0 %1048
      %1052 = vset.pattern.permute.xlu0 7
      %1053 = vperm.xlu0 %1052, %v1015
      %v1054 = vpop.permute.xlu0 %1053
      %1057 = vset.pattern.permute.xlu0 7
      %1058 = vperm.xlu0 %1057, %v1016
      %v1059 = vpop.permute.xlu0 %1058
      %1062 = vset.pattern.permute.xlu0 7
      %1063 = vperm.xlu0 %1062, %v1017
      %v1064 = vpop.permute.xlu0 %1063
      %v1066 = vadd.f32 %v1038, %v1049
      %v1067 = vadd.f32 %v1039, %v1049
      %v1068 = vadd.f32 %v1040, %v1054
      %v1069 = vadd.f32 %v1041, %v1054
      %v1070 = vadd.f32 %v1042, %v1059
      %v1071 = vadd.f32 %v1043, %v1059
      %v1072 = vadd.f32 %v1044, %v1064
      %v1073 = vadd.f32 %v1045, %v1064
      %v1074 = vld [vmem:[%s4] sm:$0xff]
      %v1075 = vld [vmem:[%s4 + $0x8] sm:$0xff]
      %v1076 = vld [vmem:[%s4 + $0x10] sm:$0xff]
      %v1077 = vld [vmem:[%s4 + $0x18] sm:$0xff]
      %v1078 = vld [vmem:[%s4 + $0x20] sm:$0xff]
      %v1079 = vld [vmem:[%s4 + $0x28] sm:$0xff]
      %v1080 = vld [vmem:[%s4 + $0x30] sm:$0xff]
      %v1081 = vld [vmem:[%s4 + $0x38] sm:$0xff]
      %v1082 = vld [vmem:[%s4 + $0x40] sm:$0xff]
      %v1083 = vld [vmem:[%s4 + $0x48] sm:$0xff]
      %v1084 = vld [vmem:[%s4 + $0x50] sm:$0xff]
      %v1085 = vld [vmem:[%s4 + $0x58] sm:$0xff]
      %v1086 = vld [vmem:[%s5] sm:$0xff]
      %v1087 = vld [vmem:[%s5 + $0x8] sm:$0xff]
      %v1088 = vld [vmem:[%s5 + $0x10] sm:$0xff]
      %v1089 = vld [vmem:[%s5 + $0x18] sm:$0xff]
      %v1090 = vld [vmem:[%s5 + $0x20] sm:$0xff]
      %v1091 = vld [vmem:[%s5 + $0x28] sm:$0xff]
      %v1092 = vld [vmem:[%s5 + $0x30] sm:$0xff]
      %v1093 = vld [vmem:[%s5 + $0x38] sm:$0xff]
      %v1094 = vld [vmem:[%s5 + $0x40] sm:$0xff]
      %v1095 = vld [vmem:[%s5 + $0x48] sm:$0xff]
      %v1096 = vld [vmem:[%s5 + $0x50] sm:$0xff]
      %v1097 = vld [vmem:[%s5 + $0x58] sm:$0xff]
      %1099 = vset.pattern.permute.xlu0 0
      %1100 = vperm.xlu0 %1099, %v1086
      %v1101 = vpop.permute.xlu0 %1100
      %1104 = vset.pattern.permute.xlu0 0
      %1105 = vperm.xlu0 %1104, %v1087
      %v1106 = vpop.permute.xlu0 %1105
      %1109 = vset.pattern.permute.xlu0 0
      %1110 = vperm.xlu0 %1109, %v1088
      %v1111 = vpop.permute.xlu0 %1110
      %1114 = vset.pattern.permute.xlu0 0
      %1115 = vperm.xlu0 %1114, %v1089
      %v1116 = vpop.permute.xlu0 %1115
      %1119 = vset.pattern.permute.xlu0 0
      %1120 = vperm.xlu0 %1119, %v1090
      %v1121 = vpop.permute.xlu0 %1120
      %1124 = vset.pattern.permute.xlu0 0
      %1125 = vperm.xlu0 %1124, %v1091
      %v1126 = vpop.permute.xlu0 %1125
      %1129 = vset.pattern.permute.xlu0 0
      %1130 = vperm.xlu0 %1129, %v1092
      %v1131 = vpop.permute.xlu0 %1130
      %1134 = vset.pattern.permute.xlu0 0
      %1135 = vperm.xlu0 %1134, %v1093
      %v1136 = vpop.permute.xlu0 %1135
      %1139 = vset.pattern.permute.xlu0 0
      %1140 = vperm.xlu0 %1139, %v1094
      %v1141 = vpop.permute.xlu0 %1140
      %1144 = vset.pattern.permute.xlu0 0
      %1145 = vperm.xlu0 %1144, %v1095
      %v1146 = vpop.permute.xlu0 %1145
      %1149 = vset.pattern.permute.xlu0 0
      %1150 = vperm.xlu0 %1149, %v1096
      %v1151 = vpop.permute.xlu0 %1150
      %1154 = vset.pattern.permute.xlu0 0
      %1155 = vperm.xlu0 %1154, %v1097
      %v1156 = vpop.permute.xlu0 %1155
      %v1159 = vsel %vm506, %v1074, 0
      %v1162 = vsel %vm506, %v1075, 0
      %v1165 = vsel %vm506, %v1076, 0
      %v1168 = vsel %vm506, %v1077, 0
      %v1171 = vsel %vm506, %v1078, 0
      %v1174 = vsel %vm506, %v1079, 0
      %v1177 = vsel %vm506, %v1080, 0
      %v1180 = vsel %vm506, %v1081, 0
      %v1183 = vsel %vm506, %v1082, 0
      %v1186 = vsel %vm506, %v1083, 0
      %v1189 = vsel %vm506, %v1084, 0
      %v1192 = vsel %vm506, %v1085, 0
      %1194 = vmatprep.subr.mxu0 0.0
      %1195 = vmatpush1.msra.mxu0 0.0
      %1196 = vmatprep.subr.mxu0 0.0
      %1197 = vmatpush1.msra.mxu0 0.0
      %1198 = vmatprep.subr.mxu0 0.0
      %1199 = vmatpush1.msra.mxu0 0.0
      %1200 = vmatprep.subr.mxu0 0.0
      %1201 = vmatpush1.msra.mxu0 0.0
      %1202 = vmatprep.subr.mxu0 0.0
      %1203 = vmatpush1.msra.mxu0 0.0
      %1204 = vmatprep.subr.mxu0 0.0
      %1205 = vmatpush1.msra.mxu0 0.0
      %1206 = vmatprep.subr.mxu0 0.0
      %1207 = vmatpush1.msra.mxu0 0.0
      %1208 = vmatprep.subr.mxu0 0.0
      %1209 = vmatpush1.msra.mxu0 0.0
      %1210 = vmatprep.subr.mxu0 0.0
      %1211 = vmatpush1.msra.mxu0 0.0
      %1212 = vmatprep.subr.mxu0 0.0
      %1213 = vmatpush1.msra.mxu0 0.0
      %1214 = vmatprep.subr.mxu0 0.0
      %1215 = vmatpush1.msra.mxu0 0.0
      %1216 = vmatprep.subr.mxu0 0.0
      %1217 = vmatpush1.msra.mxu0 0.0
      %1218 = vmatprep.subr.mxu0 %v1073
      %1219 = vmatpush1.msra.mxu0 %v1072
      %1220 = vmatprep.subr.mxu0 %v1071
      %1221 = vmatpush1.msra.mxu0 %v1070
      %1222 = vmatprep.subr.mxu0 %v1069
      %1223 = vmatpush1.msra.mxu0 %v1068
      %1224 = vmatprep.subr.mxu0 %v1067
      %1225 = vmatpush1.msra.mxu0 %v1066
      %1226 = vmatprep.subr.mxu0 0.0
      %1227 = vmatpush2.msra.mxu0 0.0
      %1228 = vmatprep.subr.mxu0 0.0
      %1229 = vmatpush2.msra.mxu0 0.0
      %1230 = vmatprep.subr.mxu0 0.0
      %1231 = vmatpush2.msra.mxu0 0.0
      %1232 = vmatprep.subr.mxu0 0.0
      %1233 = vmatpush2.msra.mxu0 0.0
      %1234 = vmatprep.subr.mxu0 0.0
      %1235 = vmatpush2.msra.mxu0 0.0
      %1236 = vmatprep.subr.mxu0 0.0
      %1237 = vmatpush2.msra.mxu0 0.0
      %1238 = vmatprep.subr.mxu0 0.0
      %1239 = vmatpush2.msra.mxu0 0.0
      %1240 = vmatprep.subr.mxu0 0.0
      %1241 = vmatpush2.msra.mxu0 0.0
      %1242 = vmatprep.subr.mxu0 0.0
      %1243 = vmatpush2.msra.mxu0 0.0
      %1244 = vmatprep.subr.mxu0 0.0
      %1245 = vmatpush2.msra.mxu0 0.0
      %1246 = vmatprep.subr.mxu0 0.0
      %1247 = vmatpush2.msra.mxu0 0.0
      %1248 = vmatprep.subr.mxu0 0.0
      %1249 = vmatpush2.msra.mxu0 0.0
      %1250 = vmatprep.subr.mxu0 0.0
      %1251 = vmatpush2.msra.mxu0 0.0
      %1252 = vmatprep.subr.mxu0 0.0
      %1253 = vmatpush2.msra.mxu0 0.0
      %1254 = vmatprep.subr.mxu0 0.0
      %1255 = vmatpush2.msra.mxu0 0.0
      %1256 = vmatprep.subr.mxu0 0.0
      %1257 = vmatpush2.msra.mxu0 0.0
      %1258 = vmatprep.mubr.f32.mxu0 0.0
      %1259 = vmatmul.mubr.f32.gmra.mxu0 %v1159
      %v1260 = vpop.f32.mrf.mxu0
      %v1261 = vadd.f32 %v1101, %v1260
      %v1262 = vpop.f32.mrf.mxu0
      %v1263 = vadd.f32 %v1101, %v1262
      %1264 = vmatprep.mubr.f32.mxu0 0.0
      %1265 = vmatmul.mubr.f32.gmra.mxu0 %v1162
      %v1266 = vpop.f32.mrf.mxu0
      %v1267 = vadd.f32 %v1106, %v1266
      %v1268 = vpop.f32.mrf.mxu0
      %v1269 = vadd.f32 %v1106, %v1268
      %1270 = vmatprep.mubr.f32.mxu0 0.0
      %1271 = vmatmul.mubr.f32.gmra.mxu0 %v1165
      %v1272 = vpop.f32.mrf.mxu0
      %v1273 = vadd.f32 %v1111, %v1272
      %v1274 = vpop.f32.mrf.mxu0
      %v1275 = vadd.f32 %v1111, %v1274
      %1276 = vmatprep.mubr.f32.mxu0 0.0
      %1277 = vmatmul.mubr.f32.gmra.mxu0 %v1168
      %v1278 = vpop.f32.mrf.mxu0
      %v1279 = vadd.f32 %v1116, %v1278
      %v1280 = vpop.f32.mrf.mxu0
      %v1281 = vadd.f32 %v1116, %v1280
      %1282 = vmatprep.mubr.f32.mxu0 0.0
      %1283 = vmatmul.mubr.f32.gmra.mxu0 %v1171
      %v1284 = vpop.f32.mrf.mxu0
      %v1285 = vadd.f32 %v1121, %v1284
      %v1286 = vpop.f32.mrf.mxu0
      %v1287 = vadd.f32 %v1121, %v1286
      %1288 = vmatprep.mubr.f32.mxu0 0.0
      %1289 = vmatmul.mubr.f32.gmra.mxu0 %v1174
      %v1290 = vpop.f32.mrf.mxu0
      %v1291 = vadd.f32 %v1126, %v1290
      %v1292 = vpop.f32.mrf.mxu0
      %v1293 = vadd.f32 %v1126, %v1292
      %1294 = vmatprep.mubr.f32.mxu0 0.0
      %1295 = vmatmul.mubr.f32.gmra.mxu0 %v1177
      %v1296 = vpop.f32.mrf.mxu0
      %v1297 = vadd.f32 %v1131, %v1296
      %v1298 = vpop.f32.mrf.mxu0
      %v1299 = vadd.f32 %v1131, %v1298
      %1300 = vmatprep.mubr.f32.mxu0 0.0
      %1301 = vmatmul.mubr.f32.gmra.mxu0 %v1180
      %v1302 = vpop.f32.mrf.mxu0
      %v1303 = vadd.f32 %v1136, %v1302
      %v1304 = vpop.f32.mrf.mxu0
      %v1305 = vadd.f32 %v1136, %v1304
      %1306 = vmatprep.mubr.f32.mxu0 0.0
      %1307 = vmatmul.mubr.f32.gmra.mxu0 %v1183
      %v1308 = vpop.f32.mrf.mxu0
      %v1309 = vadd.f32 %v1141, %v1308
      %v1310 = vpop.f32.mrf.mxu0
      %v1311 = vadd.f32 %v1141, %v1310
      %1312 = vmatprep.mubr.f32.mxu0 0.0
      %1313 = vmatmul.mubr.f32.gmra.mxu0 %v1186
      %v1314 = vpop.f32.mrf.mxu0
      %v1315 = vadd.f32 %v1146, %v1314
      %v1316 = vpop.f32.mrf.mxu0
      %v1317 = vadd.f32 %v1146, %v1316
      %1318 = vmatprep.mubr.f32.mxu0 0.0
      %1319 = vmatmul.mubr.f32.gmra.mxu0 %v1189
      %v1320 = vpop.f32.mrf.mxu0
      %v1321 = vadd.f32 %v1151, %v1320
      %v1322 = vpop.f32.mrf.mxu0
      %v1323 = vadd.f32 %v1151, %v1322
      %1324 = vmatprep.mubr.f32.mxu0 0.0
      %1325 = vmatmul.mubr.f32.gmra.mxu0 %v1192
      %v1326 = vpop.f32.mrf.mxu0
      %v1327 = vadd.f32 %v1156, %v1326
      %v1328 = vpop.f32.mrf.mxu0
      %v1329 = vadd.f32 %v1156, %v1328
      %1330 = vdwg.mxu0
      %v1331 = vpack.c.bf16 %v1291, %v1285
      %v1332 = vpack.c.bf16 %v1293, %v1287
      %v1333 = vpack.c.bf16 %v1303, %v1297
      %v1334 = vpack.c.bf16 %v1305, %v1299
      %v1335 = vpack.c.bf16 %v1267, %v1261
      %v1336 = vpack.c.bf16 %v1269, %v1263
      %v1337 = vpack.c.bf16 %v1279, %v1273
      %v1338 = vpack.c.bf16 %v1281, %v1275
      %1339 = vxpose.xlu0.c.b16.start [1/8] %v1331, 128
      %1340 = vxpose.xlu0.c.b16.cont [2/8] %v1333, 128
      %1341 = vxpose.xlu0.c.b16.cont [3/8] 0, 128
      %1342 = vxpose.xlu0.c.b16.cont [4/8] 0, 128
      %1343 = vxpose.xlu0.c.b16.cont [5/8] 0, 128
      %1344 = vxpose.xlu0.c.b16.cont [6/8] 0, 128
      %1345 = vxpose.xlu0.c.b16.cont [7/8] 0, 128
      %1346 = vxpose.xlu0.c.b16.end [8/8] 0, 128
      %v1347 = vpop.trf.xlu0
      %v1348 = vpop.trf.xlu0
      %v1349 = vpop.trf.xlu0
      %v1350 = vpop.trf.xlu0
      %v1351 = vpop.trf.xlu0
      %v1352 = vpop.trf.xlu0
      %v1353 = vpop.trf.xlu0
      %v1354 = vpop.trf.xlu0
      %1355 = vxpose.xlu0.c.b16.start [1/8] %v1332, 128
      %1356 = vxpose.xlu0.c.b16.cont [2/8] %v1334, 128
      %1357 = vxpose.xlu0.c.b16.cont [3/8] 0, 128
      %1358 = vxpose.xlu0.c.b16.cont [4/8] 0, 128
      %1359 = vxpose.xlu0.c.b16.cont [5/8] 0, 128
      %1360 = vxpose.xlu0.c.b16.cont [6/8] 0, 128
      %1361 = vxpose.xlu0.c.b16.cont [7/8] 0, 128
      %1362 = vxpose.xlu0.c.b16.end [8/8] 0, 128
      %v1363 = vpop.trf.xlu0
      %v1364 = vpop.trf.xlu0
      %v1365 = vpop.trf.xlu0
      %v1366 = vpop.trf.xlu0
      %v1367 = vpop.trf.xlu0
      %v1368 = vpop.trf.xlu0
      %v1369 = vpop.trf.xlu0
      %v1370 = vpop.trf.xlu0
      %v1372 = vsel %vm506, %v1347, 0
      %v1375 = vsel %vm506, %v1348, 0
      %v1378 = vsel %vm506, %v1349, 0
      %v1381 = vsel %vm506, %v1350, 0
      %v1384 = vsel %vm506, %v1351, 0
      %v1387 = vsel %vm506, %v1352, 0
      %v1390 = vsel %vm506, %v1353, 0
      %v1393 = vsel %vm506, %v1354, 0
      %v1396 = vsel %vm506, %v1363, 0
      %v1399 = vsel %vm506, %v1364, 0
      %v1402 = vsel %vm506, %v1365, 0
      %v1405 = vsel %vm506, %v1366, 0
      %v1408 = vsel %vm506, %v1367, 0
      %v1411 = vsel %vm506, %v1368, 0
      %v1414 = vsel %vm506, %v1369, 0
      %v1417 = vsel %vm506, %v1370, 0
      %1419 = vmatprep.subr.bf16.mxu0 0
      %1420 = vmatpush1.bf16.msra.mxu0 0
      %1421 = vmatprep.subr.bf16.mxu0 0
      %1422 = vmatpush1.bf16.msra.mxu0 0
      %1423 = vmatprep.subr.bf16.mxu0 0
      %1424 = vmatpush1.bf16.msra.mxu0 0
      %1425 = vmatprep.subr.bf16.mxu0 0
      %1426 = vmatpush1.bf16.msra.mxu0 0
      %1427 = vmatprep.subr.bf16.mxu0 0
      %1428 = vmatpush1.bf16.msra.mxu0 0
      %1429 = vmatprep.subr.bf16.mxu0 0
      %1430 = vmatpush1.bf16.msra.mxu0 0
      %1431 = vmatprep.subr.bf16.mxu0 %v1338
      %1432 = vmatpush1.bf16.msra.mxu0 %v1337
      %1433 = vmatprep.subr.bf16.mxu0 %v1336
      %1434 = vmatpush1.bf16.msra.mxu0 %v1335
      %1435 = vmatprep.subr.bf16.mxu0 0
      %1436 = vmatpush2.bf16.msra.mxu0 0
      %1437 = vmatprep.subr.bf16.mxu0 0
      %1438 = vmatpush2.bf16.msra.mxu0 0
      %1439 = vmatprep.subr.bf16.mxu0 0
      %1440 = vmatpush2.bf16.msra.mxu0 0
      %1441 = vmatprep.subr.bf16.mxu0 0
      %1442 = vmatpush2.bf16.msra.mxu0 0
      %1443 = vmatprep.subr.bf16.mxu0 0
      %1444 = vmatpush2.bf16.msra.mxu0 0
      %1445 = vmatprep.subr.bf16.mxu0 0
      %1446 = vmatpush2.bf16.msra.mxu0 0
      %1447 = vmatprep.subr.bf16.mxu0 0
      %1448 = vmatpush2.bf16.msra.mxu0 0
      %1449 = vmatprep.subr.bf16.mxu0 0
      %1450 = vmatpush2.bf16.msra.mxu0 0
      %1451 = vmatprep.mubr.bf16.mxu0 0
      %1452 = vmatmul.mubr.bf16.gmra.mxu0 %v1372
      %v1453 = vpop.f32.mrf.mxu0
      %v1454 = vadd.f32 0.0, %v1453
      %v1455 = vpop.f32.mrf.mxu0
      %v1456 = vadd.f32 0.0, %v1455
      %v1457 = vpop.f32.mrf.mxu0
      %v1458 = vadd.f32 0.0, %v1457
      %v1459 = vpop.f32.mrf.mxu0
      %v1460 = vadd.f32 0.0, %v1459
      %1461 = vmatprep.mubr.bf16.mxu0 0
      %1462 = vmatmul.mubr.bf16.gmra.mxu0 %v1375
      %v1463 = vpop.f32.mrf.mxu0
      %v1464 = vadd.f32 0.0, %v1463
      %v1465 = vpop.f32.mrf.mxu0
      %v1466 = vadd.f32 0.0, %v1465
      %v1467 = vpop.f32.mrf.mxu0
      %v1468 = vadd.f32 0.0, %v1467
      %v1469 = vpop.f32.mrf.mxu0
      %v1470 = vadd.f32 0.0, %v1469
      %1471 = vmatprep.mubr.bf16.mxu0 0
      %1472 = vmatmul.mubr.bf16.gmra.mxu0 %v1378
      %v1473 = vpop.f32.mrf.mxu0
      %v1474 = vadd.f32 0.0, %v1473
      %v1475 = vpop.f32.mrf.mxu0
      %v1476 = vadd.f32 0.0, %v1475
      %v1477 = vpop.f32.mrf.mxu0
      %v1478 = vadd.f32 0.0, %v1477
      %v1479 = vpop.f32.mrf.mxu0
      %v1480 = vadd.f32 0.0, %v1479
      %1481 = vmatprep.mubr.bf16.mxu0 0
      %1482 = vmatmul.mubr.bf16.gmra.mxu0 %v1381
      %v1483 = vpop.f32.mrf.mxu0
      %v1484 = vadd.f32 0.0, %v1483
      %v1485 = vpop.f32.mrf.mxu0
      %v1486 = vadd.f32 0.0, %v1485
      %v1487 = vpop.f32.mrf.mxu0
      %v1488 = vadd.f32 0.0, %v1487
      %v1489 = vpop.f32.mrf.mxu0
      %v1490 = vadd.f32 0.0, %v1489
      %1491 = vmatprep.mubr.bf16.mxu0 0
      %1492 = vmatmul.mubr.bf16.gmra.mxu0 %v1384
      %v1493 = vpop.f32.mrf.mxu0
      %v1494 = vadd.f32 0.0, %v1493
      %v1495 = vpop.f32.mrf.mxu0
      %v1496 = vadd.f32 0.0, %v1495
      %v1497 = vpop.f32.mrf.mxu0
      %v1498 = vadd.f32 0.0, %v1497
      %v1499 = vpop.f32.mrf.mxu0
      %v1500 = vadd.f32 0.0, %v1499
      %1501 = vmatprep.mubr.bf16.mxu0 0
      %1502 = vmatmul.mubr.bf16.gmra.mxu0 %v1387
      %v1503 = vpop.f32.mrf.mxu0
      %v1504 = vadd.f32 0.0, %v1503
      %v1505 = vpop.f32.mrf.mxu0
      %v1506 = vadd.f32 0.0, %v1505
      %v1507 = vpop.f32.mrf.mxu0
      %v1508 = vadd.f32 0.0, %v1507
      %v1509 = vpop.f32.mrf.mxu0
      %v1510 = vadd.f32 0.0, %v1509
      %1511 = vmatprep.mubr.bf16.mxu0 0
      %1512 = vmatmul.mubr.bf16.gmra.mxu0 %v1390
      %v1513 = vpop.f32.mrf.mxu0
      %v1514 = vadd.f32 0.0, %v1513
      %v1515 = vpop.f32.mrf.mxu0
      %v1516 = vadd.f32 0.0, %v1515
      %v1517 = vpop.f32.mrf.mxu0
      %v1518 = vadd.f32 0.0, %v1517
      %v1519 = vpop.f32.mrf.mxu0
      %v1520 = vadd.f32 0.0, %v1519
      %1521 = vmatprep.mubr.bf16.mxu0 0
      %1522 = vmatmul.mubr.bf16.gmra.mxu0 %v1393
      %v1523 = vpop.f32.mrf.mxu0
      %v1524 = vadd.f32 0.0, %v1523
      %v1525 = vpop.f32.mrf.mxu0
      %v1526 = vadd.f32 0.0, %v1525
      %v1527 = vpop.f32.mrf.mxu0
      %v1528 = vadd.f32 0.0, %v1527
      %v1529 = vpop.f32.mrf.mxu0
      %v1530 = vadd.f32 0.0, %v1529
      %1531 = vmatprep.mubr.bf16.mxu0 0
      %1532 = vmatmul.mubr.bf16.gmra.mxu0 %v1396
      %v1533 = vpop.f32.mrf.mxu0
      %v1534 = vadd.f32 0.0, %v1533
      %v1535 = vpop.f32.mrf.mxu0
      %v1536 = vadd.f32 0.0, %v1535
      %v1537 = vpop.f32.mrf.mxu0
      %v1538 = vadd.f32 0.0, %v1537
      %v1539 = vpop.f32.mrf.mxu0
      %v1540 = vadd.f32 0.0, %v1539
      %1541 = vmatprep.mubr.bf16.mxu0 0
      %1542 = vmatmul.mubr.bf16.gmra.mxu0 %v1399
      %v1543 = vpop.f32.mrf.mxu0
      %v1544 = vadd.f32 0.0, %v1543
      %v1545 = vpop.f32.mrf.mxu0
      %v1546 = vadd.f32 0.0, %v1545
      %v1547 = vpop.f32.mrf.mxu0
      %v1548 = vadd.f32 0.0, %v1547
      %v1549 = vpop.f32.mrf.mxu0
      %v1550 = vadd.f32 0.0, %v1549
      %1551 = vmatprep.mubr.bf16.mxu0 0
      %1552 = vmatmul.mubr.bf16.gmra.mxu0 %v1402
      %v1553 = vpop.f32.mrf.mxu0
      %v1554 = vadd.f32 0.0, %v1553
      %v1555 = vpop.f32.mrf.mxu0
      %v1556 = vadd.f32 0.0, %v1555
      %v1557 = vpop.f32.mrf.mxu0
      %v1558 = vadd.f32 0.0, %v1557
      %v1559 = vpop.f32.mrf.mxu0
      %v1560 = vadd.f32 0.0, %v1559
      %1561 = vmatprep.mubr.bf16.mxu0 0
      %1562 = vmatmul.mubr.bf16.gmra.mxu0 %v1405
      %v1563 = vpop.f32.mrf.mxu0
      %v1564 = vadd.f32 0.0, %v1563
      %v1565 = vpop.f32.mrf.mxu0
      %v1566 = vadd.f32 0.0, %v1565
      %v1567 = vpop.f32.mrf.mxu0
      %v1568 = vadd.f32 0.0, %v1567
      %v1569 = vpop.f32.mrf.mxu0
      %v1570 = vadd.f32 0.0, %v1569
      %1571 = vmatprep.mubr.bf16.mxu0 0
      %1572 = vmatmul.mubr.bf16.gmra.mxu0 %v1408
      %v1573 = vpop.f32.mrf.mxu0
      %v1574 = vadd.f32 0.0, %v1573
      %v1575 = vpop.f32.mrf.mxu0
      %v1576 = vadd.f32 0.0, %v1575
      %v1577 = vpop.f32.mrf.mxu0
      %v1578 = vadd.f32 0.0, %v1577
      %v1579 = vpop.f32.mrf.mxu0
      %v1580 = vadd.f32 0.0, %v1579
      %1581 = vmatprep.mubr.bf16.mxu0 0
      %1582 = vmatmul.mubr.bf16.gmra.mxu0 %v1411
      %v1583 = vpop.f32.mrf.mxu0
      %v1584 = vadd.f32 0.0, %v1583
      %v1585 = vpop.f32.mrf.mxu0
      %v1586 = vadd.f32 0.0, %v1585
      %v1587 = vpop.f32.mrf.mxu0
      %v1588 = vadd.f32 0.0, %v1587
      %v1589 = vpop.f32.mrf.mxu0
      %v1590 = vadd.f32 0.0, %v1589
      %1591 = vmatprep.mubr.bf16.mxu0 0
      %1592 = vmatmul.mubr.bf16.gmra.mxu0 %v1414
      %v1593 = vpop.f32.mrf.mxu0
      %v1594 = vadd.f32 0.0, %v1593
      %v1595 = vpop.f32.mrf.mxu0
      %v1596 = vadd.f32 0.0, %v1595
      %v1597 = vpop.f32.mrf.mxu0
      %v1598 = vadd.f32 0.0, %v1597
      %v1599 = vpop.f32.mrf.mxu0
      %v1600 = vadd.f32 0.0, %v1599
      %1601 = vmatprep.mubr.bf16.mxu0 0
      %1602 = vmatmul.mubr.bf16.gmra.mxu0 %v1417
      %v1603 = vpop.f32.mrf.mxu0
      %v1604 = vadd.f32 0.0, %v1603
      %v1605 = vpop.f32.mrf.mxu0
      %v1606 = vadd.f32 0.0, %v1605
      %v1607 = vpop.f32.mrf.mxu0
      %v1608 = vadd.f32 0.0, %v1607
      %v1609 = vpop.f32.mrf.mxu0
      %v1610 = vadd.f32 0.0, %v1609
      %1611 = vdwg.mxu0
      %v1612 = vmax.f32 %v1454, %v1464
      %v1613 = vmax.f32 %v1458, %v1468
      %v1614 = vmax.f32 %v1612, %v1474
      %v1615 = vmax.f32 %v1613, %v1478
      %v1616 = vmax.f32 %v1614, %v1484
      %v1617 = vmax.f32 %v1615, %v1488
      %v1618 = vmax.f32 %v1616, %v1494
      %v1619 = vmax.f32 %v1617, %v1498
      %v1620 = vmax.f32 %v1618, %v1504
      %v1621 = vmax.f32 %v1619, %v1508
      %v1622 = vmax.f32 %v1620, %v1514
      %v1623 = vmax.f32 %v1621, %v1518
      %v1624 = vmax.f32 %v1622, %v1524
      %v1625 = vmax.f32 %v1623, %v1528
      %v1626 = vmax.f32 %v1624, %v1534
      %v1627 = vmax.f32 %v1625, %v1538
      %v1628 = vmax.f32 %v1626, %v1544
      %v1629 = vmax.f32 %v1627, %v1548
      %v1630 = vmax.f32 %v1628, %v1554
      %v1631 = vmax.f32 %v1629, %v1558
      %v1632 = vmax.f32 %v1630, %v1564
      %v1633 = vmax.f32 %v1631, %v1568
      %v1634 = vmax.f32 %v1632, %v1574
      %v1635 = vmax.f32 %v1633, %v1578
      %v1636 = vmax.f32 %v1634, %v1584
      %v1637 = vmax.f32 %v1635, %v1588
      %v1638 = vmax.f32 %v1636, %v1594
      %v1639 = vmax.f32 %v1637, %v1598
      %v1640 = vmax.f32 %v1638, %v1604
      %v1641 = vmax.f32 %v1639, %v1608
      %v1642 = vmax.f32 %v1640, %v1641
      %v1643 = vrot.slane %v1642, 4
      %v1644 = vmax.f32 %v1642, %v1643
      %v1645 = vrot.slane %v1644, 2
      %v1646 = vmax.f32 %v1644, %v1645
      %v1647 = vrot.slane %v1646, 1
      %v1648 = vmax.f32 %v1646, %v1647
      %v1649 = vmax.f32 %v1456, %v1466
      %v1650 = vmax.f32 %v1460, %v1470
      %v1651 = vmax.f32 %v1649, %v1476
      %v1652 = vmax.f32 %v1650, %v1480
      %v1653 = vmax.f32 %v1651, %v1486
      %v1654 = vmax.f32 %v1652, %v1490
      %v1655 = vmax.f32 %v1653, %v1496
      %v1656 = vmax.f32 %v1654, %v1500
      %v1657 = vmax.f32 %v1655, %v1506
      %v1658 = vmax.f32 %v1656, %v1510
      %v1659 = vmax.f32 %v1657, %v1516
      %v1660 = vmax.f32 %v1658, %v1520
      %v1661 = vmax.f32 %v1659, %v1526
      %v1662 = vmax.f32 %v1660, %v1530
      %v1663 = vmax.f32 %v1661, %v1536
      %v1664 = vmax.f32 %v1662, %v1540
      %v1665 = vmax.f32 %v1663, %v1546
      %v1666 = vmax.f32 %v1664, %v1550
      %v1667 = vmax.f32 %v1665, %v1556
      %v1668 = vmax.f32 %v1666, %v1560
      %v1669 = vmax.f32 %v1667, %v1566
      %v1670 = vmax.f32 %v1668, %v1570
      %v1671 = vmax.f32 %v1669, %v1576
      %v1672 = vmax.f32 %v1670, %v1580
      %v1673 = vmax.f32 %v1671, %v1586
      %v1674 = vmax.f32 %v1672, %v1590
      %v1675 = vmax.f32 %v1673, %v1596
      %v1676 = vmax.f32 %v1674, %v1600
      %v1677 = vmax.f32 %v1675, %v1606
      %v1678 = vmax.f32 %v1676, %v1610
      %v1679 = vmax.f32 %v1677, %v1678
      %v1680 = vrot.slane %v1679, 4
      %v1681 = vmax.f32 %v1679, %v1680
      %v1682 = vrot.slane %v1681, 2
      %v1683 = vmax.f32 %v1681, %v1682
      %v1684 = vrot.slane %v1683, 1
      %v1685 = vmax.f32 %v1683, %v1684
      %v1686 = vsub.f32 %v1454, %v1648
      %v1687 = vsub.f32 %v1456, %v1685
      %v1688 = vsub.f32 %v1458, %v1648
      %v1689 = vsub.f32 %v1460, %v1685
      %v1690 = vsub.f32 %v1464, %v1648
      %v1691 = vsub.f32 %v1466, %v1685
      %v1692 = vsub.f32 %v1468, %v1648
      %v1693 = vsub.f32 %v1470, %v1685
      %v1694 = vsub.f32 %v1474, %v1648
      %v1695 = vsub.f32 %v1476, %v1685
      %v1696 = vsub.f32 %v1478, %v1648
      %v1697 = vsub.f32 %v1480, %v1685
      %v1698 = vsub.f32 %v1484, %v1648
      %v1699 = vsub.f32 %v1486, %v1685
      %v1700 = vsub.f32 %v1488, %v1648
      %v1701 = vsub.f32 %v1490, %v1685
      %v1702 = vsub.f32 %v1494, %v1648
      %v1703 = vsub.f32 %v1496, %v1685
      %v1704 = vsub.f32 %v1498, %v1648
      %v1705 = vsub.f32 %v1500, %v1685
      %v1706 = vsub.f32 %v1504, %v1648
      %v1707 = vsub.f32 %v1506, %v1685
      %v1708 = vsub.f32 %v1508, %v1648
      %v1709 = vsub.f32 %v1510, %v1685
      %v1710 = vsub.f32 %v1514, %v1648
      %v1711 = vsub.f32 %v1516, %v1685
      %v1712 = vsub.f32 %v1518, %v1648
      %v1713 = vsub.f32 %v1520, %v1685
      %v1714 = vsub.f32 %v1524, %v1648
      %v1715 = vsub.f32 %v1526, %v1685
      %v1716 = vsub.f32 %v1528, %v1648
      %v1717 = vsub.f32 %v1530, %v1685
      %v1718 = vsub.f32 %v1534, %v1648
      %v1719 = vsub.f32 %v1536, %v1685
      %v1720 = vsub.f32 %v1538, %v1648
      %v1721 = vsub.f32 %v1540, %v1685
      %v1722 = vsub.f32 %v1544, %v1648
      %v1723 = vsub.f32 %v1546, %v1685
      %v1724 = vsub.f32 %v1548, %v1648
      %v1725 = vsub.f32 %v1550, %v1685
      %v1726 = vsub.f32 %v1554, %v1648
      %v1727 = vsub.f32 %v1556, %v1685
      %v1728 = vsub.f32 %v1558, %v1648
      %v1729 = vsub.f32 %v1560, %v1685
      %v1730 = vsub.f32 %v1564, %v1648
      %v1731 = vsub.f32 %v1566, %v1685
      %v1732 = vsub.f32 %v1568, %v1648
      %v1733 = vsub.f32 %v1570, %v1685
      %v1734 = vsub.f32 %v1574, %v1648
      %v1735 = vsub.f32 %v1576, %v1685
      %v1736 = vsub.f32 %v1578, %v1648
      %v1737 = vsub.f32 %v1580, %v1685
      %v1738 = vsub.f32 %v1584, %v1648
      %v1739 = vsub.f32 %v1586, %v1685
      %v1740 = vsub.f32 %v1588, %v1648
      %v1741 = vsub.f32 %v1590, %v1685
      %v1742 = vsub.f32 %v1594, %v1648
      %v1743 = vsub.f32 %v1596, %v1685
      %v1744 = vsub.f32 %v1598, %v1648
      %v1745 = vsub.f32 %v1600, %v1685
      %v1746 = vsub.f32 %v1604, %v1648
      %v1747 = vsub.f32 %v1606, %v1685
      %v1748 = vsub.f32 %v1608, %v1648
      %v1749 = vsub.f32 %v1610, %v1685
      %v1750 = vmul.f32 %v1686, 1.442695
      %v1751 = vpow.pop %v1750
      %v1752 = vmul.f32 %v1687, 1.442695
      %v1753 = vpow.pop %v1752
      %v1754 = vmul.f32 %v1688, 1.442695
      %v1755 = vpow.pop %v1754
      %v1756 = vmul.f32 %v1689, 1.442695
      %v1757 = vpow.pop %v1756
      %v1758 = vmul.f32 %v1690, 1.442695
      %v1759 = vpow.pop %v1758
      %v1760 = vmul.f32 %v1691, 1.442695
      %v1761 = vpow.pop %v1760
      %v1762 = vmul.f32 %v1692, 1.442695
      %v1763 = vpow.pop %v1762
      %v1764 = vmul.f32 %v1693, 1.442695
      %v1765 = vpow.pop %v1764
      %v1766 = vmul.f32 %v1694, 1.442695
      %v1767 = vpow.pop %v1766
      %v1768 = vmul.f32 %v1695, 1.442695
      %v1769 = vpow.pop %v1768
      %v1770 = vmul.f32 %v1696, 1.442695
      %v1771 = vpow.pop %v1770
      %v1772 = vmul.f32 %v1697, 1.442695
      %v1773 = vpow.pop %v1772
      %v1774 = vmul.f32 %v1698, 1.442695
      %v1775 = vpow.pop %v1774
      %v1776 = vmul.f32 %v1699, 1.442695
      %v1777 = vpow.pop %v1776
      %v1778 = vmul.f32 %v1700, 1.442695
      %v1779 = vpow.pop %v1778
      %v1780 = vmul.f32 %v1701, 1.442695
      %v1781 = vpow.pop %v1780
      %v1782 = vmul.f32 %v1702, 1.442695
      %v1783 = vpow.pop %v1782
      %v1784 = vmul.f32 %v1703, 1.442695
      %v1785 = vpow.pop %v1784
      %v1786 = vmul.f32 %v1704, 1.442695
      %v1787 = vpow.pop %v1786
      %v1788 = vmul.f32 %v1705, 1.442695
      %v1789 = vpow.pop %v1788
      %v1790 = vmul.f32 %v1706, 1.442695
      %v1791 = vpow.pop %v1790
      %v1792 = vmul.f32 %v1707, 1.442695
      %v1793 = vpow.pop %v1792
      %v1794 = vmul.f32 %v1708, 1.442695
      %v1795 = vpow.pop %v1794
      %v1796 = vmul.f32 %v1709, 1.442695
      %v1797 = vpow.pop %v1796
      %v1798 = vmul.f32 %v1710, 1.442695
      %v1799 = vpow.pop %v1798
      %v1800 = vmul.f32 %v1711, 1.442695
      %v1801 = vpow.pop %v1800
      %v1802 = vmul.f32 %v1712, 1.442695
      %v1803 = vpow.pop %v1802
      %v1804 = vmul.f32 %v1713, 1.442695
      %v1805 = vpow.pop %v1804
      %v1806 = vmul.f32 %v1714, 1.442695
      %v1807 = vpow.pop %v1806
      %v1808 = vmul.f32 %v1715, 1.442695
      %v1809 = vpow.pop %v1808
      %v1810 = vmul.f32 %v1716, 1.442695
      %v1811 = vpow.pop %v1810
      %v1812 = vmul.f32 %v1717, 1.442695
      %v1813 = vpow.pop %v1812
      %v1814 = vmul.f32 %v1718, 1.442695
      %v1815 = vpow.pop %v1814
      %v1816 = vmul.f32 %v1719, 1.442695
      %v1817 = vpow.pop %v1816
      %v1818 = vmul.f32 %v1720, 1.442695
      %v1819 = vpow.pop %v1818
      %v1820 = vmul.f32 %v1721, 1.442695
      %v1821 = vpow.pop %v1820
      %v1822 = vmul.f32 %v1722, 1.442695
      %v1823 = vpow.pop %v1822
      %v1824 = vmul.f32 %v1723, 1.442695
      %v1825 = vpow.pop %v1824
      %v1826 = vmul.f32 %v1724, 1.442695
      %v1827 = vpow.pop %v1826
      %v1828 = vmul.f32 %v1725, 1.442695
      %v1829 = vpow.pop %v1828
      %v1830 = vmul.f32 %v1726, 1.442695
      %v1831 = vpow.pop %v1830
      %v1832 = vmul.f32 %v1727, 1.442695
      %v1833 = vpow.pop %v1832
      %v1834 = vmul.f32 %v1728, 1.442695
      %v1835 = vpow.pop %v1834
      %v1836 = vmul.f32 %v1729, 1.442695
      %v1837 = vpow.pop %v1836
      %v1838 = vmul.f32 %v1730, 1.442695
      %v1839 = vpow.pop %v1838
      %v1840 = vmul.f32 %v1731, 1.442695
      %v1841 = vpow.pop %v1840
      %v1842 = vmul.f32 %v1732, 1.442695
      %v1843 = vpow.pop %v1842
      %v1844 = vmul.f32 %v1733, 1.442695
      %v1845 = vpow.pop %v1844
      %v1846 = vmul.f32 %v1734, 1.442695
      %v1847 = vpow.pop %v1846
      %v1848 = vmul.f32 %v1735, 1.442695
      %v1849 = vpow.pop %v1848
      %v1850 = vmul.f32 %v1736, 1.442695
      %v1851 = vpow.pop %v1850
      %v1852 = vmul.f32 %v1737, 1.442695
      %v1853 = vpow.pop %v1852
      %v1854 = vmul.f32 %v1738, 1.442695
      %v1855 = vpow.pop %v1854
      %v1856 = vmul.f32 %v1739, 1.442695
      %v1857 = vpow.pop %v1856
      %v1858 = vmul.f32 %v1740, 1.442695
      %v1859 = vpow.pop %v1858
      %v1860 = vmul.f32 %v1741, 1.442695
      %v1861 = vpow.pop %v1860
      %v1862 = vmul.f32 %v1742, 1.442695
      %v1863 = vpow.pop %v1862
      %v1864 = vmul.f32 %v1743, 1.442695
      %v1865 = vpow.pop %v1864
      %v1866 = vmul.f32 %v1744, 1.442695
      %v1867 = vpow.pop %v1866
      %v1868 = vmul.f32 %v1745, 1.442695
      %v1869 = vpow.pop %v1868
      %v1870 = vmul.f32 %v1746, 1.442695
      %v1871 = vpow.pop %v1870
      %v1872 = vmul.f32 %v1747, 1.442695
      %v1873 = vpow.pop %v1872
      %v1874 = vmul.f32 %v1748, 1.442695
      %v1875 = vpow.pop %v1874
      %v1876 = vmul.f32 %v1749, 1.442695
      %v1877 = vpow.pop %v1876
      %v1878 = vadd.f32 %v1751, %v1755
      %v1879 = vadd.f32 %v1878, %v1759
      %v1880 = vadd.f32 %v1879, %v1763
      %v1881 = vadd.f32 %v1880, %v1767
      %v1882 = vadd.f32 %v1881, %v1771
      %v1883 = vadd.f32 %v1882, %v1775
      %v1884 = vadd.f32 %v1883, %v1779
      %v1885 = vadd.f32 %v1884, %v1783
      %v1886 = vadd.f32 %v1885, %v1787
      %v1887 = vadd.f32 %v1886, %v1791
      %v1888 = vadd.f32 %v1887, %v1795
      %v1889 = vadd.f32 %v1888, %v1799
      %v1890 = vadd.f32 %v1889, %v1803
      %v1891 = vadd.f32 %v1890, %v1807
      %v1892 = vadd.f32 %v1891, %v1811
      %v1893 = vadd.f32 %v1892, %v1815
      %v1894 = vadd.f32 %v1893, %v1819
      %v1895 = vadd.f32 %v1894, %v1823
      %v1896 = vadd.f32 %v1895, %v1827
      %v1897 = vadd.f32 %v1896, %v1831
      %v1898 = vadd.f32 %v1897, %v1835
      %v1899 = vadd.f32 %v1898, %v1839
      %v1900 = vadd.f32 %v1899, %v1843
      %v1901 = vadd.f32 %v1900, %v1847
      %v1902 = vadd.f32 %v1901, %v1851
      %v1903 = vadd.f32 %v1902, %v1855
      %v1904 = vadd.f32 %v1903, %v1859
      %v1905 = vadd.f32 %v1904, %v1863
      %v1906 = vadd.f32 %v1905, %v1867
      %v1907 = vadd.f32 %v1906, %v1871
      %v1908 = vadd.f32 %v1907, %v1875
      %v1909 = vrot.slane %v1908, 4
      %v1910 = vadd.f32 %v1908, %v1909
      %v1911 = vrot.slane %v1910, 2
      %v1912 = vadd.f32 %v1910, %v1911
      %v1913 = vrot.slane %v1912, 1
      %v1914 = vadd.f32 %v1912, %v1913
      %v1915 = vadd.f32 %v1753, %v1757
      %v1916 = vadd.f32 %v1915, %v1761
      %v1917 = vadd.f32 %v1916, %v1765
      %v1918 = vadd.f32 %v1917, %v1769
      %v1919 = vadd.f32 %v1918, %v1773
      %v1920 = vadd.f32 %v1919, %v1777
      %v1921 = vadd.f32 %v1920, %v1781
      %v1922 = vadd.f32 %v1921, %v1785
      %v1923 = vadd.f32 %v1922, %v1789
      %v1924 = vadd.f32 %v1923, %v1793
      %v1925 = vadd.f32 %v1924, %v1797
      %v1926 = vadd.f32 %v1925, %v1801
      %v1927 = vadd.f32 %v1926, %v1805
      %v1928 = vadd.f32 %v1927, %v1809
      %v1929 = vadd.f32 %v1928, %v1813
      %v1930 = vadd.f32 %v1929, %v1817
      %v1931 = vadd.f32 %v1930, %v1821
      %v1932 = vadd.f32 %v1931, %v1825
      %v1933 = vadd.f32 %v1932, %v1829
      %v1934 = vadd.f32 %v1933, %v1833
      %v1935 = vadd.f32 %v1934, %v1837
      %v1936 = vadd.f32 %v1935, %v1841
      %v1937 = vadd.f32 %v1936, %v1845
      %v1938 = vadd.f32 %v1937, %v1849
      %v1939 = vadd.f32 %v1938, %v1853
      %v1940 = vadd.f32 %v1939, %v1857
      %v1941 = vadd.f32 %v1940, %v1861
      %v1942 = vadd.f32 %v1941, %v1865
      %v1943 = vadd.f32 %v1942, %v1869
      %v1944 = vadd.f32 %v1943, %v1873
      %v1945 = vadd.f32 %v1944, %v1877
      %v1946 = vrot.slane %v1945, 4
      %v1947 = vadd.f32 %v1945, %v1946
      %v1948 = vrot.slane %v1947, 2
      %v1949 = vadd.f32 %v1947, %v1948
      %v1950 = vrot.slane %v1949, 1
      %v1951 = vadd.f32 %v1949, %v1950
      %v1953 = vlaneseq
      %v1954 = vshrl.u32 %v1953, 7
      %v1955 = vsub.s32 0, %v1954
      %v1956 = vrot.slane %v285, %v1955
      %v1957 = vlaneseq
      %v1958 = vshrl.u32 %v1957, 7
      %v1959 = vsub.s32 1, %v1958
      %v1960 = vrot.slane %v285, %v1959
      %v1963 = vmul.f32 %v1309, %v1956
      %v1964 = vmul.f32 %v1311, %v1960
      %v1965 = vmul.f32 %v1315, %v1956
      %v1966 = vmul.f32 %v1317, %v1960
      %v1967 = vmul.f32 %v1321, %v1956
      %v1968 = vmul.f32 %v1323, %v1960
      %v1969 = vmul.f32 %v1327, %v1956
      %v1970 = vmul.f32 %v1329, %v1960
      %v1971 = vpack.c.bf16 %v1965, %v1963
      %v1972 = vpack.c.bf16 %v1966, %v1964
      %v1973 = vpack.c.bf16 %v1969, %v1967
      %v1974 = vpack.c.bf16 %v1970, %v1968
      %v1975 = vpack.c.bf16 %v1755, %v1751
      %v1976 = vpack.c.bf16 %v1757, %v1753
      %v1977 = vpack.c.bf16 %v1763, %v1759
      %v1978 = vpack.c.bf16 %v1765, %v1761
      %v1979 = vpack.c.bf16 %v1771, %v1767
      %v1980 = vpack.c.bf16 %v1773, %v1769
      %v1981 = vpack.c.bf16 %v1779, %v1775
      %v1982 = vpack.c.bf16 %v1781, %v1777
      %v1983 = vpack.c.bf16 %v1787, %v1783
      %v1984 = vpack.c.bf16 %v1789, %v1785
      %v1985 = vpack.c.bf16 %v1795, %v1791
      %v1986 = vpack.c.bf16 %v1797, %v1793
      %v1987 = vpack.c.bf16 %v1803, %v1799
      %v1988 = vpack.c.bf16 %v1805, %v1801
      %v1989 = vpack.c.bf16 %v1811, %v1807
      %v1990 = vpack.c.bf16 %v1813, %v1809
      %v1991 = vpack.c.bf16 %v1819, %v1815
      %v1992 = vpack.c.bf16 %v1821, %v1817
      %v1993 = vpack.c.bf16 %v1827, %v1823
      %v1994 = vpack.c.bf16 %v1829, %v1825
      %v1995 = vpack.c.bf16 %v1835, %v1831
      %v1996 = vpack.c.bf16 %v1837, %v1833
      %v1997 = vpack.c.bf16 %v1843, %v1839
      %v1998 = vpack.c.bf16 %v1845, %v1841
      %v1999 = vpack.c.bf16 %v1851, %v1847
      %v2000 = vpack.c.bf16 %v1853, %v1849
      %v2001 = vpack.c.bf16 %v1859, %v1855
      %v2002 = vpack.c.bf16 %v1861, %v1857
      %v2003 = vpack.c.bf16 %v1867, %v1863
      %v2004 = vpack.c.bf16 %v1869, %v1865
      %v2005 = vpack.c.bf16 %v1875, %v1871
      %v2006 = vpack.c.bf16 %v1877, %v1873
      %2007 = vmatprep.subr.bf16.mxu0 %v1990
      %2008 = vmatpush1.bf16.msra.mxu0 %v1989
      %2009 = vmatprep.subr.bf16.mxu0 %v1988
      %2010 = vmatpush1.bf16.msra.mxu0 %v1987
      %2011 = vmatprep.subr.bf16.mxu0 %v1986
      %2012 = vmatpush1.bf16.msra.mxu0 %v1985
      %2013 = vmatprep.subr.bf16.mxu0 %v1984
      %2014 = vmatpush1.bf16.msra.mxu0 %v1983
      %2015 = vmatprep.subr.bf16.mxu0 %v1982
      %2016 = vmatpush1.bf16.msra.mxu0 %v1981
      %2017 = vmatprep.subr.bf16.mxu0 %v1980
      %2018 = vmatpush1.bf16.msra.mxu0 %v1979
      %2019 = vmatprep.subr.bf16.mxu0 %v1978
      %2020 = vmatpush1.bf16.msra.mxu0 %v1977
      %2021 = vmatprep.subr.bf16.mxu0 %v1976
      %2022 = vmatpush1.bf16.msra.mxu0 %v1975
      %2023 = vmatprep.subr.bf16.mxu0 %v2006
      %2024 = vmatpush2.bf16.msra.mxu0 %v2005
      %2025 = vmatprep.subr.bf16.mxu0 %v2004
      %2026 = vmatpush2.bf16.msra.mxu0 %v2003
      %2027 = vmatprep.subr.bf16.mxu0 %v2002
      %2028 = vmatpush2.bf16.msra.mxu0 %v2001
      %2029 = vmatprep.subr.bf16.mxu0 %v2000
      %2030 = vmatpush2.bf16.msra.mxu0 %v1999
      %2031 = vmatprep.subr.bf16.mxu0 %v1998
      %2032 = vmatpush2.bf16.msra.mxu0 %v1997
      %2033 = vmatprep.subr.bf16.mxu0 %v1996
      %2034 = vmatpush2.bf16.msra.mxu0 %v1995
      %2035 = vmatprep.subr.bf16.mxu0 %v1994
      %2036 = vmatpush2.bf16.msra.mxu0 %v1993
      %2037 = vmatprep.subr.bf16.mxu0 %v1992
      %2038 = vmatpush2.bf16.msra.mxu0 %v1991
      %2039 = vmatprep.mubr.bf16.mxu0 %v1972
      %2040 = vmatmul.mubr.bf16.gmra.mxu0 %v1971
      %v2041 = vpop.f32.mrf.mxu0
      %v2042 = vadd.f32 0.0, %v2041
      %v2043 = vpop.f32.mrf.mxu0
      %v2044 = vadd.f32 0.0, %v2043
      %v2045 = vpop.f32.mrf.mxu0
      %v2046 = vadd.f32 0.0, %v2045
      %v2047 = vpop.f32.mrf.mxu0
      %v2048 = vadd.f32 0.0, %v2047
      %2049 = vmatprep.mubr.bf16.mxu0 %v1974
      %2050 = vmatmul.mubr.bf16.gmra.mxu0 %v1973
      %v2051 = vpop.f32.mrf.mxu0
      %v2052 = vadd.f32 0.0, %v2051
      %v2053 = vpop.f32.mrf.mxu0
      %v2054 = vadd.f32 0.0, %v2053
      %v2055 = vpop.f32.mrf.mxu0
      %v2056 = vadd.f32 0.0, %v2055
      %v2057 = vpop.f32.mrf.mxu0
      %v2058 = vadd.f32 0.0, %v2057
      %2059 = vdwg.mxu0
      %v2060 = vrcp.pop %v1914
      %v2061 = vrcp.pop %v1951
      %v2062 = vmul.f32 %v2042, %v2060
      %v2063 = vmul.f32 %v2044, %v2061
      %v2064 = vmul.f32 %v2046, %v2060
      %v2065 = vmul.f32 %v2048, %v2061
      %v2066 = vmul.f32 %v2052, %v2060
      %v2067 = vmul.f32 %v2054, %v2061
      %v2068 = vmul.f32 %v2056, %v2060
      %v2069 = vmul.f32 %v2058, %v2061
      %s2070 = scalar_lea.vmem %s2, 64
      %v2071 = vld [vmem:[%s2070] sm:$0xff]
      %v2072 = vld [vmem:[%s2070 + $0x8] sm:$0xff]
      %v2073 = vld [vmem:[%s2070 + $0x10] sm:$0xff]
      %v2074 = vld [vmem:[%s2070 + $0x18] sm:$0xff]
      %2075 = vset.pattern.permute.xlu0 8
      %2076 = vperm.xlu0 %2075, %v278
      %v2077 = vpop.permute.xlu0 %2076
      %2079 = vset.pattern.permute.xlu0 8
      %2080 = vperm.xlu0 %2079, %v279
      %v2081 = vpop.permute.xlu0 %2080
      %2083 = vset.pattern.permute.xlu0 8
      %2084 = vperm.xlu0 %2083, %v280
      %v2085 = vpop.permute.xlu0 %2084
      %2087 = vset.pattern.permute.xlu0 8
      %2088 = vperm.xlu0 %2087, %v281
      %v2089 = vpop.permute.xlu0 %2088
      %v2092 = vsel %vm506, %v2071, 0
      %v2095 = vsel %vm506, %v2072, 0
      %v2098 = vsel %vm506, %v2073, 0
      %v2101 = vsel %vm506, %v2074, 0
      %2103 = vmatprep.subr.mxu0 0.0
      %2104 = vmatpush1.msra.mxu0 0.0
      %2105 = vmatprep.subr.mxu0 0.0
      %2106 = vmatpush1.msra.mxu0 0.0
      %2107 = vmatprep.subr.mxu0 0.0
      %2108 = vmatpush1.msra.mxu0 0.0
      %2109 = vmatprep.subr.mxu0 0.0
      %2110 = vmatpush1.msra.mxu0 0.0
      %2111 = vmatprep.subr.mxu0 0.0
      %2112 = vmatpush1.msra.mxu0 0.0
      %2113 = vmatprep.subr.mxu0 0.0
      %2114 = vmatpush1.msra.mxu0 0.0
      %2115 = vmatprep.subr.mxu0 0.0
      %2116 = vmatpush1.msra.mxu0 0.0
      %2117 = vmatprep.subr.mxu0 0.0
      %2118 = vmatpush1.msra.mxu0 0.0
      %2119 = vmatprep.subr.mxu0 0.0
      %2120 = vmatpush1.msra.mxu0 0.0
      %2121 = vmatprep.subr.mxu0 0.0
      %2122 = vmatpush1.msra.mxu0 0.0
      %2123 = vmatprep.subr.mxu0 0.0
      %2124 = vmatpush1.msra.mxu0 0.0
      %2125 = vmatprep.subr.mxu0 0.0
      %2126 = vmatpush1.msra.mxu0 0.0
      %2127 = vmatprep.subr.mxu0 %v2069
      %2128 = vmatpush1.msra.mxu0 %v2068
      %2129 = vmatprep.subr.mxu0 %v2067
      %2130 = vmatpush1.msra.mxu0 %v2066
      %2131 = vmatprep.subr.mxu0 %v2065
      %2132 = vmatpush1.msra.mxu0 %v2064
      %2133 = vmatprep.subr.mxu0 %v2063
      %2134 = vmatpush1.msra.mxu0 %v2062
      %2135 = vmatprep.subr.mxu0 0.0
      %2136 = vmatpush2.msra.mxu0 0.0
      %2137 = vmatprep.subr.mxu0 0.0
      %2138 = vmatpush2.msra.mxu0 0.0
      %2139 = vmatprep.subr.mxu0 0.0
      %2140 = vmatpush2.msra.mxu0 0.0
      %2141 = vmatprep.subr.mxu0 0.0
      %2142 = vmatpush2.msra.mxu0 0.0
      %2143 = vmatprep.subr.mxu0 0.0
      %2144 = vmatpush2.msra.mxu0 0.0
      %2145 = vmatprep.subr.mxu0 0.0
      %2146 = vmatpush2.msra.mxu0 0.0
      %2147 = vmatprep.subr.mxu0 0.0
      %2148 = vmatpush2.msra.mxu0 0.0
      %2149 = vmatprep.subr.mxu0 0.0
      %2150 = vmatpush2.msra.mxu0 0.0
      %2151 = vmatprep.subr.mxu0 0.0
      %2152 = vmatpush2.msra.mxu0 0.0
      %2153 = vmatprep.subr.mxu0 0.0
      %2154 = vmatpush2.msra.mxu0 0.0
      %2155 = vmatprep.subr.mxu0 0.0
      %2156 = vmatpush2.msra.mxu0 0.0
      %2157 = vmatprep.subr.mxu0 0.0
      %2158 = vmatpush2.msra.mxu0 0.0
      %2159 = vmatprep.subr.mxu0 0.0
      %2160 = vmatpush2.msra.mxu0 0.0
      %2161 = vmatprep.subr.mxu0 0.0
      %2162 = vmatpush2.msra.mxu0 0.0
      %2163 = vmatprep.subr.mxu0 0.0
      %2164 = vmatpush2.msra.mxu0 0.0
      %2165 = vmatprep.subr.mxu0 0.0
      %2166 = vmatpush2.msra.mxu0 0.0
      %2167 = vmatprep.mubr.f32.mxu0 0.0
      %2168 = vmatmul.mubr.f32.gmra.mxu0 %v2092
      %v2169 = vpop.f32.mrf.mxu0
      %v2170 = vadd.f32 %v2077, %v2169
      %v2171 = vpop.f32.mrf.mxu0
      %v2172 = vadd.f32 %v2077, %v2171
      %2173 = vmatprep.mubr.f32.mxu0 0.0
      %2174 = vmatmul.mubr.f32.gmra.mxu0 %v2095
      %v2175 = vpop.f32.mrf.mxu0
      %v2176 = vadd.f32 %v2081, %v2175
      %v2177 = vpop.f32.mrf.mxu0
      %v2178 = vadd.f32 %v2081, %v2177
      %2179 = vmatprep.mubr.f32.mxu0 0.0
      %2180 = vmatmul.mubr.f32.gmra.mxu0 %v2098
      %v2181 = vpop.f32.mrf.mxu0
      %v2182 = vadd.f32 %v2085, %v2181
      %v2183 = vpop.f32.mrf.mxu0
      %v2184 = vadd.f32 %v2085, %v2183
      %2185 = vmatprep.mubr.f32.mxu0 0.0
      %2186 = vmatmul.mubr.f32.gmra.mxu0 %v2101
      %v2187 = vpop.f32.mrf.mxu0
      %v2188 = vadd.f32 %v2089, %v2187
      %v2189 = vpop.f32.mrf.mxu0
      %v2190 = vadd.f32 %v2089, %v2189
      %2191 = vdwg.mxu0
      %v2192 = vadd.f32 %v926, %v2170
      %v2193 = vadd.f32 %v927, %v2172
      %v2194 = vadd.f32 %v928, %v2176
      %v2195 = vadd.f32 %v929, %v2178
      %v2196 = vadd.f32 %v930, %v2182
      %v2197 = vadd.f32 %v931, %v2184
      %v2198 = vadd.f32 %v932, %v2188
      %v2199 = vadd.f32 %v933, %v2190
      %v2200 = vrsqrt.pop %v285
      %v2201 = vmul.f32 %v285, %v2200
      %vm2202 = vcmp.eq.f32.partialorder %v285, inf
      %v2203 = vsel %vm2202, %v285, %v2201
      %vm2204 = vcmp.eq.f32.partialorder %v285, 0.0
      %v2205 = vand.u32 %v285, 2147483648
      %v2206 = vsel %vm2204, %v2205, %v2203
      %v2207 = vadd.f32 %v2192, %v2193
      %2208 = vadd.xlane.f32.xlu0 %v2207
      %v2209 = vpop.xlane.xlu0 %2208
      %v2210 = vadd.f32 %v2194, %v2195
      %2211 = vadd.xlane.f32.xlu0 %v2210
      %v2212 = vpop.xlane.xlu0 %2211
      %v2213 = vadd.f32 %v2196, %v2197
      %2214 = vadd.xlane.f32.xlu0 %v2213
      %v2215 = vpop.xlane.xlu0 %2214
      %v2216 = vadd.f32 %v2198, %v2199
      %2217 = vadd.xlane.f32.xlu0 %v2216
      %v2218 = vpop.xlane.xlu0 %2217
      %v2219 = vmul.f32 %v2192, %v2192
      %v2220 = vmul.f32 %v2193, %v2193
      %v2221 = vmul.f32 %v2194, %v2194
      %v2222 = vmul.f32 %v2195, %v2195
      %v2223 = vmul.f32 %v2196, %v2196
      %v2224 = vmul.f32 %v2197, %v2197
      %v2225 = vmul.f32 %v2198, %v2198
      %v2226 = vmul.f32 %v2199, %v2199
      %v2227 = vadd.f32 %v2219, %v2220
      %2228 = vadd.xlane.f32.xlu0 %v2227
      %v2229 = vpop.xlane.xlu0 %2228
      %v2230 = vadd.f32 %v2221, %v2222
      %2231 = vadd.xlane.f32.xlu0 %v2230
      %v2232 = vpop.xlane.xlu0 %2231
      %v2233 = vadd.f32 %v2223, %v2224
      %2234 = vadd.xlane.f32.xlu0 %v2233
      %v2235 = vpop.xlane.xlu0 %2234
      %v2236 = vadd.f32 %v2225, %v2226
      %2237 = vadd.xlane.f32.xlu0 %v2236
      %v2238 = vpop.xlane.xlu0 %2237
      %v2239 = vmul.f32 %v2209, 0.00390625
      %v2240 = vmul.f32 %v2212, 0.00390625
      %v2241 = vmul.f32 %v2215, 0.00390625
      %v2242 = vmul.f32 %v2218, 0.00390625
      %v2243 = vmul.f32 %v2229, 0.00390625
      %v2244 = vmul.f32 %v2232, 0.00390625
      %v2245 = vmul.f32 %v2235, 0.00390625
      %v2246 = vmul.f32 %v2238, 0.00390625
      %v2247 = vmul.f32 %v2239, %v2239
      %v2248 = vmul.f32 %v2240, %v2240
      %v2249 = vmul.f32 %v2241, %v2241
      %v2250 = vmul.f32 %v2242, %v2242
      %v2251 = vsub.f32 %v2243, %v2247
      %v2252 = vsub.f32 %v2244, %v2248
      %v2253 = vsub.f32 %v2245, %v2249
      %v2254 = vsub.f32 %v2246, %v2250
      %v2255 = vadd.f32 %v2251, 1e-06
      %v2256 = vadd.f32 %v2252, 1e-06
      %v2257 = vadd.f32 %v2253, 1e-06
      %v2258 = vadd.f32 %v2254, 1e-06
      %v2259 = vrsqrt.pop %v2255
      %v2260 = vrsqrt.pop %v2256
      %v2261 = vrsqrt.pop %v2257
      %v2262 = vrsqrt.pop %v2258
      %v2263 = vmul.f32 %v2259, %v278
      %v2264 = vmul.f32 %v2260, %v279
      %v2265 = vmul.f32 %v2261, %v280
      %v2266 = vmul.f32 %v2262, %v281
      %v2267 = vmul.f32 %v2239, %v2263
      %v2268 = vmul.f32 %v2240, %v2264
      %v2269 = vmul.f32 %v2241, %v2265
      %v2270 = vmul.f32 %v2242, %v2266
      %2275 = vrot.lane.b32.xlu0 %v2267, 1
      %v2276 = vpop.permute.xlu0 %2275
      %2277 = vrot.lane.b32.xlu0 %v2268, 1
      %v2278 = vpop.permute.xlu0 %2277
      %2279 = vrot.lane.b32.xlu0 %v2269, 1
      %v2280 = vpop.permute.xlu0 %2279
      %2281 = vrot.lane.b32.xlu0 %v2270, 1
      %v2282 = vpop.permute.xlu0 %2281
      %v2287 = vsub.f32 %v278, %v2276
      %v2288 = vsub.f32 %v279, %v2278
      %v2289 = vsub.f32 %v280, %v2280
      %v2290 = vsub.f32 %v281, %v2282
      %2292 = vset.pattern.permute.xlu0 9
      %2293 = vperm.xlu0 %2292, %v2263
      %v2294 = vpop.permute.xlu0 %2293
      %2297 = vset.pattern.permute.xlu0 9
      %2298 = vperm.xlu0 %2297, %v2264
      %v2299 = vpop.permute.xlu0 %2298
      %2302 = vset.pattern.permute.xlu0 9
      %2303 = vperm.xlu0 %2302, %v2265
      %v2304 = vpop.permute.xlu0 %2303
      %2307 = vset.pattern.permute.xlu0 9
      %2308 = vperm.xlu0 %2307, %v2266
      %v2309 = vpop.permute.xlu0 %2308
      %v2311 = vmul.f32 %v2192, %v2294
      %v2312 = vmul.f32 %v2193, %v2294
      %v2313 = vmul.f32 %v2194, %v2299
      %v2314 = vmul.f32 %v2195, %v2299
      %v2315 = vmul.f32 %v2196, %v2304
      %v2316 = vmul.f32 %v2197, %v2304
      %v2317 = vmul.f32 %v2198, %v2309
      %v2318 = vmul.f32 %v2199, %v2309
      %2320 = vset.pattern.permute.xlu0 10
      %2321 = vperm.xlu0 %2320, %v2287
      %v2322 = vpop.permute.xlu0 %2321
      %2325 = vset.pattern.permute.xlu0 10
      %2326 = vperm.xlu0 %2325, %v2288
      %v2327 = vpop.permute.xlu0 %2326
      %2330 = vset.pattern.permute.xlu0 10
      %2331 = vperm.xlu0 %2330, %v2289
      %v2332 = vpop.permute.xlu0 %2331
      %2335 = vset.pattern.permute.xlu0 10
      %2336 = vperm.xlu0 %2335, %v2290
      %v2337 = vpop.permute.xlu0 %2336
      %v2339 = vadd.f32 %v2311, %v2322
      %v2340 = vadd.f32 %v2312, %v2322
      %v2341 = vadd.f32 %v2313, %v2327
      %v2342 = vadd.f32 %v2314, %v2327
      %v2343 = vadd.f32 %v2315, %v2332
      %v2344 = vadd.f32 %v2316, %v2332
      %v2345 = vadd.f32 %v2317, %v2337
      %v2346 = vadd.f32 %v2318, %v2337
      %v2347 = vxor.u32 %v2339, 2147483648
      %v2348 = vxor.u32 %v2340, 2147483648
      %v2349 = vxor.u32 %v2341, 2147483648
      %v2350 = vxor.u32 %v2342, 2147483648
      %v2351 = vxor.u32 %v2343, 2147483648
      %v2352 = vxor.u32 %v2344, 2147483648
      %v2353 = vxor.u32 %v2345, 2147483648
      %v2354 = vxor.u32 %v2346, 2147483648
      %v2355 = vmul.f32 %v2347, 1.442695
      %v2356 = vpow.pop %v2355
      %v2357 = vmul.f32 %v2348, 1.442695
      %v2358 = vpow.pop %v2357
      %v2359 = vmul.f32 %v2349, 1.442695
      %v2360 = vpow.pop %v2359
      %v2361 = vmul.f32 %v2350, 1.442695
      %v2362 = vpow.pop %v2361
      %v2363 = vmul.f32 %v2351, 1.442695
      %v2364 = vpow.pop %v2363
      %v2365 = vmul.f32 %v2352, 1.442695
      %v2366 = vpow.pop %v2365
      %v2367 = vmul.f32 %v2353, 1.442695
      %v2368 = vpow.pop %v2367
      %v2369 = vmul.f32 %v2354, 1.442695
      %v2370 = vpow.pop %v2369
      %v2371 = vadd.f32 %v2356, 1.0
      %v2372 = vadd.f32 %v2358, 1.0
      %v2373 = vadd.f32 %v2360, 1.0
      %v2374 = vadd.f32 %v2362, 1.0
      %v2375 = vadd.f32 %v2364, 1.0
      %v2376 = vadd.f32 %v2366, 1.0
      %v2377 = vadd.f32 %v2368, 1.0
      %v2378 = vadd.f32 %v2370, 1.0
      %v2379 = vrcp.pop %v2371
      %v2380 = vmul.f32 1.0, %v2379
      %v2381 = vrcp.pop %v2372
      %v2382 = vmul.f32 1.0, %v2381
      %v2383 = vrcp.pop %v2373
      %v2384 = vmul.f32 1.0, %v2383
      %v2385 = vrcp.pop %v2374
      %v2386 = vmul.f32 1.0, %v2385
      %v2387 = vrcp.pop %v2375
      %v2388 = vmul.f32 1.0, %v2387
      %v2389 = vrcp.pop %v2376
      %v2390 = vmul.f32 1.0, %v2389
      %v2391 = vrcp.pop %v2377
      %v2392 = vmul.f32 1.0, %v2391
      %v2393 = vrcp.pop %v2378
      %v2394 = vmul.f32 1.0, %v2393
      %v2395 = vmul.f32 %v2339, %v2380
      %v2396 = vmul.f32 %v2340, %v2382
      %v2397 = vmul.f32 %v2341, %v2384
      %v2398 = vmul.f32 %v2342, %v2386
      %v2399 = vmul.f32 %v2343, %v2388
      %v2400 = vmul.f32 %v2344, %v2390
      %v2401 = vmul.f32 %v2345, %v2392
      %v2402 = vmul.f32 %v2346, %v2394
      %s2403 = scalar_lea.vmem %s2, 96
      %v2404 = vld [vmem:[%s2403] sm:$0xff]
      %v2405 = vld [vmem:[%s2403 + $0x8] sm:$0xff]
      %v2406 = vld [vmem:[%s2403 + $0x10] sm:$0xff]
      %v2407 = vld [vmem:[%s2403 + $0x18] sm:$0xff]
      %2408 = vset.pattern.permute.xlu0 11
      %2409 = vperm.xlu0 %2408, %v278
      %v2410 = vpop.permute.xlu0 %2409
      %2412 = vset.pattern.permute.xlu0 11
      %2413 = vperm.xlu0 %2412, %v279
      %v2414 = vpop.permute.xlu0 %2413
      %2416 = vset.pattern.permute.xlu0 11
      %2417 = vperm.xlu0 %2416, %v280
      %v2418 = vpop.permute.xlu0 %2417
      %2420 = vset.pattern.permute.xlu0 11
      %2421 = vperm.xlu0 %2420, %v281
      %v2422 = vpop.permute.xlu0 %2421
      %v2425 = vsel %vm506, %v2404, 0
      %v2428 = vsel %vm506, %v2405, 0
      %v2431 = vsel %vm506, %v2406, 0
      %v2434 = vsel %vm506, %v2407, 0
      %2436 = vmatprep.subr.mxu0 0.0
      %2437 = vmatpush1.msra.mxu0 0.0
      %2438 = vmatprep.subr.mxu0 0.0
      %2439 = vmatpush1.msra.mxu0 0.0
      %2440 = vmatprep.subr.mxu0 0.0
      %2441 = vmatpush1.msra.mxu0 0.0
      %2442 = vmatprep.subr.mxu0 0.0
      %2443 = vmatpush1.msra.mxu0 0.0
      %2444 = vmatprep.subr.mxu0 0.0
      %2445 = vmatpush1.msra.mxu0 0.0
      %2446 = vmatprep.subr.mxu0 0.0
      %2447 = vmatpush1.msra.mxu0 0.0
      %2448 = vmatprep.subr.mxu0 0.0
      %2449 = vmatpush1.msra.mxu0 0.0
      %2450 = vmatprep.subr.mxu0 0.0
      %2451 = vmatpush1.msra.mxu0 0.0
      %2452 = vmatprep.subr.mxu0 0.0
      %2453 = vmatpush1.msra.mxu0 0.0
      %2454 = vmatprep.subr.mxu0 0.0
      %2455 = vmatpush1.msra.mxu0 0.0
      %2456 = vmatprep.subr.mxu0 0.0
      %2457 = vmatpush1.msra.mxu0 0.0
      %2458 = vmatprep.subr.mxu0 0.0
      %2459 = vmatpush1.msra.mxu0 0.0
      %2460 = vmatprep.subr.mxu0 %v2402
      %2461 = vmatpush1.msra.mxu0 %v2401
      %2462 = vmatprep.subr.mxu0 %v2400
      %2463 = vmatpush1.msra.mxu0 %v2399
      %2464 = vmatprep.subr.mxu0 %v2398
      %2465 = vmatpush1.msra.mxu0 %v2397
      %2466 = vmatprep.subr.mxu0 %v2396
      %2467 = vmatpush1.msra.mxu0 %v2395
      %2468 = vmatprep.subr.mxu0 0.0
      %2469 = vmatpush2.msra.mxu0 0.0
      %2470 = vmatprep.subr.mxu0 0.0
      %2471 = vmatpush2.msra.mxu0 0.0
      %2472 = vmatprep.subr.mxu0 0.0
      %2473 = vmatpush2.msra.mxu0 0.0
      %2474 = vmatprep.subr.mxu0 0.0
      %2475 = vmatpush2.msra.mxu0 0.0
      %2476 = vmatprep.subr.mxu0 0.0
      %2477 = vmatpush2.msra.mxu0 0.0
      %2478 = vmatprep.subr.mxu0 0.0
      %2479 = vmatpush2.msra.mxu0 0.0
      %2480 = vmatprep.subr.mxu0 0.0
      %2481 = vmatpush2.msra.mxu0 0.0
      %2482 = vmatprep.subr.mxu0 0.0
      %2483 = vmatpush2.msra.mxu0 0.0
      %2484 = vmatprep.subr.mxu0 0.0
      %2485 = vmatpush2.msra.mxu0 0.0
      %2486 = vmatprep.subr.mxu0 0.0
      %2487 = vmatpush2.msra.mxu0 0.0
      %2488 = vmatprep.subr.mxu0 0.0
      %2489 = vmatpush2.msra.mxu0 0.0
      %2490 = vmatprep.subr.mxu0 0.0
      %2491 = vmatpush2.msra.mxu0 0.0
      %2492 = vmatprep.subr.mxu0 0.0
      %2493 = vmatpush2.msra.mxu0 0.0
      %2494 = vmatprep.subr.mxu0 0.0
      %2495 = vmatpush2.msra.mxu0 0.0
      %2496 = vmatprep.subr.mxu0 0.0
      %2497 = vmatpush2.msra.mxu0 0.0
      %2498 = vmatprep.subr.mxu0 0.0
      %2499 = vmatpush2.msra.mxu0 0.0
      %2500 = vmatprep.mubr.f32.mxu0 0.0
      %2501 = vmatmul.mubr.f32.gmra.mxu0 %v2425
      %v2502 = vpop.f32.mrf.mxu0
      %v2503 = vadd.f32 %v2410, %v2502
      %v2504 = vpop.f32.mrf.mxu0
      %v2505 = vadd.f32 %v2410, %v2504
      %2506 = vmatprep.mubr.f32.mxu0 0.0
      %2507 = vmatmul.mubr.f32.gmra.mxu0 %v2428
      %v2508 = vpop.f32.mrf.mxu0
      %v2509 = vadd.f32 %v2414, %v2508
      %v2510 = vpop.f32.mrf.mxu0
      %v2511 = vadd.f32 %v2414, %v2510
      %2512 = vmatprep.mubr.f32.mxu0 0.0
      %2513 = vmatmul.mubr.f32.gmra.mxu0 %v2431
      %v2514 = vpop.f32.mrf.mxu0
      %v2515 = vadd.f32 %v2418, %v2514
      %v2516 = vpop.f32.mrf.mxu0
      %v2517 = vadd.f32 %v2418, %v2516
      %2518 = vmatprep.mubr.f32.mxu0 0.0
      %2519 = vmatmul.mubr.f32.gmra.mxu0 %v2434
      %v2520 = vpop.f32.mrf.mxu0
      %v2521 = vadd.f32 %v2422, %v2520
      %v2522 = vpop.f32.mrf.mxu0
      %v2523 = vadd.f32 %v2422, %v2522
      %2524 = vdwg.mxu0
      %v2525 = vadd.f32 %v2503, %v2505
      %2526 = vadd.xlane.f32.xlu0 %v2525
      %v2527 = vpop.xlane.xlu0 %2526
      %v2528 = vadd.f32 %v2509, %v2511
      %2529 = vadd.xlane.f32.xlu0 %v2528
      %v2530 = vpop.xlane.xlu0 %2529
      %v2531 = vadd.f32 %v2515, %v2517
      %2532 = vadd.xlane.f32.xlu0 %v2531
      %v2533 = vpop.xlane.xlu0 %2532
      %v2534 = vadd.f32 %v2521, %v2523
      %2535 = vadd.xlane.f32.xlu0 %v2534
      %v2536 = vpop.xlane.xlu0 %2535
      %v2537 = vmul.f32 %v2503, %v2503
      %v2538 = vmul.f32 %v2505, %v2505
      %v2539 = vmul.f32 %v2509, %v2509
      %v2540 = vmul.f32 %v2511, %v2511
      %v2541 = vmul.f32 %v2515, %v2515
      %v2542 = vmul.f32 %v2517, %v2517
      %v2543 = vmul.f32 %v2521, %v2521
      %v2544 = vmul.f32 %v2523, %v2523
      %v2545 = vadd.f32 %v2537, %v2538
      %2546 = vadd.xlane.f32.xlu0 %v2545
      %v2547 = vpop.xlane.xlu0 %2546
      %v2548 = vadd.f32 %v2539, %v2540
      %2549 = vadd.xlane.f32.xlu0 %v2548
      %v2550 = vpop.xlane.xlu0 %2549
      %v2551 = vadd.f32 %v2541, %v2542
      %2552 = vadd.xlane.f32.xlu0 %v2551
      %v2553 = vpop.xlane.xlu0 %2552
      %v2554 = vadd.f32 %v2543, %v2544
      %2555 = vadd.xlane.f32.xlu0 %v2554
      %v2556 = vpop.xlane.xlu0 %2555
      %v2557 = vmul.f32 %v2527, 0.00390625
      %v2558 = vmul.f32 %v2530, 0.00390625
      %v2559 = vmul.f32 %v2533, 0.00390625
      %v2560 = vmul.f32 %v2536, 0.00390625
      %v2561 = vmul.f32 %v2547, 0.00390625
      %v2562 = vmul.f32 %v2550, 0.00390625
      %v2563 = vmul.f32 %v2553, 0.00390625
      %v2564 = vmul.f32 %v2556, 0.00390625
      %v2565 = vmul.f32 %v2557, %v2557
      %v2566 = vmul.f32 %v2558, %v2558
      %v2567 = vmul.f32 %v2559, %v2559
      %v2568 = vmul.f32 %v2560, %v2560
      %v2569 = vsub.f32 %v2561, %v2565
      %v2570 = vsub.f32 %v2562, %v2566
      %v2571 = vsub.f32 %v2563, %v2567
      %v2572 = vsub.f32 %v2564, %v2568
      %v2573 = vadd.f32 %v2569, 1e-06
      %v2574 = vadd.f32 %v2570, 1e-06
      %v2575 = vadd.f32 %v2571, 1e-06
      %v2576 = vadd.f32 %v2572, 1e-06
      %v2577 = vrsqrt.pop %v2573
      %v2578 = vrsqrt.pop %v2574
      %v2579 = vrsqrt.pop %v2575
      %v2580 = vrsqrt.pop %v2576
      %v2581 = vmul.f32 %v2577, %v278
      %v2582 = vmul.f32 %v2578, %v279
      %v2583 = vmul.f32 %v2579, %v280
      %v2584 = vmul.f32 %v2580, %v281
      %v2585 = vmul.f32 %v2557, %v2581
      %v2586 = vmul.f32 %v2558, %v2582
      %v2587 = vmul.f32 %v2559, %v2583
      %v2588 = vmul.f32 %v2560, %v2584
      %2593 = vrot.lane.b32.xlu0 %v2585, 1
      %v2594 = vpop.permute.xlu0 %2593
      %2595 = vrot.lane.b32.xlu0 %v2586, 1
      %v2596 = vpop.permute.xlu0 %2595
      %2597 = vrot.lane.b32.xlu0 %v2587, 1
      %v2598 = vpop.permute.xlu0 %2597
      %2599 = vrot.lane.b32.xlu0 %v2588, 1
      %v2600 = vpop.permute.xlu0 %2599
      %v2605 = vsub.f32 %v278, %v2594
      %v2606 = vsub.f32 %v279, %v2596
      %v2607 = vsub.f32 %v280, %v2598
      %v2608 = vsub.f32 %v281, %v2600
      %2610 = vset.pattern.permute.xlu0 12
      %2611 = vperm.xlu0 %2610, %v2581
      %v2612 = vpop.permute.xlu0 %2611
      %2615 = vset.pattern.permute.xlu0 12
      %2616 = vperm.xlu0 %2615, %v2582
      %v2617 = vpop.permute.xlu0 %2616
      %2620 = vset.pattern.permute.xlu0 12
      %2621 = vperm.xlu0 %2620, %v2583
      %v2622 = vpop.permute.xlu0 %2621
      %2625 = vset.pattern.permute.xlu0 12
      %2626 = vperm.xlu0 %2625, %v2584
      %v2627 = vpop.permute.xlu0 %2626
      %v2629 = vmul.f32 %v2503, %v2612
      %v2630 = vmul.f32 %v2505, %v2612
      %v2631 = vmul.f32 %v2509, %v2617
      %v2632 = vmul.f32 %v2511, %v2617
      %v2633 = vmul.f32 %v2515, %v2622
      %v2634 = vmul.f32 %v2517, %v2622
      %v2635 = vmul.f32 %v2521, %v2627
      %v2636 = vmul.f32 %v2523, %v2627
      %2638 = vset.pattern.permute.xlu0 13
      %2639 = vperm.xlu0 %2638, %v2605
      %v2640 = vpop.permute.xlu0 %2639
      %2643 = vset.pattern.permute.xlu0 13
      %2644 = vperm.xlu0 %2643, %v2606
      %v2645 = vpop.permute.xlu0 %2644
      %2648 = vset.pattern.permute.xlu0 13
      %2649 = vperm.xlu0 %2648, %v2607
      %v2650 = vpop.permute.xlu0 %2649
      %2653 = vset.pattern.permute.xlu0 13
      %2654 = vperm.xlu0 %2653, %v2608
      %v2655 = vpop.permute.xlu0 %2654
      %v2657 = vadd.f32 %v2629, %v2640
      %v2658 = vadd.f32 %v2630, %v2640
      %v2659 = vadd.f32 %v2631, %v2645
      %v2660 = vadd.f32 %v2632, %v2645
      %v2661 = vadd.f32 %v2633, %v2650
      %v2662 = vadd.f32 %v2634, %v2650
      %v2663 = vadd.f32 %v2635, %v2655
      %v2664 = vadd.f32 %v2636, %v2655
      %v2665 = vxor.u32 %v2657, 2147483648
      %v2666 = vxor.u32 %v2658, 2147483648
      %v2667 = vxor.u32 %v2659, 2147483648
      %v2668 = vxor.u32 %v2660, 2147483648
      %v2669 = vxor.u32 %v2661, 2147483648
      %v2670 = vxor.u32 %v2662, 2147483648
      %v2671 = vxor.u32 %v2663, 2147483648
      %v2672 = vxor.u32 %v2664, 2147483648
      %v2673 = vmul.f32 %v2665, 1.442695
      %v2674 = vpow.pop %v2673
      %v2675 = vmul.f32 %v2666, 1.442695
      %v2676 = vpow.pop %v2675
      %v2677 = vmul.f32 %v2667, 1.442695
      %v2678 = vpow.pop %v2677
      %v2679 = vmul.f32 %v2668, 1.442695
      %v2680 = vpow.pop %v2679
      %v2681 = vmul.f32 %v2669, 1.442695
      %v2682 = vpow.pop %v2681
      %v2683 = vmul.f32 %v2670, 1.442695
      %v2684 = vpow.pop %v2683
      %v2685 = vmul.f32 %v2671, 1.442695
      %v2686 = vpow.pop %v2685
      %v2687 = vmul.f32 %v2672, 1.442695
      %v2688 = vpow.pop %v2687
      %v2689 = vadd.f32 %v2674, 1.0
      %v2690 = vadd.f32 %v2676, 1.0
      %v2691 = vadd.f32 %v2678, 1.0
      %v2692 = vadd.f32 %v2680, 1.0
      %v2693 = vadd.f32 %v2682, 1.0
      %v2694 = vadd.f32 %v2684, 1.0
      %v2695 = vadd.f32 %v2686, 1.0
      %v2696 = vadd.f32 %v2688, 1.0
      %v2697 = vrcp.pop %v2689
      %v2698 = vmul.f32 1.0, %v2697
      %v2699 = vrcp.pop %v2690
      %v2700 = vmul.f32 1.0, %v2699
      %v2701 = vrcp.pop %v2691
      %v2702 = vmul.f32 1.0, %v2701
      %v2703 = vrcp.pop %v2692
      %v2704 = vmul.f32 1.0, %v2703
      %v2705 = vrcp.pop %v2693
      %v2706 = vmul.f32 1.0, %v2705
      %v2707 = vrcp.pop %v2694
      %v2708 = vmul.f32 1.0, %v2707
      %v2709 = vrcp.pop %v2695
      %v2710 = vmul.f32 1.0, %v2709
      %v2711 = vrcp.pop %v2696
      %v2712 = vmul.f32 1.0, %v2711
      %v2713 = vmul.f32 %v2657, %v2698
      %v2714 = vmul.f32 %v2658, %v2700
      %v2715 = vmul.f32 %v2659, %v2702
      %v2716 = vmul.f32 %v2660, %v2704
      %v2717 = vmul.f32 %v2661, %v2706
      %v2718 = vmul.f32 %v2662, %v2708
      %v2719 = vmul.f32 %v2663, %v2710
      %v2720 = vmul.f32 %v2664, %v2712
      %s2721 = scalar_lea.vmem %s2, 128
      %v2722 = vld [vmem:[%s2721] sm:$0xff]
      %v2723 = vld [vmem:[%s2721 + $0x8] sm:$0xff]
      %v2724 = vld [vmem:[%s2721 + $0x10] sm:$0xff]
      %v2725 = vld [vmem:[%s2721 + $0x18] sm:$0xff]
      %2726 = vset.pattern.permute.xlu0 14
      %2727 = vperm.xlu0 %2726, %v278
      %v2728 = vpop.permute.xlu0 %2727
      %2730 = vset.pattern.permute.xlu0 14
      %2731 = vperm.xlu0 %2730, %v279
      %v2732 = vpop.permute.xlu0 %2731
      %2734 = vset.pattern.permute.xlu0 14
      %2735 = vperm.xlu0 %2734, %v280
      %v2736 = vpop.permute.xlu0 %2735
      %2738 = vset.pattern.permute.xlu0 14
      %2739 = vperm.xlu0 %2738, %v281
      %v2740 = vpop.permute.xlu0 %2739
      %v2743 = vsel %vm506, %v2722, 0
      %v2746 = vsel %vm506, %v2723, 0
      %v2749 = vsel %vm506, %v2724, 0
      %v2752 = vsel %vm506, %v2725, 0
      %2754 = vmatprep.subr.mxu0 0.0
      %2755 = vmatpush1.msra.mxu0 0.0
      %2756 = vmatprep.subr.mxu0 0.0
      %2757 = vmatpush1.msra.mxu0 0.0
      %2758 = vmatprep.subr.mxu0 0.0
      %2759 = vmatpush1.msra.mxu0 0.0
      %2760 = vmatprep.subr.mxu0 0.0
      %2761 = vmatpush1.msra.mxu0 0.0
      %2762 = vmatprep.subr.mxu0 0.0
      %2763 = vmatpush1.msra.mxu0 0.0
      %2764 = vmatprep.subr.mxu0 0.0
      %2765 = vmatpush1.msra.mxu0 0.0
      %2766 = vmatprep.subr.mxu0 0.0
      %2767 = vmatpush1.msra.mxu0 0.0
      %2768 = vmatprep.subr.mxu0 0.0
      %2769 = vmatpush1.msra.mxu0 0.0
      %2770 = vmatprep.subr.mxu0 0.0
      %2771 = vmatpush1.msra.mxu0 0.0
      %2772 = vmatprep.subr.mxu0 0.0
      %2773 = vmatpush1.msra.mxu0 0.0
      %2774 = vmatprep.subr.mxu0 0.0
      %2775 = vmatpush1.msra.mxu0 0.0
      %2776 = vmatprep.subr.mxu0 0.0
      %2777 = vmatpush1.msra.mxu0 0.0
      %2778 = vmatprep.subr.mxu0 %v2720
      %2779 = vmatpush1.msra.mxu0 %v2719
      %2780 = vmatprep.subr.mxu0 %v2718
      %2781 = vmatpush1.msra.mxu0 %v2717
      %2782 = vmatprep.subr.mxu0 %v2716
      %2783 = vmatpush1.msra.mxu0 %v2715
      %2784 = vmatprep.subr.mxu0 %v2714
      %2785 = vmatpush1.msra.mxu0 %v2713
      %2786 = vmatprep.subr.mxu0 0.0
      %2787 = vmatpush2.msra.mxu0 0.0
      %2788 = vmatprep.subr.mxu0 0.0
      %2789 = vmatpush2.msra.mxu0 0.0
      %2790 = vmatprep.subr.mxu0 0.0
      %2791 = vmatpush2.msra.mxu0 0.0
      %2792 = vmatprep.subr.mxu0 0.0
      %2793 = vmatpush2.msra.mxu0 0.0
      %2794 = vmatprep.subr.mxu0 0.0
      %2795 = vmatpush2.msra.mxu0 0.0
      %2796 = vmatprep.subr.mxu0 0.0
      %2797 = vmatpush2.msra.mxu0 0.0
      %2798 = vmatprep.subr.mxu0 0.0
      %2799 = vmatpush2.msra.mxu0 0.0
      %2800 = vmatprep.subr.mxu0 0.0
      %2801 = vmatpush2.msra.mxu0 0.0
      %2802 = vmatprep.subr.mxu0 0.0
      %2803 = vmatpush2.msra.mxu0 0.0
      %2804 = vmatprep.subr.mxu0 0.0
      %2805 = vmatpush2.msra.mxu0 0.0
      %2806 = vmatprep.subr.mxu0 0.0
      %2807 = vmatpush2.msra.mxu0 0.0
      %2808 = vmatprep.subr.mxu0 0.0
      %2809 = vmatpush2.msra.mxu0 0.0
      %2810 = vmatprep.subr.mxu0 0.0
      %2811 = vmatpush2.msra.mxu0 0.0
      %2812 = vmatprep.subr.mxu0 0.0
      %2813 = vmatpush2.msra.mxu0 0.0
      %2814 = vmatprep.subr.mxu0 0.0
      %2815 = vmatpush2.msra.mxu0 0.0
      %2816 = vmatprep.subr.mxu0 0.0
      %2817 = vmatpush2.msra.mxu0 0.0
      %2818 = vmatprep.mubr.f32.mxu0 0.0
      %2819 = vmatmul.mubr.f32.gmra.mxu0 %v2743
      %v2820 = vpop.f32.mrf.mxu0
      %v2821 = vadd.f32 %v2728, %v2820
      %v2822 = vpop.f32.mrf.mxu0
      %v2823 = vadd.f32 %v2728, %v2822
      %2824 = vmatprep.mubr.f32.mxu0 0.0
      %2825 = vmatmul.mubr.f32.gmra.mxu0 %v2746
      %v2826 = vpop.f32.mrf.mxu0
      %v2827 = vadd.f32 %v2732, %v2826
      %v2828 = vpop.f32.mrf.mxu0
      %v2829 = vadd.f32 %v2732, %v2828
      %2830 = vmatprep.mubr.f32.mxu0 0.0
      %2831 = vmatmul.mubr.f32.gmra.mxu0 %v2749
      %v2832 = vpop.f32.mrf.mxu0
      %v2833 = vadd.f32 %v2736, %v2832
      %v2834 = vpop.f32.mrf.mxu0
      %v2835 = vadd.f32 %v2736, %v2834
      %2836 = vmatprep.mubr.f32.mxu0 0.0
      %2837 = vmatmul.mubr.f32.gmra.mxu0 %v2752
      %v2838 = vpop.f32.mrf.mxu0
      %v2839 = vadd.f32 %v2740, %v2838
      %v2840 = vpop.f32.mrf.mxu0
      %v2841 = vadd.f32 %v2740, %v2840
      %2842 = vdwg.mxu0
      %v2843 = vadd.f32 %v2192, %v2821
      %v2844 = vadd.f32 %v2193, %v2823
      %v2845 = vadd.f32 %v2194, %v2827
      %v2846 = vadd.f32 %v2195, %v2829
      %v2847 = vadd.f32 %v2196, %v2833
      %v2848 = vadd.f32 %v2197, %v2835
      %v2849 = vadd.f32 %v2198, %v2839
      %v2850 = vadd.f32 %v2199, %v2841
      %v2851 = vadd.f32 %v2843, %v2844
      %2852 = vadd.xlane.f32.xlu0 %v2851
      %v2853 = vpop.xlane.xlu0 %2852
      %v2854 = vadd.f32 %v2845, %v2846
      %2855 = vadd.xlane.f32.xlu0 %v2854
      %v2856 = vpop.xlane.xlu0 %2855
      %v2857 = vadd.f32 %v2847, %v2848
      %2858 = vadd.xlane.f32.xlu0 %v2857
      %v2859 = vpop.xlane.xlu0 %2858
      %v2860 = vadd.f32 %v2849, %v2850
      %2861 = vadd.xlane.f32.xlu0 %v2860
      %v2862 = vpop.xlane.xlu0 %2861
      %v2863 = vmul.f32 %v2843, %v2843
      %v2864 = vmul.f32 %v2844, %v2844
      %v2865 = vmul.f32 %v2845, %v2845
      %v2866 = vmul.f32 %v2846, %v2846
      %v2867 = vmul.f32 %v2847, %v2847
      %v2868 = vmul.f32 %v2848, %v2848
      %v2869 = vmul.f32 %v2849, %v2849
      %v2870 = vmul.f32 %v2850, %v2850
      %v2871 = vadd.f32 %v2863, %v2864
      %2872 = vadd.xlane.f32.xlu0 %v2871
      %v2873 = vpop.xlane.xlu0 %2872
      %v2874 = vadd.f32 %v2865, %v2866
      %2875 = vadd.xlane.f32.xlu0 %v2874
      %v2876 = vpop.xlane.xlu0 %2875
      %v2877 = vadd.f32 %v2867, %v2868
      %2878 = vadd.xlane.f32.xlu0 %v2877
      %v2879 = vpop.xlane.xlu0 %2878
      %v2880 = vadd.f32 %v2869, %v2870
      %2881 = vadd.xlane.f32.xlu0 %v2880
      %v2882 = vpop.xlane.xlu0 %2881
      %v2883 = vmul.f32 %v2853, 0.00390625
      %v2884 = vmul.f32 %v2856, 0.00390625
      %v2885 = vmul.f32 %v2859, 0.00390625
      %v2886 = vmul.f32 %v2862, 0.00390625
      %v2887 = vmul.f32 %v2873, 0.00390625
      %v2888 = vmul.f32 %v2876, 0.00390625
      %v2889 = vmul.f32 %v2879, 0.00390625
      %v2890 = vmul.f32 %v2882, 0.00390625
      %v2891 = vmul.f32 %v2883, %v2883
      %v2892 = vmul.f32 %v2884, %v2884
      %v2893 = vmul.f32 %v2885, %v2885
      %v2894 = vmul.f32 %v2886, %v2886
      %v2895 = vsub.f32 %v2887, %v2891
      %v2896 = vsub.f32 %v2888, %v2892
      %v2897 = vsub.f32 %v2889, %v2893
      %v2898 = vsub.f32 %v2890, %v2894
      %v2899 = vadd.f32 %v2895, 1e-06
      %v2900 = vadd.f32 %v2896, 1e-06
      %v2901 = vadd.f32 %v2897, 1e-06
      %v2902 = vadd.f32 %v2898, 1e-06
      %v2903 = vrsqrt.pop %v2899
      %v2904 = vrsqrt.pop %v2900
      %v2905 = vrsqrt.pop %v2901
      %v2906 = vrsqrt.pop %v2902
      %v2907 = vmul.f32 %v2903, %v278
      %v2908 = vmul.f32 %v2904, %v279
      %v2909 = vmul.f32 %v2905, %v280
      %v2910 = vmul.f32 %v2906, %v281
      %v2911 = vmul.f32 %v2883, %v2907
      %v2912 = vmul.f32 %v2884, %v2908
      %v2913 = vmul.f32 %v2885, %v2909
      %v2914 = vmul.f32 %v2886, %v2910
      %2919 = vrot.lane.b32.xlu0 %v2911, 1
      %v2920 = vpop.permute.xlu0 %2919
      %2921 = vrot.lane.b32.xlu0 %v2912, 1
      %v2922 = vpop.permute.xlu0 %2921
      %2923 = vrot.lane.b32.xlu0 %v2913, 1
      %v2924 = vpop.permute.xlu0 %2923
      %2925 = vrot.lane.b32.xlu0 %v2914, 1
      %v2926 = vpop.permute.xlu0 %2925
      %v2931 = vsub.f32 %v278, %v2920
      %v2932 = vsub.f32 %v279, %v2922
      %v2933 = vsub.f32 %v280, %v2924
      %v2934 = vsub.f32 %v281, %v2926
      %2936 = vset.pattern.permute.xlu0 15
      %2937 = vperm.xlu0 %2936, %v2907
      %v2938 = vpop.permute.xlu0 %2937
      %2941 = vset.pattern.permute.xlu0 15
      %2942 = vperm.xlu0 %2941, %v2908
      %v2943 = vpop.permute.xlu0 %2942
      %2946 = vset.pattern.permute.xlu0 15
      %2947 = vperm.xlu0 %2946, %v2909
      %v2948 = vpop.permute.xlu0 %2947
      %2951 = vset.pattern.permute.xlu0 15
      %2952 = vperm.xlu0 %2951, %v2910
      %v2953 = vpop.permute.xlu0 %2952
      %v2955 = vmul.f32 %v2843, %v2938
      %v2956 = vmul.f32 %v2844, %v2938
      %v2957 = vmul.f32 %v2845, %v2943
      %v2958 = vmul.f32 %v2846, %v2943
      %v2959 = vmul.f32 %v2847, %v2948
      %v2960 = vmul.f32 %v2848, %v2948
      %v2961 = vmul.f32 %v2849, %v2953
      %v2962 = vmul.f32 %v2850, %v2953
      %2964 = vset.pattern.permute.xlu0 16
      %2965 = vperm.xlu0 %2964, %v2931
      %v2966 = vpop.permute.xlu0 %2965
      %2969 = vset.pattern.permute.xlu0 16
      %2970 = vperm.xlu0 %2969, %v2932
      %v2971 = vpop.permute.xlu0 %2970
      %2974 = vset.pattern.permute.xlu0 16
      %2975 = vperm.xlu0 %2974, %v2933
      %v2976 = vpop.permute.xlu0 %2975
      %2979 = vset.pattern.permute.xlu0 16
      %2980 = vperm.xlu0 %2979, %v2934
      %v2981 = vpop.permute.xlu0 %2980
      %v2983 = vadd.f32 %v2955, %v2966
      %v2984 = vadd.f32 %v2956, %v2966
      %v2985 = vadd.f32 %v2957, %v2971
      %v2986 = vadd.f32 %v2958, %v2971
      %v2987 = vadd.f32 %v2959, %v2976
      %v2988 = vadd.f32 %v2960, %v2976
      %v2989 = vadd.f32 %v2961, %v2981
      %v2990 = vadd.f32 %v2962, %v2981
      %s2991 = scalar_lea.vmem %s4, 96
      %v2992 = vld [vmem:[%s2991] sm:$0xff]
      %v2993 = vld [vmem:[%s2991 + $0x8] sm:$0xff]
      %v2994 = vld [vmem:[%s2991 + $0x10] sm:$0xff]
      %v2995 = vld [vmem:[%s2991 + $0x18] sm:$0xff]
      %v2996 = vld [vmem:[%s2991 + $0x20] sm:$0xff]
      %v2997 = vld [vmem:[%s2991 + $0x28] sm:$0xff]
      %v2998 = vld [vmem:[%s2991 + $0x30] sm:$0xff]
      %v2999 = vld [vmem:[%s2991 + $0x38] sm:$0xff]
      %v3000 = vld [vmem:[%s2991 + $0x40] sm:$0xff]
      %v3001 = vld [vmem:[%s2991 + $0x48] sm:$0xff]
      %v3002 = vld [vmem:[%s2991 + $0x50] sm:$0xff]
      %v3003 = vld [vmem:[%s2991 + $0x58] sm:$0xff]
      %s3004 = scalar_lea.vmem %s5, 96
      %v3005 = vld [vmem:[%s3004] sm:$0xff]
      %v3006 = vld [vmem:[%s3004 + $0x8] sm:$0xff]
      %v3007 = vld [vmem:[%s3004 + $0x10] sm:$0xff]
      %v3008 = vld [vmem:[%s3004 + $0x18] sm:$0xff]
      %v3009 = vld [vmem:[%s3004 + $0x20] sm:$0xff]
      %v3010 = vld [vmem:[%s3004 + $0x28] sm:$0xff]
      %v3011 = vld [vmem:[%s3004 + $0x30] sm:$0xff]
      %v3012 = vld [vmem:[%s3004 + $0x38] sm:$0xff]
      %v3013 = vld [vmem:[%s3004 + $0x40] sm:$0xff]
      %v3014 = vld [vmem:[%s3004 + $0x48] sm:$0xff]
      %v3015 = vld [vmem:[%s3004 + $0x50] sm:$0xff]
      %v3016 = vld [vmem:[%s3004 + $0x58] sm:$0xff]
      %3018 = vset.pattern.permute.xlu0 0
      %3019 = vperm.xlu0 %3018, %v3005
      %v3020 = vpop.permute.xlu0 %3019
      %3023 = vset.pattern.permute.xlu0 0
      %3024 = vperm.xlu0 %3023, %v3006
      %v3025 = vpop.permute.xlu0 %3024
      %3028 = vset.pattern.permute.xlu0 0
      %3029 = vperm.xlu0 %3028, %v3007
      %v3030 = vpop.permute.xlu0 %3029
      %3033 = vset.pattern.permute.xlu0 0
      %3034 = vperm.xlu0 %3033, %v3008
      %v3035 = vpop.permute.xlu0 %3034
      %3038 = vset.pattern.permute.xlu0 0
      %3039 = vperm.xlu0 %3038, %v3009
      %v3040 = vpop.permute.xlu0 %3039
      %3043 = vset.pattern.permute.xlu0 0
      %3044 = vperm.xlu0 %3043, %v3010
      %v3045 = vpop.permute.xlu0 %3044
      %3048 = vset.pattern.permute.xlu0 0
      %3049 = vperm.xlu0 %3048, %v3011
      %v3050 = vpop.permute.xlu0 %3049
      %3053 = vset.pattern.permute.xlu0 0
      %3054 = vperm.xlu0 %3053, %v3012
      %v3055 = vpop.permute.xlu0 %3054
      %3058 = vset.pattern.permute.xlu0 0
      %3059 = vperm.xlu0 %3058, %v3013
      %v3060 = vpop.permute.xlu0 %3059
      %3063 = vset.pattern.permute.xlu0 0
      %3064 = vperm.xlu0 %3063, %v3014
      %v3065 = vpop.permute.xlu0 %3064
      %3068 = vset.pattern.permute.xlu0 0
      %3069 = vperm.xlu0 %3068, %v3015
      %v3070 = vpop.permute.xlu0 %3069
      %3073 = vset.pattern.permute.xlu0 0
      %3074 = vperm.xlu0 %3073, %v3016
      %v3075 = vpop.permute.xlu0 %3074
      %v3078 = vsel %vm506, %v2992, 0
      %v3081 = vsel %vm506, %v2993, 0
      %v3084 = vsel %vm506, %v2994, 0
      %v3087 = vsel %vm506, %v2995, 0
      %v3090 = vsel %vm506, %v2996, 0
      %v3093 = vsel %vm506, %v2997, 0
      %v3096 = vsel %vm506, %v2998, 0
      %v3099 = vsel %vm506, %v2999, 0
      %v3102 = vsel %vm506, %v3000, 0
      %v3105 = vsel %vm506, %v3001, 0
      %v3108 = vsel %vm506, %v3002, 0
      %v3111 = vsel %vm506, %v3003, 0
      %3113 = vmatprep.subr.mxu0 0.0
      %3114 = vmatpush1.msra.mxu0 0.0
      %3115 = vmatprep.subr.mxu0 0.0
      %3116 = vmatpush1.msra.mxu0 0.0
      %3117 = vmatprep.subr.mxu0 0.0
      %3118 = vmatpush1.msra.mxu0 0.0
      %3119 = vmatprep.subr.mxu0 0.0
      %3120 = vmatpush1.msra.mxu0 0.0
      %3121 = vmatprep.subr.mxu0 0.0
      %3122 = vmatpush1.msra.mxu0 0.0
      %3123 = vmatprep.subr.mxu0 0.0
      %3124 = vmatpush1.msra.mxu0 0.0
      %3125 = vmatprep.subr.mxu0 0.0
      %3126 = vmatpush1.msra.mxu0 0.0
      %3127 = vmatprep.subr.mxu0 0.0
      %3128 = vmatpush1.msra.mxu0 0.0
      %3129 = vmatprep.subr.mxu0 0.0
      %3130 = vmatpush1.msra.mxu0 0.0
      %3131 = vmatprep.subr.mxu0 0.0
      %3132 = vmatpush1.msra.mxu0 0.0
      %3133 = vmatprep.subr.mxu0 0.0
      %3134 = vmatpush1.msra.mxu0 0.0
      %3135 = vmatprep.subr.mxu0 0.0
      %3136 = vmatpush1.msra.mxu0 0.0
      %3137 = vmatprep.subr.mxu0 %v2990
      %3138 = vmatpush1.msra.mxu0 %v2989
      %3139 = vmatprep.subr.mxu0 %v2988
      %3140 = vmatpush1.msra.mxu0 %v2987
      %3141 = vmatprep.subr.mxu0 %v2986
      %3142 = vmatpush1.msra.mxu0 %v2985
      %3143 = vmatprep.subr.mxu0 %v2984
      %3144 = vmatpush1.msra.mxu0 %v2983
      %3145 = vmatprep.subr.mxu0 0.0
      %3146 = vmatpush2.msra.mxu0 0.0
      %3147 = vmatprep.subr.mxu0 0.0
      %3148 = vmatpush2.msra.mxu0 0.0
      %3149 = vmatprep.subr.mxu0 0.0
      %3150 = vmatpush2.msra.mxu0 0.0
      %3151 = vmatprep.subr.mxu0 0.0
      %3152 = vmatpush2.msra.mxu0 0.0
      %3153 = vmatprep.subr.mxu0 0.0
      %3154 = vmatpush2.msra.mxu0 0.0
      %3155 = vmatprep.subr.mxu0 0.0
      %3156 = vmatpush2.msra.mxu0 0.0
      %3157 = vmatprep.subr.mxu0 0.0
      %3158 = vmatpush2.msra.mxu0 0.0
      %3159 = vmatprep.subr.mxu0 0.0
      %3160 = vmatpush2.msra.mxu0 0.0
      %3161 = vmatprep.subr.mxu0 0.0
      %3162 = vmatpush2.msra.mxu0 0.0
      %3163 = vmatprep.subr.mxu0 0.0
      %3164 = vmatpush2.msra.mxu0 0.0
      %3165 = vmatprep.subr.mxu0 0.0
      %3166 = vmatpush2.msra.mxu0 0.0
      %3167 = vmatprep.subr.mxu0 0.0
      %3168 = vmatpush2.msra.mxu0 0.0
      %3169 = vmatprep.subr.mxu0 0.0
      %3170 = vmatpush2.msra.mxu0 0.0
      %3171 = vmatprep.subr.mxu0 0.0
      %3172 = vmatpush2.msra.mxu0 0.0
      %3173 = vmatprep.subr.mxu0 0.0
      %3174 = vmatpush2.msra.mxu0 0.0
      %3175 = vmatprep.subr.mxu0 0.0
      %3176 = vmatpush2.msra.mxu0 0.0
      %3177 = vmatprep.mubr.f32.mxu0 0.0
      %3178 = vmatmul.mubr.f32.gmra.mxu0 %v3078
      %v3179 = vpop.f32.mrf.mxu0
      %v3180 = vadd.f32 %v3020, %v3179
      %v3181 = vpop.f32.mrf.mxu0
      %v3182 = vadd.f32 %v3020, %v3181
      %3183 = vmatprep.mubr.f32.mxu0 0.0
      %3184 = vmatmul.mubr.f32.gmra.mxu0 %v3081
      %v3185 = vpop.f32.mrf.mxu0
      %v3186 = vadd.f32 %v3025, %v3185
      %v3187 = vpop.f32.mrf.mxu0
      %v3188 = vadd.f32 %v3025, %v3187
      %3189 = vmatprep.mubr.f32.mxu0 0.0
      %3190 = vmatmul.mubr.f32.gmra.mxu0 %v3084
      %v3191 = vpop.f32.mrf.mxu0
      %v3192 = vadd.f32 %v3030, %v3191
      %v3193 = vpop.f32.mrf.mxu0
      %v3194 = vadd.f32 %v3030, %v3193
      %3195 = vmatprep.mubr.f32.mxu0 0.0
      %3196 = vmatmul.mubr.f32.gmra.mxu0 %v3087
      %v3197 = vpop.f32.mrf.mxu0
      %v3198 = vadd.f32 %v3035, %v3197
      %v3199 = vpop.f32.mrf.mxu0
      %v3200 = vadd.f32 %v3035, %v3199
      %3201 = vmatprep.mubr.f32.mxu0 0.0
      %3202 = vmatmul.mubr.f32.gmra.mxu0 %v3090
      %v3203 = vpop.f32.mrf.mxu0
      %v3204 = vadd.f32 %v3040, %v3203
      %v3205 = vpop.f32.mrf.mxu0
      %v3206 = vadd.f32 %v3040, %v3205
      %3207 = vmatprep.mubr.f32.mxu0 0.0
      %3208 = vmatmul.mubr.f32.gmra.mxu0 %v3093
      %v3209 = vpop.f32.mrf.mxu0
      %v3210 = vadd.f32 %v3045, %v3209
      %v3211 = vpop.f32.mrf.mxu0
      %v3212 = vadd.f32 %v3045, %v3211
      %3213 = vmatprep.mubr.f32.mxu0 0.0
      %3214 = vmatmul.mubr.f32.gmra.mxu0 %v3096
      %v3215 = vpop.f32.mrf.mxu0
      %v3216 = vadd.f32 %v3050, %v3215
      %v3217 = vpop.f32.mrf.mxu0
      %v3218 = vadd.f32 %v3050, %v3217
      %3219 = vmatprep.mubr.f32.mxu0 0.0
      %3220 = vmatmul.mubr.f32.gmra.mxu0 %v3099
      %v3221 = vpop.f32.mrf.mxu0
      %v3222 = vadd.f32 %v3055, %v3221
      %v3223 = vpop.f32.mrf.mxu0
      %v3224 = vadd.f32 %v3055, %v3223
      %3225 = vmatprep.mubr.f32.mxu0 0.0
      %3226 = vmatmul.mubr.f32.gmra.mxu0 %v3102
      %v3227 = vpop.f32.mrf.mxu0
      %v3228 = vadd.f32 %v3060, %v3227
      %v3229 = vpop.f32.mrf.mxu0
      %v3230 = vadd.f32 %v3060, %v3229
      %3231 = vmatprep.mubr.f32.mxu0 0.0
      %3232 = vmatmul.mubr.f32.gmra.mxu0 %v3105
      %v3233 = vpop.f32.mrf.mxu0
      %v3234 = vadd.f32 %v3065, %v3233
      %v3235 = vpop.f32.mrf.mxu0
      %v3236 = vadd.f32 %v3065, %v3235
      %3237 = vmatprep.mubr.f32.mxu0 0.0
      %3238 = vmatmul.mubr.f32.gmra.mxu0 %v3108
      %v3239 = vpop.f32.mrf.mxu0
      %v3240 = vadd.f32 %v3070, %v3239
      %v3241 = vpop.f32.mrf.mxu0
      %v3242 = vadd.f32 %v3070, %v3241
      %3243 = vmatprep.mubr.f32.mxu0 0.0
      %3244 = vmatmul.mubr.f32.gmra.mxu0 %v3111
      %v3245 = vpop.f32.mrf.mxu0
      %v3246 = vadd.f32 %v3075, %v3245
      %v3247 = vpop.f32.mrf.mxu0
      %v3248 = vadd.f32 %v3075, %v3247
      %3249 = vdwg.mxu0
      %v3250 = vpack.c.bf16 %v3210, %v3204
      %v3251 = vpack.c.bf16 %v3212, %v3206
      %v3252 = vpack.c.bf16 %v3222, %v3216
      %v3253 = vpack.c.bf16 %v3224, %v3218
      %v3254 = vpack.c.bf16 %v3186, %v3180
      %v3255 = vpack.c.bf16 %v3188, %v3182
      %v3256 = vpack.c.bf16 %v3198, %v3192
      %v3257 = vpack.c.bf16 %v3200, %v3194
      %3258 = vxpose.xlu0.c.b16.start [1/8] %v3250, 128
      %3259 = vxpose.xlu0.c.b16.cont [2/8] %v3252, 128
      %3260 = vxpose.xlu0.c.b16.cont [3/8] 0, 128
      %3261 = vxpose.xlu0.c.b16.cont [4/8] 0, 128
      %3262 = vxpose.xlu0.c.b16.cont [5/8] 0, 128
      %3263 = vxpose.xlu0.c.b16.cont [6/8] 0, 128
      %3264 = vxpose.xlu0.c.b16.cont [7/8] 0, 128
      %3265 = vxpose.xlu0.c.b16.end [8/8] 0, 128
      %v3266 = vpop.trf.xlu0
      %v3267 = vpop.trf.xlu0
      %v3268 = vpop.trf.xlu0
      %v3269 = vpop.trf.xlu0
      %v3270 = vpop.trf.xlu0
      %v3271 = vpop.trf.xlu0
      %v3272 = vpop.trf.xlu0
      %v3273 = vpop.trf.xlu0
      %3274 = vxpose.xlu0.c.b16.start [1/8] %v3251, 128
      %3275 = vxpose.xlu0.c.b16.cont [2/8] %v3253, 128
      %3276 = vxpose.xlu0.c.b16.cont [3/8] 0, 128
      %3277 = vxpose.xlu0.c.b16.cont [4/8] 0, 128
      %3278 = vxpose.xlu0.c.b16.cont [5/8] 0, 128
      %3279 = vxpose.xlu0.c.b16.cont [6/8] 0, 128
      %3280 = vxpose.xlu0.c.b16.cont [7/8] 0, 128
      %3281 = vxpose.xlu0.c.b16.end [8/8] 0, 128
      %v3282 = vpop.trf.xlu0
      %v3283 = vpop.trf.xlu0
      %v3284 = vpop.trf.xlu0
      %v3285 = vpop.trf.xlu0
      %v3286 = vpop.trf.xlu0
      %v3287 = vpop.trf.xlu0
      %v3288 = vpop.trf.xlu0
      %v3289 = vpop.trf.xlu0
      %v3291 = vsel %vm506, %v3266, 0
      %v3294 = vsel %vm506, %v3267, 0
      %v3297 = vsel %vm506, %v3268, 0
      %v3300 = vsel %vm506, %v3269, 0
      %v3303 = vsel %vm506, %v3270, 0
      %v3306 = vsel %vm506, %v3271, 0
      %v3309 = vsel %vm506, %v3272, 0
      %v3312 = vsel %vm506, %v3273, 0
      %v3315 = vsel %vm506, %v3282, 0
      %v3318 = vsel %vm506, %v3283, 0
      %v3321 = vsel %vm506, %v3284, 0
      %v3324 = vsel %vm506, %v3285, 0
      %v3327 = vsel %vm506, %v3286, 0
      %v3330 = vsel %vm506, %v3287, 0
      %v3333 = vsel %vm506, %v3288, 0
      %v3336 = vsel %vm506, %v3289, 0
      %3338 = vmatprep.subr.bf16.mxu0 0
      %3339 = vmatpush1.bf16.msra.mxu0 0
      %3340 = vmatprep.subr.bf16.mxu0 0
      %3341 = vmatpush1.bf16.msra.mxu0 0
      %3342 = vmatprep.subr.bf16.mxu0 0
      %3343 = vmatpush1.bf16.msra.mxu0 0
      %3344 = vmatprep.subr.bf16.mxu0 0
      %3345 = vmatpush1.bf16.msra.mxu0 0
      %3346 = vmatprep.subr.bf16.mxu0 0
      %3347 = vmatpush1.bf16.msra.mxu0 0
      %3348 = vmatprep.subr.bf16.mxu0 0
      %3349 = vmatpush1.bf16.msra.mxu0 0
      %3350 = vmatprep.subr.bf16.mxu0 %v3257
      %3351 = vmatpush1.bf16.msra.mxu0 %v3256
      %3352 = vmatprep.subr.bf16.mxu0 %v3255
      %3353 = vmatpush1.bf16.msra.mxu0 %v3254
      %3354 = vmatprep.subr.bf16.mxu0 0
      %3355 = vmatpush2.bf16.msra.mxu0 0
      %3356 = vmatprep.subr.bf16.mxu0 0
      %3357 = vmatpush2.bf16.msra.mxu0 0
      %3358 = vmatprep.subr.bf16.mxu0 0
      %3359 = vmatpush2.bf16.msra.mxu0 0
      %3360 = vmatprep.subr.bf16.mxu0 0
      %3361 = vmatpush2.bf16.msra.mxu0 0
      %3362 = vmatprep.subr.bf16.mxu0 0
      %3363 = vmatpush2.bf16.msra.mxu0 0
      %3364 = vmatprep.subr.bf16.mxu0 0
      %3365 = vmatpush2.bf16.msra.mxu0 0
      %3366 = vmatprep.subr.bf16.mxu0 0
      %3367 = vmatpush2.bf16.msra.mxu0 0
      %3368 = vmatprep.subr.bf16.mxu0 0
      %3369 = vmatpush2.bf16.msra.mxu0 0
      %3370 = vmatprep.mubr.bf16.mxu0 0
      %3371 = vmatmul.mubr.bf16.gmra.mxu0 %v3291
      %v3372 = vpop.f32.mrf.mxu0
      %v3373 = vadd.f32 0.0, %v3372
      %v3374 = vpop.f32.mrf.mxu0
      %v3375 = vadd.f32 0.0, %v3374
      %v3376 = vpop.f32.mrf.mxu0
      %v3377 = vadd.f32 0.0, %v3376
      %v3378 = vpop.f32.mrf.mxu0
      %v3379 = vadd.f32 0.0, %v3378
      %3380 = vmatprep.mubr.bf16.mxu0 0
      %3381 = vmatmul.mubr.bf16.gmra.mxu0 %v3294
      %v3382 = vpop.f32.mrf.mxu0
      %v3383 = vadd.f32 0.0, %v3382
      %v3384 = vpop.f32.mrf.mxu0
      %v3385 = vadd.f32 0.0, %v3384
      %v3386 = vpop.f32.mrf.mxu0
      %v3387 = vadd.f32 0.0, %v3386
      %v3388 = vpop.f32.mrf.mxu0
      %v3389 = vadd.f32 0.0, %v3388
      %3390 = vmatprep.mubr.bf16.mxu0 0
      %3391 = vmatmul.mubr.bf16.gmra.mxu0 %v3297
      %v3392 = vpop.f32.mrf.mxu0
      %v3393 = vadd.f32 0.0, %v3392
      %v3394 = vpop.f32.mrf.mxu0
      %v3395 = vadd.f32 0.0, %v3394
      %v3396 = vpop.f32.mrf.mxu0
      %v3397 = vadd.f32 0.0, %v3396
      %v3398 = vpop.f32.mrf.mxu0
      %v3399 = vadd.f32 0.0, %v3398
      %3400 = vmatprep.mubr.bf16.mxu0 0
      %3401 = vmatmul.mubr.bf16.gmra.mxu0 %v3300
      %v3402 = vpop.f32.mrf.mxu0
      %v3403 = vadd.f32 0.0, %v3402
      %v3404 = vpop.f32.mrf.mxu0
      %v3405 = vadd.f32 0.0, %v3404
      %v3406 = vpop.f32.mrf.mxu0
      %v3407 = vadd.f32 0.0, %v3406
      %v3408 = vpop.f32.mrf.mxu0
      %v3409 = vadd.f32 0.0, %v3408
      %3410 = vmatprep.mubr.bf16.mxu0 0
      %3411 = vmatmul.mubr.bf16.gmra.mxu0 %v3303
      %v3412 = vpop.f32.mrf.mxu0
      %v3413 = vadd.f32 0.0, %v3412
      %v3414 = vpop.f32.mrf.mxu0
      %v3415 = vadd.f32 0.0, %v3414
      %v3416 = vpop.f32.mrf.mxu0
      %v3417 = vadd.f32 0.0, %v3416
      %v3418 = vpop.f32.mrf.mxu0
      %v3419 = vadd.f32 0.0, %v3418
      %3420 = vmatprep.mubr.bf16.mxu0 0
      %3421 = vmatmul.mubr.bf16.gmra.mxu0 %v3306
      %v3422 = vpop.f32.mrf.mxu0
      %v3423 = vadd.f32 0.0, %v3422
      %v3424 = vpop.f32.mrf.mxu0
      %v3425 = vadd.f32 0.0, %v3424
      %v3426 = vpop.f32.mrf.mxu0
      %v3427 = vadd.f32 0.0, %v3426
      %v3428 = vpop.f32.mrf.mxu0
      %v3429 = vadd.f32 0.0, %v3428
      %3430 = vmatprep.mubr.bf16.mxu0 0
      %3431 = vmatmul.mubr.bf16.gmra.mxu0 %v3309
      %v3432 = vpop.f32.mrf.mxu0
      %v3433 = vadd.f32 0.0, %v3432
      %v3434 = vpop.f32.mrf.mxu0
      %v3435 = vadd.f32 0.0, %v3434
      %v3436 = vpop.f32.mrf.mxu0
      %v3437 = vadd.f32 0.0, %v3436
      %v3438 = vpop.f32.mrf.mxu0
      %v3439 = vadd.f32 0.0, %v3438
      %3440 = vmatprep.mubr.bf16.mxu0 0
      %3441 = vmatmul.mubr.bf16.gmra.mxu0 %v3312
      %v3442 = vpop.f32.mrf.mxu0
      %v3443 = vadd.f32 0.0, %v3442
      %v3444 = vpop.f32.mrf.mxu0
      %v3445 = vadd.f32 0.0, %v3444
      %v3446 = vpop.f32.mrf.mxu0
      %v3447 = vadd.f32 0.0, %v3446
      %v3448 = vpop.f32.mrf.mxu0
      %v3449 = vadd.f32 0.0, %v3448
      %3450 = vmatprep.mubr.bf16.mxu0 0
      %3451 = vmatmul.mubr.bf16.gmra.mxu0 %v3315
      %v3452 = vpop.f32.mrf.mxu0
      %v3453 = vadd.f32 0.0, %v3452
      %v3454 = vpop.f32.mrf.mxu0
      %v3455 = vadd.f32 0.0, %v3454
      %v3456 = vpop.f32.mrf.mxu0
      %v3457 = vadd.f32 0.0, %v3456
      %v3458 = vpop.f32.mrf.mxu0
      %v3459 = vadd.f32 0.0, %v3458
      %3460 = vmatprep.mubr.bf16.mxu0 0
      %3461 = vmatmul.mubr.bf16.gmra.mxu0 %v3318
      %v3462 = vpop.f32.mrf.mxu0
      %v3463 = vadd.f32 0.0, %v3462
      %v3464 = vpop.f32.mrf.mxu0
      %v3465 = vadd.f32 0.0, %v3464
      %v3466 = vpop.f32.mrf.mxu0
      %v3467 = vadd.f32 0.0, %v3466
      %v3468 = vpop.f32.mrf.mxu0
      %v3469 = vadd.f32 0.0, %v3468
      %3470 = vmatprep.mubr.bf16.mxu0 0
      %3471 = vmatmul.mubr.bf16.gmra.mxu0 %v3321
      %v3472 = vpop.f32.mrf.mxu0
      %v3473 = vadd.f32 0.0, %v3472
      %v3474 = vpop.f32.mrf.mxu0
      %v3475 = vadd.f32 0.0, %v3474
      %v3476 = vpop.f32.mrf.mxu0
      %v3477 = vadd.f32 0.0, %v3476
      %v3478 = vpop.f32.mrf.mxu0
      %v3479 = vadd.f32 0.0, %v3478
      %3480 = vmatprep.mubr.bf16.mxu0 0
      %3481 = vmatmul.mubr.bf16.gmra.mxu0 %v3324
      %v3482 = vpop.f32.mrf.mxu0
      %v3483 = vadd.f32 0.0, %v3482
      %v3484 = vpop.f32.mrf.mxu0
      %v3485 = vadd.f32 0.0, %v3484
      %v3486 = vpop.f32.mrf.mxu0
      %v3487 = vadd.f32 0.0, %v3486
      %v3488 = vpop.f32.mrf.mxu0
      %v3489 = vadd.f32 0.0, %v3488
      %3490 = vmatprep.mubr.bf16.mxu0 0
      %3491 = vmatmul.mubr.bf16.gmra.mxu0 %v3327
      %v3492 = vpop.f32.mrf.mxu0
      %v3493 = vadd.f32 0.0, %v3492
      %v3494 = vpop.f32.mrf.mxu0
      %v3495 = vadd.f32 0.0, %v3494
      %v3496 = vpop.f32.mrf.mxu0
      %v3497 = vadd.f32 0.0, %v3496
      %v3498 = vpop.f32.mrf.mxu0
      %v3499 = vadd.f32 0.0, %v3498
      %3500 = vmatprep.mubr.bf16.mxu0 0
      %3501 = vmatmul.mubr.bf16.gmra.mxu0 %v3330
      %v3502 = vpop.f32.mrf.mxu0
      %v3503 = vadd.f32 0.0, %v3502
      %v3504 = vpop.f32.mrf.mxu0
      %v3505 = vadd.f32 0.0, %v3504
      %v3506 = vpop.f32.mrf.mxu0
      %v3507 = vadd.f32 0.0, %v3506
      %v3508 = vpop.f32.mrf.mxu0
      %v3509 = vadd.f32 0.0, %v3508
      %3510 = vmatprep.mubr.bf16.mxu0 0
      %3511 = vmatmul.mubr.bf16.gmra.mxu0 %v3333
      %v3512 = vpop.f32.mrf.mxu0
      %v3513 = vadd.f32 0.0, %v3512
      %v3514 = vpop.f32.mrf.mxu0
      %v3515 = vadd.f32 0.0, %v3514
      %v3516 = vpop.f32.mrf.mxu0
      %v3517 = vadd.f32 0.0, %v3516
      %v3518 = vpop.f32.mrf.mxu0
      %v3519 = vadd.f32 0.0, %v3518
      %3520 = vmatprep.mubr.bf16.mxu0 0
      %3521 = vmatmul.mubr.bf16.gmra.mxu0 %v3336
      %v3522 = vpop.f32.mrf.mxu0
      %v3523 = vadd.f32 0.0, %v3522
      %v3524 = vpop.f32.mrf.mxu0
      %v3525 = vadd.f32 0.0, %v3524
      %v3526 = vpop.f32.mrf.mxu0
      %v3527 = vadd.f32 0.0, %v3526
      %v3528 = vpop.f32.mrf.mxu0
      %v3529 = vadd.f32 0.0, %v3528
      %3530 = vdwg.mxu0
      %v3531 = vmax.f32 %v3373, %v3383
      %v3532 = vmax.f32 %v3377, %v3387
      %v3533 = vmax.f32 %v3531, %v3393
      %v3534 = vmax.f32 %v3532, %v3397
      %v3535 = vmax.f32 %v3533, %v3403
      %v3536 = vmax.f32 %v3534, %v3407
      %v3537 = vmax.f32 %v3535, %v3413
      %v3538 = vmax.f32 %v3536, %v3417
      %v3539 = vmax.f32 %v3537, %v3423
      %v3540 = vmax.f32 %v3538, %v3427
      %v3541 = vmax.f32 %v3539, %v3433
      %v3542 = vmax.f32 %v3540, %v3437
      %v3543 = vmax.f32 %v3541, %v3443
      %v3544 = vmax.f32 %v3542, %v3447
      %v3545 = vmax.f32 %v3543, %v3453
      %v3546 = vmax.f32 %v3544, %v3457
      %v3547 = vmax.f32 %v3545, %v3463
      %v3548 = vmax.f32 %v3546, %v3467
      %v3549 = vmax.f32 %v3547, %v3473
      %v3550 = vmax.f32 %v3548, %v3477
      %v3551 = vmax.f32 %v3549, %v3483
      %v3552 = vmax.f32 %v3550, %v3487
      %v3553 = vmax.f32 %v3551, %v3493
      %v3554 = vmax.f32 %v3552, %v3497
      %v3555 = vmax.f32 %v3553, %v3503
      %v3556 = vmax.f32 %v3554, %v3507
      %v3557 = vmax.f32 %v3555, %v3513
      %v3558 = vmax.f32 %v3556, %v3517
      %v3559 = vmax.f32 %v3557, %v3523
      %v3560 = vmax.f32 %v3558, %v3527
      %v3561 = vmax.f32 %v3559, %v3560
      %v3562 = vrot.slane %v3561, 4
      %v3563 = vmax.f32 %v3561, %v3562
      %v3564 = vrot.slane %v3563, 2
      %v3565 = vmax.f32 %v3563, %v3564
      %v3566 = vrot.slane %v3565, 1
      %v3567 = vmax.f32 %v3565, %v3566
      %v3568 = vmax.f32 %v3375, %v3385
      %v3569 = vmax.f32 %v3379, %v3389
      %v3570 = vmax.f32 %v3568, %v3395
      %v3571 = vmax.f32 %v3569, %v3399
      %v3572 = vmax.f32 %v3570, %v3405
      %v3573 = vmax.f32 %v3571, %v3409
      %v3574 = vmax.f32 %v3572, %v3415
      %v3575 = vmax.f32 %v3573, %v3419
      %v3576 = vmax.f32 %v3574, %v3425
      %v3577 = vmax.f32 %v3575, %v3429
      %v3578 = vmax.f32 %v3576, %v3435
      %v3579 = vmax.f32 %v3577, %v3439
      %v3580 = vmax.f32 %v3578, %v3445
      %v3581 = vmax.f32 %v3579, %v3449
      %v3582 = vmax.f32 %v3580, %v3455
      %v3583 = vmax.f32 %v3581, %v3459
      %v3584 = vmax.f32 %v3582, %v3465
      %v3585 = vmax.f32 %v3583, %v3469
      %v3586 = vmax.f32 %v3584, %v3475
      %v3587 = vmax.f32 %v3585, %v3479
      %v3588 = vmax.f32 %v3586, %v3485
      %v3589 = vmax.f32 %v3587, %v3489
      %v3590 = vmax.f32 %v3588, %v3495
      %v3591 = vmax.f32 %v3589, %v3499
      %v3592 = vmax.f32 %v3590, %v3505
      %v3593 = vmax.f32 %v3591, %v3509
      %v3594 = vmax.f32 %v3592, %v3515
      %v3595 = vmax.f32 %v3593, %v3519
      %v3596 = vmax.f32 %v3594, %v3525
      %v3597 = vmax.f32 %v3595, %v3529
      %v3598 = vmax.f32 %v3596, %v3597
      %v3599 = vrot.slane %v3598, 4
      %v3600 = vmax.f32 %v3598, %v3599
      %v3601 = vrot.slane %v3600, 2
      %v3602 = vmax.f32 %v3600, %v3601
      %v3603 = vrot.slane %v3602, 1
      %v3604 = vmax.f32 %v3602, %v3603
      %v3605 = vsub.f32 %v3373, %v3567
      %v3606 = vsub.f32 %v3375, %v3604
      %v3607 = vsub.f32 %v3377, %v3567
      %v3608 = vsub.f32 %v3379, %v3604
      %v3609 = vsub.f32 %v3383, %v3567
      %v3610 = vsub.f32 %v3385, %v3604
      %v3611 = vsub.f32 %v3387, %v3567
      %v3612 = vsub.f32 %v3389, %v3604
      %v3613 = vsub.f32 %v3393, %v3567
      %v3614 = vsub.f32 %v3395, %v3604
      %v3615 = vsub.f32 %v3397, %v3567
      %v3616 = vsub.f32 %v3399, %v3604
      %v3617 = vsub.f32 %v3403, %v3567
      %v3618 = vsub.f32 %v3405, %v3604
      %v3619 = vsub.f32 %v3407, %v3567
      %v3620 = vsub.f32 %v3409, %v3604
      %v3621 = vsub.f32 %v3413, %v3567
      %v3622 = vsub.f32 %v3415, %v3604
      %v3623 = vsub.f32 %v3417, %v3567
      %v3624 = vsub.f32 %v3419, %v3604
      %v3625 = vsub.f32 %v3423, %v3567
      %v3626 = vsub.f32 %v3425, %v3604
      %v3627 = vsub.f32 %v3427, %v3567
      %v3628 = vsub.f32 %v3429, %v3604
      %v3629 = vsub.f32 %v3433, %v3567
      %v3630 = vsub.f32 %v3435, %v3604
      %v3631 = vsub.f32 %v3437, %v3567
      %v3632 = vsub.f32 %v3439, %v3604
      %v3633 = vsub.f32 %v3443, %v3567
      %v3634 = vsub.f32 %v3445, %v3604
      %v3635 = vsub.f32 %v3447, %v3567
      %v3636 = vsub.f32 %v3449, %v3604
      %v3637 = vsub.f32 %v3453, %v3567
      %v3638 = vsub.f32 %v3455, %v3604
      %v3639 = vsub.f32 %v3457, %v3567
      %v3640 = vsub.f32 %v3459, %v3604
      %v3641 = vsub.f32 %v3463, %v3567
      %v3642 = vsub.f32 %v3465, %v3604
      %v3643 = vsub.f32 %v3467, %v3567
      %v3644 = vsub.f32 %v3469, %v3604
      %v3645 = vsub.f32 %v3473, %v3567
      %v3646 = vsub.f32 %v3475, %v3604
      %v3647 = vsub.f32 %v3477, %v3567
      %v3648 = vsub.f32 %v3479, %v3604
      %v3649 = vsub.f32 %v3483, %v3567
      %v3650 = vsub.f32 %v3485, %v3604
      %v3651 = vsub.f32 %v3487, %v3567
      %v3652 = vsub.f32 %v3489, %v3604
      %v3653 = vsub.f32 %v3493, %v3567
      %v3654 = vsub.f32 %v3495, %v3604
      %v3655 = vsub.f32 %v3497, %v3567
      %v3656 = vsub.f32 %v3499, %v3604
      %v3657 = vsub.f32 %v3503, %v3567
      %v3658 = vsub.f32 %v3505, %v3604
      %v3659 = vsub.f32 %v3507, %v3567
      %v3660 = vsub.f32 %v3509, %v3604
      %v3661 = vsub.f32 %v3513, %v3567
      %v3662 = vsub.f32 %v3515, %v3604
      %v3663 = vsub.f32 %v3517, %v3567
      %v3664 = vsub.f32 %v3519, %v3604
      %v3665 = vsub.f32 %v3523, %v3567
      %v3666 = vsub.f32 %v3525, %v3604
      %v3667 = vsub.f32 %v3527, %v3567
      %v3668 = vsub.f32 %v3529, %v3604
      %v3669 = vmul.f32 %v3605, 1.442695
      %v3670 = vpow.pop %v3669
      %v3671 = vmul.f32 %v3606, 1.442695
      %v3672 = vpow.pop %v3671
      %v3673 = vmul.f32 %v3607, 1.442695
      %v3674 = vpow.pop %v3673
      %v3675 = vmul.f32 %v3608, 1.442695
      %v3676 = vpow.pop %v3675
      %v3677 = vmul.f32 %v3609, 1.442695
      %v3678 = vpow.pop %v3677
      %v3679 = vmul.f32 %v3610, 1.442695
      %v3680 = vpow.pop %v3679
      %v3681 = vmul.f32 %v3611, 1.442695
      %v3682 = vpow.pop %v3681
      %v3683 = vmul.f32 %v3612, 1.442695
      %v3684 = vpow.pop %v3683
      %v3685 = vmul.f32 %v3613, 1.442695
      %v3686 = vpow.pop %v3685
      %v3687 = vmul.f32 %v3614, 1.442695
      %v3688 = vpow.pop %v3687
      %v3689 = vmul.f32 %v3615, 1.442695
      %v3690 = vpow.pop %v3689
      %v3691 = vmul.f32 %v3616, 1.442695
      %v3692 = vpow.pop %v3691
      %v3693 = vmul.f32 %v3617, 1.442695
      %v3694 = vpow.pop %v3693
      %v3695 = vmul.f32 %v3618, 1.442695
      %v3696 = vpow.pop %v3695
      %v3697 = vmul.f32 %v3619, 1.442695
      %v3698 = vpow.pop %v3697
      %v3699 = vmul.f32 %v3620, 1.442695
      %v3700 = vpow.pop %v3699
      %v3701 = vmul.f32 %v3621, 1.442695
      %v3702 = vpow.pop %v3701
      %v3703 = vmul.f32 %v3622, 1.442695
      %v3704 = vpow.pop %v3703
      %v3705 = vmul.f32 %v3623, 1.442695
      %v3706 = vpow.pop %v3705
      %v3707 = vmul.f32 %v3624, 1.442695
      %v3708 = vpow.pop %v3707
      %v3709 = vmul.f32 %v3625, 1.442695
      %v3710 = vpow.pop %v3709
      %v3711 = vmul.f32 %v3626, 1.442695
      %v3712 = vpow.pop %v3711
      %v3713 = vmul.f32 %v3627, 1.442695
      %v3714 = vpow.pop %v3713
      %v3715 = vmul.f32 %v3628, 1.442695
      %v3716 = vpow.pop %v3715
      %v3717 = vmul.f32 %v3629, 1.442695
      %v3718 = vpow.pop %v3717
      %v3719 = vmul.f32 %v3630, 1.442695
      %v3720 = vpow.pop %v3719
      %v3721 = vmul.f32 %v3631, 1.442695
      %v3722 = vpow.pop %v3721
      %v3723 = vmul.f32 %v3632, 1.442695
      %v3724 = vpow.pop %v3723
      %v3725 = vmul.f32 %v3633, 1.442695
      %v3726 = vpow.pop %v3725
      %v3727 = vmul.f32 %v3634, 1.442695
      %v3728 = vpow.pop %v3727
      %v3729 = vmul.f32 %v3635, 1.442695
      %v3730 = vpow.pop %v3729
      %v3731 = vmul.f32 %v3636, 1.442695
      %v3732 = vpow.pop %v3731
      %v3733 = vmul.f32 %v3637, 1.442695
      %v3734 = vpow.pop %v3733
      %v3735 = vmul.f32 %v3638, 1.442695
      %v3736 = vpow.pop %v3735
      %v3737 = vmul.f32 %v3639, 1.442695
      %v3738 = vpow.pop %v3737
      %v3739 = vmul.f32 %v3640, 1.442695
      %v3740 = vpow.pop %v3739
      %v3741 = vmul.f32 %v3641, 1.442695
      %v3742 = vpow.pop %v3741
      %v3743 = vmul.f32 %v3642, 1.442695
      %v3744 = vpow.pop %v3743
      %v3745 = vmul.f32 %v3643, 1.442695
      %v3746 = vpow.pop %v3745
      %v3747 = vmul.f32 %v3644, 1.442695
      %v3748 = vpow.pop %v3747
      %v3749 = vmul.f32 %v3645, 1.442695
      %v3750 = vpow.pop %v3749
      %v3751 = vmul.f32 %v3646, 1.442695
      %v3752 = vpow.pop %v3751
      %v3753 = vmul.f32 %v3647, 1.442695
      %v3754 = vpow.pop %v3753
      %v3755 = vmul.f32 %v3648, 1.442695
      %v3756 = vpow.pop %v3755
      %v3757 = vmul.f32 %v3649, 1.442695
      %v3758 = vpow.pop %v3757
      %v3759 = vmul.f32 %v3650, 1.442695
      %v3760 = vpow.pop %v3759
      %v3761 = vmul.f32 %v3651, 1.442695
      %v3762 = vpow.pop %v3761
      %v3763 = vmul.f32 %v3652, 1.442695
      %v3764 = vpow.pop %v3763
      %v3765 = vmul.f32 %v3653, 1.442695
      %v3766 = vpow.pop %v3765
      %v3767 = vmul.f32 %v3654, 1.442695
      %v3768 = vpow.pop %v3767
      %v3769 = vmul.f32 %v3655, 1.442695
      %v3770 = vpow.pop %v3769
      %v3771 = vmul.f32 %v3656, 1.442695
      %v3772 = vpow.pop %v3771
      %v3773 = vmul.f32 %v3657, 1.442695
      %v3774 = vpow.pop %v3773
      %v3775 = vmul.f32 %v3658, 1.442695
      %v3776 = vpow.pop %v3775
      %v3777 = vmul.f32 %v3659, 1.442695
      %v3778 = vpow.pop %v3777
      %v3779 = vmul.f32 %v3660, 1.442695
      %v3780 = vpow.pop %v3779
      %v3781 = vmul.f32 %v3661, 1.442695
      %v3782 = vpow.pop %v3781
      %v3783 = vmul.f32 %v3662, 1.442695
      %v3784 = vpow.pop %v3783
      %v3785 = vmul.f32 %v3663, 1.442695
      %v3786 = vpow.pop %v3785
      %v3787 = vmul.f32 %v3664, 1.442695
      %v3788 = vpow.pop %v3787
      %v3789 = vmul.f32 %v3665, 1.442695
      %v3790 = vpow.pop %v3789
      %v3791 = vmul.f32 %v3666, 1.442695
      %v3792 = vpow.pop %v3791
      %v3793 = vmul.f32 %v3667, 1.442695
      %v3794 = vpow.pop %v3793
      %v3795 = vmul.f32 %v3668, 1.442695
      %v3796 = vpow.pop %v3795
      %v3797 = vadd.f32 %v3670, %v3674
      %v3798 = vadd.f32 %v3797, %v3678
      %v3799 = vadd.f32 %v3798, %v3682
      %v3800 = vadd.f32 %v3799, %v3686
      %v3801 = vadd.f32 %v3800, %v3690
      %v3802 = vadd.f32 %v3801, %v3694
      %v3803 = vadd.f32 %v3802, %v3698
      %v3804 = vadd.f32 %v3803, %v3702
      %v3805 = vadd.f32 %v3804, %v3706
      %v3806 = vadd.f32 %v3805, %v3710
      %v3807 = vadd.f32 %v3806, %v3714
      %v3808 = vadd.f32 %v3807, %v3718
      %v3809 = vadd.f32 %v3808, %v3722
      %v3810 = vadd.f32 %v3809, %v3726
      %v3811 = vadd.f32 %v3810, %v3730
      %v3812 = vadd.f32 %v3811, %v3734
      %v3813 = vadd.f32 %v3812, %v3738
      %v3814 = vadd.f32 %v3813, %v3742
      %v3815 = vadd.f32 %v3814, %v3746
      %v3816 = vadd.f32 %v3815, %v3750
      %v3817 = vadd.f32 %v3816, %v3754
      %v3818 = vadd.f32 %v3817, %v3758
      %v3819 = vadd.f32 %v3818, %v3762
      %v3820 = vadd.f32 %v3819, %v3766
      %v3821 = vadd.f32 %v3820, %v3770
      %v3822 = vadd.f32 %v3821, %v3774
      %v3823 = vadd.f32 %v3822, %v3778
      %v3824 = vadd.f32 %v3823, %v3782
      %v3825 = vadd.f32 %v3824, %v3786
      %v3826 = vadd.f32 %v3825, %v3790
      %v3827 = vadd.f32 %v3826, %v3794
      %v3828 = vrot.slane %v3827, 4
      %v3829 = vadd.f32 %v3827, %v3828
      %v3830 = vrot.slane %v3829, 2
      %v3831 = vadd.f32 %v3829, %v3830
      %v3832 = vrot.slane %v3831, 1
      %v3833 = vadd.f32 %v3831, %v3832
      %v3834 = vadd.f32 %v3672, %v3676
      %v3835 = vadd.f32 %v3834, %v3680
      %v3836 = vadd.f32 %v3835, %v3684
      %v3837 = vadd.f32 %v3836, %v3688
      %v3838 = vadd.f32 %v3837, %v3692
      %v3839 = vadd.f32 %v3838, %v3696
      %v3840 = vadd.f32 %v3839, %v3700
      %v3841 = vadd.f32 %v3840, %v3704
      %v3842 = vadd.f32 %v3841, %v3708
      %v3843 = vadd.f32 %v3842, %v3712
      %v3844 = vadd.f32 %v3843, %v3716
      %v3845 = vadd.f32 %v3844, %v3720
      %v3846 = vadd.f32 %v3845, %v3724
      %v3847 = vadd.f32 %v3846, %v3728
      %v3848 = vadd.f32 %v3847, %v3732
      %v3849 = vadd.f32 %v3848, %v3736
      %v3850 = vadd.f32 %v3849, %v3740
      %v3851 = vadd.f32 %v3850, %v3744
      %v3852 = vadd.f32 %v3851, %v3748
      %v3853 = vadd.f32 %v3852, %v3752
      %v3854 = vadd.f32 %v3853, %v3756
      %v3855 = vadd.f32 %v3854, %v3760
      %v3856 = vadd.f32 %v3855, %v3764
      %v3857 = vadd.f32 %v3856, %v3768
      %v3858 = vadd.f32 %v3857, %v3772
      %v3859 = vadd.f32 %v3858, %v3776
      %v3860 = vadd.f32 %v3859, %v3780
      %v3861 = vadd.f32 %v3860, %v3784
      %v3862 = vadd.f32 %v3861, %v3788
      %v3863 = vadd.f32 %v3862, %v3792
      %v3864 = vadd.f32 %v3863, %v3796
      %v3865 = vrot.slane %v3864, 4
      %v3866 = vadd.f32 %v3864, %v3865
      %v3867 = vrot.slane %v3866, 2
      %v3868 = vadd.f32 %v3866, %v3867
      %v3869 = vrot.slane %v3868, 1
      %v3870 = vadd.f32 %v3868, %v3869
      %v3872 = vlaneseq
      %v3873 = vshrl.u32 %v3872, 7
      %v3874 = vsub.s32 0, %v3873
      %v3875 = vrot.slane %v2206, %v3874
      %v3876 = vlaneseq
      %v3877 = vshrl.u32 %v3876, 7
      %v3878 = vsub.s32 1, %v3877
      %v3879 = vrot.slane %v2206, %v3878
      %v3882 = vmul.f32 %v3228, %v3875
      %v3883 = vmul.f32 %v3230, %v3879
      %v3884 = vmul.f32 %v3234, %v3875
      %v3885 = vmul.f32 %v3236, %v3879
      %v3886 = vmul.f32 %v3240, %v3875
      %v3887 = vmul.f32 %v3242, %v3879
      %v3888 = vmul.f32 %v3246, %v3875
      %v3889 = vmul.f32 %v3248, %v3879
      %v3890 = vpack.c.bf16 %v3884, %v3882
      %v3891 = vpack.c.bf16 %v3885, %v3883
      %v3892 = vpack.c.bf16 %v3888, %v3886
      %v3893 = vpack.c.bf16 %v3889, %v3887
      %v3894 = vpack.c.bf16 %v3674, %v3670
      %v3895 = vpack.c.bf16 %v3676, %v3672
      %v3896 = vpack.c.bf16 %v3682, %v3678
      %v3897 = vpack.c.bf16 %v3684, %v3680
      %v3898 = vpack.c.bf16 %v3690, %v3686
      %v3899 = vpack.c.bf16 %v3692, %v3688
      %v3900 = vpack.c.bf16 %v3698, %v3694
      %v3901 = vpack.c.bf16 %v3700, %v3696
      %v3902 = vpack.c.bf16 %v3706, %v3702
      %v3903 = vpack.c.bf16 %v3708, %v3704
      %v3904 = vpack.c.bf16 %v3714, %v3710
      %v3905 = vpack.c.bf16 %v3716, %v3712
      %v3906 = vpack.c.bf16 %v3722, %v3718
      %v3907 = vpack.c.bf16 %v3724, %v3720
      %v3908 = vpack.c.bf16 %v3730, %v3726
      %v3909 = vpack.c.bf16 %v3732, %v3728
      %v3910 = vpack.c.bf16 %v3738, %v3734
      %v3911 = vpack.c.bf16 %v3740, %v3736
      %v3912 = vpack.c.bf16 %v3746, %v3742
      %v3913 = vpack.c.bf16 %v3748, %v3744
      %v3914 = vpack.c.bf16 %v3754, %v3750
      %v3915 = vpack.c.bf16 %v3756, %v3752
      %v3916 = vpack.c.bf16 %v3762, %v3758
      %v3917 = vpack.c.bf16 %v3764, %v3760
      %v3918 = vpack.c.bf16 %v3770, %v3766
      %v3919 = vpack.c.bf16 %v3772, %v3768
      %v3920 = vpack.c.bf16 %v3778, %v3774
      %v3921 = vpack.c.bf16 %v3780, %v3776
      %v3922 = vpack.c.bf16 %v3786, %v3782
      %v3923 = vpack.c.bf16 %v3788, %v3784
      %v3924 = vpack.c.bf16 %v3794, %v3790
      %v3925 = vpack.c.bf16 %v3796, %v3792
      %3926 = vmatprep.subr.bf16.mxu0 %v3909
      %3927 = vmatpush1.bf16.msra.mxu0 %v3908
      %3928 = vmatprep.subr.bf16.mxu0 %v3907
      %3929 = vmatpush1.bf16.msra.mxu0 %v3906
      %3930 = vmatprep.subr.bf16.mxu0 %v3905
      %3931 = vmatpush1.bf16.msra.mxu0 %v3904
      %3932 = vmatprep.subr.bf16.mxu0 %v3903
      %3933 = vmatpush1.bf16.msra.mxu0 %v3902
      %3934 = vmatprep.subr.bf16.mxu0 %v3901
      %3935 = vmatpush1.bf16.msra.mxu0 %v3900
      %3936 = vmatprep.subr.bf16.mxu0 %v3899
      %3937 = vmatpush1.bf16.msra.mxu0 %v3898
      %3938 = vmatprep.subr.bf16.mxu0 %v3897
      %3939 = vmatpush1.bf16.msra.mxu0 %v3896
      %3940 = vmatprep.subr.bf16.mxu0 %v3895
      %3941 = vmatpush1.bf16.msra.mxu0 %v3894
      %3942 = vmatprep.subr.bf16.mxu0 %v3925
      %3943 = vmatpush2.bf16.msra.mxu0 %v3924
      %3944 = vmatprep.subr.bf16.mxu0 %v3923
      %3945 = vmatpush2.bf16.msra.mxu0 %v3922
      %3946 = vmatprep.subr.bf16.mxu0 %v3921
      %3947 = vmatpush2.bf16.msra.mxu0 %v3920
      %3948 = vmatprep.subr.bf16.mxu0 %v3919
      %3949 = vmatpush2.bf16.msra.mxu0 %v3918
      %3950 = vmatprep.subr.bf16.mxu0 %v3917
      %3951 = vmatpush2.bf16.msra.mxu0 %v3916
      %3952 = vmatprep.subr.bf16.mxu0 %v3915
      %3953 = vmatpush2.bf16.msra.mxu0 %v3914
      %3954 = vmatprep.subr.bf16.mxu0 %v3913
      %3955 = vmatpush2.bf16.msra.mxu0 %v3912
      %3956 = vmatprep.subr.bf16.mxu0 %v3911
      %3957 = vmatpush2.bf16.msra.mxu0 %v3910
      %3958 = vmatprep.mubr.bf16.mxu0 %v3891
      %3959 = vmatmul.mubr.bf16.gmra.mxu0 %v3890
      %v3960 = vpop.f32.mrf.mxu0
      %v3961 = vadd.f32 0.0, %v3960
      %v3962 = vpop.f32.mrf.mxu0
      %v3963 = vadd.f32 0.0, %v3962
      %v3964 = vpop.f32.mrf.mxu0
      %v3965 = vadd.f32 0.0, %v3964
      %v3966 = vpop.f32.mrf.mxu0
      %v3967 = vadd.f32 0.0, %v3966
      %3968 = vmatprep.mubr.bf16.mxu0 %v3893
      %3969 = vmatmul.mubr.bf16.gmra.mxu0 %v3892
      %v3970 = vpop.f32.mrf.mxu0
      %v3971 = vadd.f32 0.0, %v3970
      %v3972 = vpop.f32.mrf.mxu0
      %v3973 = vadd.f32 0.0, %v3972
      %v3974 = vpop.f32.mrf.mxu0
      %v3975 = vadd.f32 0.0, %v3974
      %v3976 = vpop.f32.mrf.mxu0
      %v3977 = vadd.f32 0.0, %v3976
      %3978 = vdwg.mxu0
      %v3979 = vrcp.pop %v3833
      %v3980 = vrcp.pop %v3870
      %v3981 = vmul.f32 %v3961, %v3979
      %v3982 = vmul.f32 %v3963, %v3980
      %v3983 = vmul.f32 %v3965, %v3979
      %v3984 = vmul.f32 %v3967, %v3980
      %v3985 = vmul.f32 %v3971, %v3979
      %v3986 = vmul.f32 %v3973, %v3980
      %v3987 = vmul.f32 %v3975, %v3979
      %v3988 = vmul.f32 %v3977, %v3980
      %s3989 = scalar_lea.vmem %s2, 160
      %v3990 = vld [vmem:[%s3989] sm:$0xff]
      %v3991 = vld [vmem:[%s3989 + $0x8] sm:$0xff]
      %v3992 = vld [vmem:[%s3989 + $0x10] sm:$0xff]
      %v3993 = vld [vmem:[%s3989 + $0x18] sm:$0xff]
      %3994 = vset.pattern.permute.xlu0 17
      %3995 = vperm.xlu0 %3994, %v278
      %v3996 = vpop.permute.xlu0 %3995
      %3998 = vset.pattern.permute.xlu0 17
      %3999 = vperm.xlu0 %3998, %v279
      %v4000 = vpop.permute.xlu0 %3999
      %4002 = vset.pattern.permute.xlu0 17
      %4003 = vperm.xlu0 %4002, %v280
      %v4004 = vpop.permute.xlu0 %4003
      %4006 = vset.pattern.permute.xlu0 17
      %4007 = vperm.xlu0 %4006, %v281
      %v4008 = vpop.permute.xlu0 %4007
      %v4011 = vsel %vm506, %v3990, 0
      %v4014 = vsel %vm506, %v3991, 0
      %v4017 = vsel %vm506, %v3992, 0
      %v4020 = vsel %vm506, %v3993, 0
      %4022 = vmatprep.subr.mxu0 0.0
      %4023 = vmatpush1.msra.mxu0 0.0
      %4024 = vmatprep.subr.mxu0 0.0
      %4025 = vmatpush1.msra.mxu0 0.0
      %4026 = vmatprep.subr.mxu0 0.0
      %4027 = vmatpush1.msra.mxu0 0.0
      %4028 = vmatprep.subr.mxu0 0.0
      %4029 = vmatpush1.msra.mxu0 0.0
      %4030 = vmatprep.subr.mxu0 0.0
      %4031 = vmatpush1.msra.mxu0 0.0
      %4032 = vmatprep.subr.mxu0 0.0
      %4033 = vmatpush1.msra.mxu0 0.0
      %4034 = vmatprep.subr.mxu0 0.0
      %4035 = vmatpush1.msra.mxu0 0.0
      %4036 = vmatprep.subr.mxu0 0.0
      %4037 = vmatpush1.msra.mxu0 0.0
      %4038 = vmatprep.subr.mxu0 0.0
      %4039 = vmatpush1.msra.mxu0 0.0
      %4040 = vmatprep.subr.mxu0 0.0
      %4041 = vmatpush1.msra.mxu0 0.0
      %4042 = vmatprep.subr.mxu0 0.0
      %4043 = vmatpush1.msra.mxu0 0.0
      %4044 = vmatprep.subr.mxu0 0.0
      %4045 = vmatpush1.msra.mxu0 0.0
      %4046 = vmatprep.subr.mxu0 %v3988
      %4047 = vmatpush1.msra.mxu0 %v3987
      %4048 = vmatprep.subr.mxu0 %v3986
      %4049 = vmatpush1.msra.mxu0 %v3985
      %4050 = vmatprep.subr.mxu0 %v3984
      %4051 = vmatpush1.msra.mxu0 %v3983
      %4052 = vmatprep.subr.mxu0 %v3982
      %4053 = vmatpush1.msra.mxu0 %v3981
      %4054 = vmatprep.subr.mxu0 0.0
      %4055 = vmatpush2.msra.mxu0 0.0
      %4056 = vmatprep.subr.mxu0 0.0
      %4057 = vmatpush2.msra.mxu0 0.0
      %4058 = vmatprep.subr.mxu0 0.0
      %4059 = vmatpush2.msra.mxu0 0.0
      %4060 = vmatprep.subr.mxu0 0.0
      %4061 = vmatpush2.msra.mxu0 0.0
      %4062 = vmatprep.subr.mxu0 0.0
      %4063 = vmatpush2.msra.mxu0 0.0
      %4064 = vmatprep.subr.mxu0 0.0
      %4065 = vmatpush2.msra.mxu0 0.0
      %4066 = vmatprep.subr.mxu0 0.0
      %4067 = vmatpush2.msra.mxu0 0.0
      %4068 = vmatprep.subr.mxu0 0.0
      %4069 = vmatpush2.msra.mxu0 0.0
      %4070 = vmatprep.subr.mxu0 0.0
      %4071 = vmatpush2.msra.mxu0 0.0
      %4072 = vmatprep.subr.mxu0 0.0
      %4073 = vmatpush2.msra.mxu0 0.0
      %4074 = vmatprep.subr.mxu0 0.0
      %4075 = vmatpush2.msra.mxu0 0.0
      %4076 = vmatprep.subr.mxu0 0.0
      %4077 = vmatpush2.msra.mxu0 0.0
      %4078 = vmatprep.subr.mxu0 0.0
      %4079 = vmatpush2.msra.mxu0 0.0
      %4080 = vmatprep.subr.mxu0 0.0
      %4081 = vmatpush2.msra.mxu0 0.0
      %4082 = vmatprep.subr.mxu0 0.0
      %4083 = vmatpush2.msra.mxu0 0.0
      %4084 = vmatprep.subr.mxu0 0.0
      %4085 = vmatpush2.msra.mxu0 0.0
      %4086 = vmatprep.mubr.f32.mxu0 0.0
      %4087 = vmatmul.mubr.f32.gmra.mxu0 %v4011
      %v4088 = vpop.f32.mrf.mxu0
      %v4089 = vadd.f32 %v3996, %v4088
      %v4090 = vpop.f32.mrf.mxu0
      %v4091 = vadd.f32 %v3996, %v4090
      %4092 = vmatprep.mubr.f32.mxu0 0.0
      %4093 = vmatmul.mubr.f32.gmra.mxu0 %v4014
      %v4094 = vpop.f32.mrf.mxu0
      %v4095 = vadd.f32 %v4000, %v4094
      %v4096 = vpop.f32.mrf.mxu0
      %v4097 = vadd.f32 %v4000, %v4096
      %4098 = vmatprep.mubr.f32.mxu0 0.0
      %4099 = vmatmul.mubr.f32.gmra.mxu0 %v4017
      %v4100 = vpop.f32.mrf.mxu0
      %v4101 = vadd.f32 %v4004, %v4100
      %v4102 = vpop.f32.mrf.mxu0
      %v4103 = vadd.f32 %v4004, %v4102
      %4104 = vmatprep.mubr.f32.mxu0 0.0
      %4105 = vmatmul.mubr.f32.gmra.mxu0 %v4020
      %v4106 = vpop.f32.mrf.mxu0
      %v4107 = vadd.f32 %v4008, %v4106
      %v4108 = vpop.f32.mrf.mxu0
      %v4109 = vadd.f32 %v4008, %v4108
      %4110 = vdwg.mxu0
      %v4111 = vadd.f32 %v2843, %v4089
      %v4112 = vadd.f32 %v2844, %v4091
      %v4113 = vadd.f32 %v2845, %v4095
      %v4114 = vadd.f32 %v2846, %v4097
      %v4115 = vadd.f32 %v2847, %v4101
      %v4116 = vadd.f32 %v2848, %v4103
      %v4117 = vadd.f32 %v2849, %v4107
      %v4118 = vadd.f32 %v2850, %v4109
      %v4119 = vadd.f32 %v4111, %v4112
      %4120 = vadd.xlane.f32.xlu0 %v4119
      %v4121 = vpop.xlane.xlu0 %4120
      %v4122 = vadd.f32 %v4113, %v4114
      %4123 = vadd.xlane.f32.xlu0 %v4122
      %v4124 = vpop.xlane.xlu0 %4123
      %v4125 = vadd.f32 %v4115, %v4116
      %4126 = vadd.xlane.f32.xlu0 %v4125
      %v4127 = vpop.xlane.xlu0 %4126
      %v4128 = vadd.f32 %v4117, %v4118
      %4129 = vadd.xlane.f32.xlu0 %v4128
      %v4130 = vpop.xlane.xlu0 %4129
      %v4131 = vmul.f32 %v4111, %v4111
      %v4132 = vmul.f32 %v4112, %v4112
      %v4133 = vmul.f32 %v4113, %v4113
      %v4134 = vmul.f32 %v4114, %v4114
      %v4135 = vmul.f32 %v4115, %v4115
      %v4136 = vmul.f32 %v4116, %v4116
      %v4137 = vmul.f32 %v4117, %v4117
      %v4138 = vmul.f32 %v4118, %v4118
      %v4139 = vadd.f32 %v4131, %v4132
      %4140 = vadd.xlane.f32.xlu0 %v4139
      %v4141 = vpop.xlane.xlu0 %4140
      %v4142 = vadd.f32 %v4133, %v4134
      %4143 = vadd.xlane.f32.xlu0 %v4142
      %v4144 = vpop.xlane.xlu0 %4143
      %v4145 = vadd.f32 %v4135, %v4136
      %4146 = vadd.xlane.f32.xlu0 %v4145
      %v4147 = vpop.xlane.xlu0 %4146
      %v4148 = vadd.f32 %v4137, %v4138
      %4149 = vadd.xlane.f32.xlu0 %v4148
      %v4150 = vpop.xlane.xlu0 %4149
      %v4151 = vmul.f32 %v4121, 0.00390625
      %v4152 = vmul.f32 %v4124, 0.00390625
      %v4153 = vmul.f32 %v4127, 0.00390625
      %v4154 = vmul.f32 %v4130, 0.00390625
      %v4155 = vmul.f32 %v4141, 0.00390625
      %v4156 = vmul.f32 %v4144, 0.00390625
      %v4157 = vmul.f32 %v4147, 0.00390625
      %v4158 = vmul.f32 %v4150, 0.00390625
      %v4159 = vmul.f32 %v4151, %v4151
      %v4160 = vmul.f32 %v4152, %v4152
      %v4161 = vmul.f32 %v4153, %v4153
      %v4162 = vmul.f32 %v4154, %v4154
      %v4163 = vsub.f32 %v4155, %v4159
      %v4164 = vsub.f32 %v4156, %v4160
      %v4165 = vsub.f32 %v4157, %v4161
      %v4166 = vsub.f32 %v4158, %v4162
      %v4167 = vadd.f32 %v4163, 1e-06
      %v4168 = vadd.f32 %v4164, 1e-06
      %v4169 = vadd.f32 %v4165, 1e-06
      %v4170 = vadd.f32 %v4166, 1e-06
      %v4171 = vrsqrt.pop %v4167
      %v4172 = vrsqrt.pop %v4168
      %v4173 = vrsqrt.pop %v4169
      %v4174 = vrsqrt.pop %v4170
      %v4175 = vmul.f32 %v4171, %v278
      %v4176 = vmul.f32 %v4172, %v279
      %v4177 = vmul.f32 %v4173, %v280
      %v4178 = vmul.f32 %v4174, %v281
      %v4179 = vmul.f32 %v4151, %v4175
      %v4180 = vmul.f32 %v4152, %v4176
      %v4181 = vmul.f32 %v4153, %v4177
      %v4182 = vmul.f32 %v4154, %v4178
      %4187 = vrot.lane.b32.xlu0 %v4179, 1
      %v4188 = vpop.permute.xlu0 %4187
      %4189 = vrot.lane.b32.xlu0 %v4180, 1
      %v4190 = vpop.permute.xlu0 %4189
      %4191 = vrot.lane.b32.xlu0 %v4181, 1
      %v4192 = vpop.permute.xlu0 %4191
      %4193 = vrot.lane.b32.xlu0 %v4182, 1
      %v4194 = vpop.permute.xlu0 %4193
      %v4199 = vsub.f32 %v278, %v4188
      %v4200 = vsub.f32 %v279, %v4190
      %v4201 = vsub.f32 %v280, %v4192
      %v4202 = vsub.f32 %v281, %v4194
      %4204 = vset.pattern.permute.xlu0 18
      %4205 = vperm.xlu0 %4204, %v4175
      %v4206 = vpop.permute.xlu0 %4205
      %4209 = vset.pattern.permute.xlu0 18
      %4210 = vperm.xlu0 %4209, %v4176
      %v4211 = vpop.permute.xlu0 %4210
      %4214 = vset.pattern.permute.xlu0 18
      %4215 = vperm.xlu0 %4214, %v4177
      %v4216 = vpop.permute.xlu0 %4215
      %4219 = vset.pattern.permute.xlu0 18
      %4220 = vperm.xlu0 %4219, %v4178
      %v4221 = vpop.permute.xlu0 %4220
      %v4223 = vmul.f32 %v4111, %v4206
      %v4224 = vmul.f32 %v4112, %v4206
      %v4225 = vmul.f32 %v4113, %v4211
      %v4226 = vmul.f32 %v4114, %v4211
      %v4227 = vmul.f32 %v4115, %v4216
      %v4228 = vmul.f32 %v4116, %v4216
      %v4229 = vmul.f32 %v4117, %v4221
      %v4230 = vmul.f32 %v4118, %v4221
      %4232 = vset.pattern.permute.xlu0 19
      %4233 = vperm.xlu0 %4232, %v4199
      %v4234 = vpop.permute.xlu0 %4233
      %4237 = vset.pattern.permute.xlu0 19
      %4238 = vperm.xlu0 %4237, %v4200
      %v4239 = vpop.permute.xlu0 %4238
      %4242 = vset.pattern.permute.xlu0 19
      %4243 = vperm.xlu0 %4242, %v4201
      %v4244 = vpop.permute.xlu0 %4243
      %4247 = vset.pattern.permute.xlu0 19
      %4248 = vperm.xlu0 %4247, %v4202
      %v4249 = vpop.permute.xlu0 %4248
      %v4251 = vadd.f32 %v4223, %v4234
      %v4252 = vadd.f32 %v4224, %v4234
      %v4253 = vadd.f32 %v4225, %v4239
      %v4254 = vadd.f32 %v4226, %v4239
      %v4255 = vadd.f32 %v4227, %v4244
      %v4256 = vadd.f32 %v4228, %v4244
      %v4257 = vadd.f32 %v4229, %v4249
      %v4258 = vadd.f32 %v4230, %v4249
      %v4259 = vxor.u32 %v4251, 2147483648
      %v4260 = vxor.u32 %v4252, 2147483648
      %v4261 = vxor.u32 %v4253, 2147483648
      %v4262 = vxor.u32 %v4254, 2147483648
      %v4263 = vxor.u32 %v4255, 2147483648
      %v4264 = vxor.u32 %v4256, 2147483648
      %v4265 = vxor.u32 %v4257, 2147483648
      %v4266 = vxor.u32 %v4258, 2147483648
      %v4267 = vmul.f32 %v4259, 1.442695
      %v4268 = vpow.pop %v4267
      %v4269 = vmul.f32 %v4260, 1.442695
      %v4270 = vpow.pop %v4269
      %v4271 = vmul.f32 %v4261, 1.442695
      %v4272 = vpow.pop %v4271
      %v4273 = vmul.f32 %v4262, 1.442695
      %v4274 = vpow.pop %v4273
      %v4275 = vmul.f32 %v4263, 1.442695
      %v4276 = vpow.pop %v4275
      %v4277 = vmul.f32 %v4264, 1.442695
      %v4278 = vpow.pop %v4277
      %v4279 = vmul.f32 %v4265, 1.442695
      %v4280 = vpow.pop %v4279
      %v4281 = vmul.f32 %v4266, 1.442695
      %v4282 = vpow.pop %v4281
      %v4283 = vadd.f32 %v4268, 1.0
      %v4284 = vadd.f32 %v4270, 1.0
      %v4285 = vadd.f32 %v4272, 1.0
      %v4286 = vadd.f32 %v4274, 1.0
      %v4287 = vadd.f32 %v4276, 1.0
      %v4288 = vadd.f32 %v4278, 1.0
      %v4289 = vadd.f32 %v4280, 1.0
      %v4290 = vadd.f32 %v4282, 1.0
      %v4291 = vrcp.pop %v4283
      %v4292 = vmul.f32 1.0, %v4291
      %v4293 = vrcp.pop %v4284
      %v4294 = vmul.f32 1.0, %v4293
      %v4295 = vrcp.pop %v4285
      %v4296 = vmul.f32 1.0, %v4295
      %v4297 = vrcp.pop %v4286
      %v4298 = vmul.f32 1.0, %v4297
      %v4299 = vrcp.pop %v4287
      %v4300 = vmul.f32 1.0, %v4299
      %v4301 = vrcp.pop %v4288
      %v4302 = vmul.f32 1.0, %v4301
      %v4303 = vrcp.pop %v4289
      %v4304 = vmul.f32 1.0, %v4303
      %v4305 = vrcp.pop %v4290
      %v4306 = vmul.f32 1.0, %v4305
      %v4307 = vmul.f32 %v4251, %v4292
      %v4308 = vmul.f32 %v4252, %v4294
      %v4309 = vmul.f32 %v4253, %v4296
      %v4310 = vmul.f32 %v4254, %v4298
      %v4311 = vmul.f32 %v4255, %v4300
      %v4312 = vmul.f32 %v4256, %v4302
      %v4313 = vmul.f32 %v4257, %v4304
      %v4314 = vmul.f32 %v4258, %v4306
      %s4315 = scalar_lea.vmem %s2, 192
      %v4316 = vld [vmem:[%s4315] sm:$0xff]
      %v4317 = vld [vmem:[%s4315 + $0x8] sm:$0xff]
      %v4318 = vld [vmem:[%s4315 + $0x10] sm:$0xff]
      %v4319 = vld [vmem:[%s4315 + $0x18] sm:$0xff]
      %4320 = vset.pattern.permute.xlu0 20
      %4321 = vperm.xlu0 %4320, %v278
      %v4322 = vpop.permute.xlu0 %4321
      %4324 = vset.pattern.permute.xlu0 20
      %4325 = vperm.xlu0 %4324, %v279
      %v4326 = vpop.permute.xlu0 %4325
      %4328 = vset.pattern.permute.xlu0 20
      %4329 = vperm.xlu0 %4328, %v280
      %v4330 = vpop.permute.xlu0 %4329
      %4332 = vset.pattern.permute.xlu0 20
      %4333 = vperm.xlu0 %4332, %v281
      %v4334 = vpop.permute.xlu0 %4333
      %v4337 = vsel %vm506, %v4316, 0
      %v4340 = vsel %vm506, %v4317, 0
      %v4343 = vsel %vm506, %v4318, 0
      %v4346 = vsel %vm506, %v4319, 0
      %4348 = vmatprep.subr.mxu0 0.0
      %4349 = vmatpush1.msra.mxu0 0.0
      %4350 = vmatprep.subr.mxu0 0.0
      %4351 = vmatpush1.msra.mxu0 0.0
      %4352 = vmatprep.subr.mxu0 0.0
      %4353 = vmatpush1.msra.mxu0 0.0
      %4354 = vmatprep.subr.mxu0 0.0
      %4355 = vmatpush1.msra.mxu0 0.0
      %4356 = vmatprep.subr.mxu0 0.0
      %4357 = vmatpush1.msra.mxu0 0.0
      %4358 = vmatprep.subr.mxu0 0.0
      %4359 = vmatpush1.msra.mxu0 0.0
      %4360 = vmatprep.subr.mxu0 0.0
      %4361 = vmatpush1.msra.mxu0 0.0
      %4362 = vmatprep.subr.mxu0 0.0
      %4363 = vmatpush1.msra.mxu0 0.0
      %4364 = vmatprep.subr.mxu0 0.0
      %4365 = vmatpush1.msra.mxu0 0.0
      %4366 = vmatprep.subr.mxu0 0.0
      %4367 = vmatpush1.msra.mxu0 0.0
      %4368 = vmatprep.subr.mxu0 0.0
      %4369 = vmatpush1.msra.mxu0 0.0
      %4370 = vmatprep.subr.mxu0 0.0
      %4371 = vmatpush1.msra.mxu0 0.0
      %4372 = vmatprep.subr.mxu0 %v4314
      %4373 = vmatpush1.msra.mxu0 %v4313
      %4374 = vmatprep.subr.mxu0 %v4312
      %4375 = vmatpush1.msra.mxu0 %v4311
      %4376 = vmatprep.subr.mxu0 %v4310
      %4377 = vmatpush1.msra.mxu0 %v4309
      %4378 = vmatprep.subr.mxu0 %v4308
      %4379 = vmatpush1.msra.mxu0 %v4307
      %4380 = vmatprep.subr.mxu0 0.0
      %4381 = vmatpush2.msra.mxu0 0.0
      %4382 = vmatprep.subr.mxu0 0.0
      %4383 = vmatpush2.msra.mxu0 0.0
      %4384 = vmatprep.subr.mxu0 0.0
      %4385 = vmatpush2.msra.mxu0 0.0
      %4386 = vmatprep.subr.mxu0 0.0
      %4387 = vmatpush2.msra.mxu0 0.0
      %4388 = vmatprep.subr.mxu0 0.0
      %4389 = vmatpush2.msra.mxu0 0.0
      %4390 = vmatprep.subr.mxu0 0.0
      %4391 = vmatpush2.msra.mxu0 0.0
      %4392 = vmatprep.subr.mxu0 0.0
      %4393 = vmatpush2.msra.mxu0 0.0
      %4394 = vmatprep.subr.mxu0 0.0
      %4395 = vmatpush2.msra.mxu0 0.0
      %4396 = vmatprep.subr.mxu0 0.0
      %4397 = vmatpush2.msra.mxu0 0.0
      %4398 = vmatprep.subr.mxu0 0.0
      %4399 = vmatpush2.msra.mxu0 0.0
      %4400 = vmatprep.subr.mxu0 0.0
      %4401 = vmatpush2.msra.mxu0 0.0
      %4402 = vmatprep.subr.mxu0 0.0
      %4403 = vmatpush2.msra.mxu0 0.0
      %4404 = vmatprep.subr.mxu0 0.0
      %4405 = vmatpush2.msra.mxu0 0.0
      %4406 = vmatprep.subr.mxu0 0.0
      %4407 = vmatpush2.msra.mxu0 0.0
      %4408 = vmatprep.subr.mxu0 0.0
      %4409 = vmatpush2.msra.mxu0 0.0
      %4410 = vmatprep.subr.mxu0 0.0
      %4411 = vmatpush2.msra.mxu0 0.0
      %4412 = vmatprep.mubr.f32.mxu0 0.0
      %4413 = vmatmul.mubr.f32.gmra.mxu0 %v4337
      %v4414 = vpop.f32.mrf.mxu0
      %v4415 = vadd.f32 %v4322, %v4414
      %v4416 = vpop.f32.mrf.mxu0
      %v4417 = vadd.f32 %v4322, %v4416
      %4418 = vmatprep.mubr.f32.mxu0 0.0
      %4419 = vmatmul.mubr.f32.gmra.mxu0 %v4340
      %v4420 = vpop.f32.mrf.mxu0
      %v4421 = vadd.f32 %v4326, %v4420
      %v4422 = vpop.f32.mrf.mxu0
      %v4423 = vadd.f32 %v4326, %v4422
      %4424 = vmatprep.mubr.f32.mxu0 0.0
      %4425 = vmatmul.mubr.f32.gmra.mxu0 %v4343
      %v4426 = vpop.f32.mrf.mxu0
      %v4427 = vadd.f32 %v4330, %v4426
      %v4428 = vpop.f32.mrf.mxu0
      %v4429 = vadd.f32 %v4330, %v4428
      %4430 = vmatprep.mubr.f32.mxu0 0.0
      %4431 = vmatmul.mubr.f32.gmra.mxu0 %v4346
      %v4432 = vpop.f32.mrf.mxu0
      %v4433 = vadd.f32 %v4334, %v4432
      %v4434 = vpop.f32.mrf.mxu0
      %v4435 = vadd.f32 %v4334, %v4434
      %4436 = vdwg.mxu0
      %v4437 = vadd.f32 %v4415, %v4417
      %4438 = vadd.xlane.f32.xlu0 %v4437
      %v4439 = vpop.xlane.xlu0 %4438
      %v4440 = vadd.f32 %v4421, %v4423
      %4441 = vadd.xlane.f32.xlu0 %v4440
      %v4442 = vpop.xlane.xlu0 %4441
      %v4443 = vadd.f32 %v4427, %v4429
      %4444 = vadd.xlane.f32.xlu0 %v4443
      %v4445 = vpop.xlane.xlu0 %4444
      %v4446 = vadd.f32 %v4433, %v4435
      %4447 = vadd.xlane.f32.xlu0 %v4446
      %v4448 = vpop.xlane.xlu0 %4447
      %v4449 = vmul.f32 %v4415, %v4415
      %v4450 = vmul.f32 %v4417, %v4417
      %v4451 = vmul.f32 %v4421, %v4421
      %v4452 = vmul.f32 %v4423, %v4423
      %v4453 = vmul.f32 %v4427, %v4427
      %v4454 = vmul.f32 %v4429, %v4429
      %v4455 = vmul.f32 %v4433, %v4433
      %v4456 = vmul.f32 %v4435, %v4435
      %v4457 = vadd.f32 %v4449, %v4450
      %4458 = vadd.xlane.f32.xlu0 %v4457
      %v4459 = vpop.xlane.xlu0 %4458
      %v4460 = vadd.f32 %v4451, %v4452
      %4461 = vadd.xlane.f32.xlu0 %v4460
      %v4462 = vpop.xlane.xlu0 %4461
      %v4463 = vadd.f32 %v4453, %v4454
      %4464 = vadd.xlane.f32.xlu0 %v4463
      %v4465 = vpop.xlane.xlu0 %4464
      %v4466 = vadd.f32 %v4455, %v4456
      %4467 = vadd.xlane.f32.xlu0 %v4466
      %v4468 = vpop.xlane.xlu0 %4467
      %v4469 = vmul.f32 %v4439, 0.00390625
      %v4470 = vmul.f32 %v4442, 0.00390625
      %v4471 = vmul.f32 %v4445, 0.00390625
      %v4472 = vmul.f32 %v4448, 0.00390625
      %v4473 = vmul.f32 %v4459, 0.00390625
      %v4474 = vmul.f32 %v4462, 0.00390625
      %v4475 = vmul.f32 %v4465, 0.00390625
      %v4476 = vmul.f32 %v4468, 0.00390625
      %v4477 = vmul.f32 %v4469, %v4469
      %v4478 = vmul.f32 %v4470, %v4470
      %v4479 = vmul.f32 %v4471, %v4471
      %v4480 = vmul.f32 %v4472, %v4472
      %v4481 = vsub.f32 %v4473, %v4477
      %v4482 = vsub.f32 %v4474, %v4478
      %v4483 = vsub.f32 %v4475, %v4479
      %v4484 = vsub.f32 %v4476, %v4480
      %v4485 = vadd.f32 %v4481, 1e-06
      %v4486 = vadd.f32 %v4482, 1e-06
      %v4487 = vadd.f32 %v4483, 1e-06
      %v4488 = vadd.f32 %v4484, 1e-06
      %v4489 = vrsqrt.pop %v4485
      %v4490 = vrsqrt.pop %v4486
      %v4491 = vrsqrt.pop %v4487
      %v4492 = vrsqrt.pop %v4488
      %v4493 = vmul.f32 %v4489, %v278
      %v4494 = vmul.f32 %v4490, %v279
      %v4495 = vmul.f32 %v4491, %v280
      %v4496 = vmul.f32 %v4492, %v281
      %v4497 = vmul.f32 %v4469, %v4493
      %v4498 = vmul.f32 %v4470, %v4494
      %v4499 = vmul.f32 %v4471, %v4495
      %v4500 = vmul.f32 %v4472, %v4496
      %4505 = vrot.lane.b32.xlu0 %v4497, 1
      %v4506 = vpop.permute.xlu0 %4505
      %4507 = vrot.lane.b32.xlu0 %v4498, 1
      %v4508 = vpop.permute.xlu0 %4507
      %4509 = vrot.lane.b32.xlu0 %v4499, 1
      %v4510 = vpop.permute.xlu0 %4509
      %4511 = vrot.lane.b32.xlu0 %v4500, 1
      %v4512 = vpop.permute.xlu0 %4511
      %v4517 = vsub.f32 %v278, %v4506
      %v4518 = vsub.f32 %v279, %v4508
      %v4519 = vsub.f32 %v280, %v4510
      %v4520 = vsub.f32 %v281, %v4512
      %4522 = vset.pattern.permute.xlu0 21
      %4523 = vperm.xlu0 %4522, %v4493
      %v4524 = vpop.permute.xlu0 %4523
      %4527 = vset.pattern.permute.xlu0 21
      %4528 = vperm.xlu0 %4527, %v4494
      %v4529 = vpop.permute.xlu0 %4528
      %4532 = vset.pattern.permute.xlu0 21
      %4533 = vperm.xlu0 %4532, %v4495
      %v4534 = vpop.permute.xlu0 %4533
      %4537 = vset.pattern.permute.xlu0 21
      %4538 = vperm.xlu0 %4537, %v4496
      %v4539 = vpop.permute.xlu0 %4538
      %v4541 = vmul.f32 %v4415, %v4524
      %v4542 = vmul.f32 %v4417, %v4524
      %v4543 = vmul.f32 %v4421, %v4529
      %v4544 = vmul.f32 %v4423, %v4529
      %v4545 = vmul.f32 %v4427, %v4534
      %v4546 = vmul.f32 %v4429, %v4534
      %v4547 = vmul.f32 %v4433, %v4539
      %v4548 = vmul.f32 %v4435, %v4539
      %4550 = vset.pattern.permute.xlu0 22
      %4551 = vperm.xlu0 %4550, %v4517
      %v4552 = vpop.permute.xlu0 %4551
      %4555 = vset.pattern.permute.xlu0 22
      %4556 = vperm.xlu0 %4555, %v4518
      %v4557 = vpop.permute.xlu0 %4556
      %4560 = vset.pattern.permute.xlu0 22
      %4561 = vperm.xlu0 %4560, %v4519
      %v4562 = vpop.permute.xlu0 %4561
      %4565 = vset.pattern.permute.xlu0 22
      %4566 = vperm.xlu0 %4565, %v4520
      %v4567 = vpop.permute.xlu0 %4566
      %v4569 = vadd.f32 %v4541, %v4552
      %v4570 = vadd.f32 %v4542, %v4552
      %v4571 = vadd.f32 %v4543, %v4557
      %v4572 = vadd.f32 %v4544, %v4557
      %v4573 = vadd.f32 %v4545, %v4562
      %v4574 = vadd.f32 %v4546, %v4562
      %v4575 = vadd.f32 %v4547, %v4567
      %v4576 = vadd.f32 %v4548, %v4567
      %v4577 = vxor.u32 %v4569, 2147483648
      %v4578 = vxor.u32 %v4570, 2147483648
      %v4579 = vxor.u32 %v4571, 2147483648
      %v4580 = vxor.u32 %v4572, 2147483648
      %v4581 = vxor.u32 %v4573, 2147483648
      %v4582 = vxor.u32 %v4574, 2147483648
      %v4583 = vxor.u32 %v4575, 2147483648
      %v4584 = vxor.u32 %v4576, 2147483648
      %v4585 = vmul.f32 %v4577, 1.442695
      %v4586 = vpow.pop %v4585
      %v4587 = vmul.f32 %v4578, 1.442695
      %v4588 = vpow.pop %v4587
      %v4589 = vmul.f32 %v4579, 1.442695
      %v4590 = vpow.pop %v4589
      %v4591 = vmul.f32 %v4580, 1.442695
      %v4592 = vpow.pop %v4591
      %v4593 = vmul.f32 %v4581, 1.442695
      %v4594 = vpow.pop %v4593
      %v4595 = vmul.f32 %v4582, 1.442695
      %v4596 = vpow.pop %v4595
      %v4597 = vmul.f32 %v4583, 1.442695
      %v4598 = vpow.pop %v4597
      %v4599 = vmul.f32 %v4584, 1.442695
      %v4600 = vpow.pop %v4599
      %v4601 = vadd.f32 %v4586, 1.0
      %v4602 = vadd.f32 %v4588, 1.0
      %v4603 = vadd.f32 %v4590, 1.0
      %v4604 = vadd.f32 %v4592, 1.0
      %v4605 = vadd.f32 %v4594, 1.0
      %v4606 = vadd.f32 %v4596, 1.0
      %v4607 = vadd.f32 %v4598, 1.0
      %v4608 = vadd.f32 %v4600, 1.0
      %v4609 = vrcp.pop %v4601
      %v4610 = vmul.f32 1.0, %v4609
      %v4611 = vrcp.pop %v4602
      %v4612 = vmul.f32 1.0, %v4611
      %v4613 = vrcp.pop %v4603
      %v4614 = vmul.f32 1.0, %v4613
      %v4615 = vrcp.pop %v4604
      %v4616 = vmul.f32 1.0, %v4615
      %v4617 = vrcp.pop %v4605
      %v4618 = vmul.f32 1.0, %v4617
      %v4619 = vrcp.pop %v4606
      %v4620 = vmul.f32 1.0, %v4619
      %v4621 = vrcp.pop %v4607
      %v4622 = vmul.f32 1.0, %v4621
      %v4623 = vrcp.pop %v4608
      %v4624 = vmul.f32 1.0, %v4623
      %v4625 = vmul.f32 %v4569, %v4610
      %v4626 = vmul.f32 %v4570, %v4612
      %v4627 = vmul.f32 %v4571, %v4614
      %v4628 = vmul.f32 %v4572, %v4616
      %v4629 = vmul.f32 %v4573, %v4618
      %v4630 = vmul.f32 %v4574, %v4620
      %v4631 = vmul.f32 %v4575, %v4622
      %v4632 = vmul.f32 %v4576, %v4624
      %s4633 = scalar_lea.vmem %s2, 224
      %v4634 = vld [vmem:[%s4633] sm:$0xff]
      %v4635 = vld [vmem:[%s4633 + $0x8] sm:$0xff]
      %v4636 = vld [vmem:[%s4633 + $0x10] sm:$0xff]
      %v4637 = vld [vmem:[%s4633 + $0x18] sm:$0xff]
      %4638 = vset.pattern.permute.xlu0 23
      %4639 = vperm.xlu0 %4638, %v278
      %v4640 = vpop.permute.xlu0 %4639
      %4642 = vset.pattern.permute.xlu0 23
      %4643 = vperm.xlu0 %4642, %v279
      %v4644 = vpop.permute.xlu0 %4643
      %4646 = vset.pattern.permute.xlu0 23
      %4647 = vperm.xlu0 %4646, %v280
      %v4648 = vpop.permute.xlu0 %4647
      %4650 = vset.pattern.permute.xlu0 23
      %4651 = vperm.xlu0 %4650, %v281
      %v4652 = vpop.permute.xlu0 %4651
      %v4655 = vsel %vm506, %v4634, 0
      %v4658 = vsel %vm506, %v4635, 0
      %v4661 = vsel %vm506, %v4636, 0
      %v4664 = vsel %vm506, %v4637, 0
      %4666 = vmatprep.subr.mxu0 0.0
      %4667 = vmatpush1.msra.mxu0 0.0
      %4668 = vmatprep.subr.mxu0 0.0
      %4669 = vmatpush1.msra.mxu0 0.0
      %4670 = vmatprep.subr.mxu0 0.0
      %4671 = vmatpush1.msra.mxu0 0.0
      %4672 = vmatprep.subr.mxu0 0.0
      %4673 = vmatpush1.msra.mxu0 0.0
      %4674 = vmatprep.subr.mxu0 0.0
      %4675 = vmatpush1.msra.mxu0 0.0
      %4676 = vmatprep.subr.mxu0 0.0
      %4677 = vmatpush1.msra.mxu0 0.0
      %4678 = vmatprep.subr.mxu0 0.0
      %4679 = vmatpush1.msra.mxu0 0.0
      %4680 = vmatprep.subr.mxu0 0.0
      %4681 = vmatpush1.msra.mxu0 0.0
      %4682 = vmatprep.subr.mxu0 0.0
      %4683 = vmatpush1.msra.mxu0 0.0
      %4684 = vmatprep.subr.mxu0 0.0
      %4685 = vmatpush1.msra.mxu0 0.0
      %4686 = vmatprep.subr.mxu0 0.0
      %4687 = vmatpush1.msra.mxu0 0.0
      %4688 = vmatprep.subr.mxu0 0.0
      %4689 = vmatpush1.msra.mxu0 0.0
      %4690 = vmatprep.subr.mxu0 %v4632
      %4691 = vmatpush1.msra.mxu0 %v4631
      %4692 = vmatprep.subr.mxu0 %v4630
      %4693 = vmatpush1.msra.mxu0 %v4629
      %4694 = vmatprep.subr.mxu0 %v4628
      %4695 = vmatpush1.msra.mxu0 %v4627
      %4696 = vmatprep.subr.mxu0 %v4626
      %4697 = vmatpush1.msra.mxu0 %v4625
      %4698 = vmatprep.subr.mxu0 0.0
      %4699 = vmatpush2.msra.mxu0 0.0
      %4700 = vmatprep.subr.mxu0 0.0
      %4701 = vmatpush2.msra.mxu0 0.0
      %4702 = vmatprep.subr.mxu0 0.0
      %4703 = vmatpush2.msra.mxu0 0.0
      %4704 = vmatprep.subr.mxu0 0.0
      %4705 = vmatpush2.msra.mxu0 0.0
      %4706 = vmatprep.subr.mxu0 0.0
      %4707 = vmatpush2.msra.mxu0 0.0
      %4708 = vmatprep.subr.mxu0 0.0
      %4709 = vmatpush2.msra.mxu0 0.0
      %4710 = vmatprep.subr.mxu0 0.0
      %4711 = vmatpush2.msra.mxu0 0.0
      %4712 = vmatprep.subr.mxu0 0.0
      %4713 = vmatpush2.msra.mxu0 0.0
      %4714 = vmatprep.subr.mxu0 0.0
      %4715 = vmatpush2.msra.mxu0 0.0
      %4716 = vmatprep.subr.mxu0 0.0
      %4717 = vmatpush2.msra.mxu0 0.0
      %4718 = vmatprep.subr.mxu0 0.0
      %4719 = vmatpush2.msra.mxu0 0.0
      %4720 = vmatprep.subr.mxu0 0.0
      %4721 = vmatpush2.msra.mxu0 0.0
      %4722 = vmatprep.subr.mxu0 0.0
      %4723 = vmatpush2.msra.mxu0 0.0
      %4724 = vmatprep.subr.mxu0 0.0
      %4725 = vmatpush2.msra.mxu0 0.0
      %4726 = vmatprep.subr.mxu0 0.0
      %4727 = vmatpush2.msra.mxu0 0.0
      %4728 = vmatprep.subr.mxu0 0.0
      %4729 = vmatpush2.msra.mxu0 0.0
      %4730 = vmatprep.mubr.f32.mxu0 0.0
      %4731 = vmatmul.mubr.f32.gmra.mxu0 %v4655
      %v4732 = vpop.f32.mrf.mxu0
      %v4733 = vadd.f32 %v4640, %v4732
      %v4734 = vpop.f32.mrf.mxu0
      %v4735 = vadd.f32 %v4640, %v4734
      %4736 = vmatprep.mubr.f32.mxu0 0.0
      %4737 = vmatmul.mubr.f32.gmra.mxu0 %v4658
      %v4738 = vpop.f32.mrf.mxu0
      %v4739 = vadd.f32 %v4644, %v4738
      %v4740 = vpop.f32.mrf.mxu0
      %v4741 = vadd.f32 %v4644, %v4740
      %4742 = vmatprep.mubr.f32.mxu0 0.0
      %4743 = vmatmul.mubr.f32.gmra.mxu0 %v4661
      %v4744 = vpop.f32.mrf.mxu0
      %v4745 = vadd.f32 %v4648, %v4744
      %v4746 = vpop.f32.mrf.mxu0
      %v4747 = vadd.f32 %v4648, %v4746
      %4748 = vmatprep.mubr.f32.mxu0 0.0
      %4749 = vmatmul.mubr.f32.gmra.mxu0 %v4664
      %v4750 = vpop.f32.mrf.mxu0
      %v4751 = vadd.f32 %v4652, %v4750
      %v4752 = vpop.f32.mrf.mxu0
      %v4753 = vadd.f32 %v4652, %v4752
      %4754 = vdwg.mxu0
      %v4755 = vadd.f32 %v4111, %v4733
      %v4756 = vadd.f32 %v4112, %v4735
      %v4757 = vadd.f32 %v4113, %v4739
      %v4758 = vadd.f32 %v4114, %v4741
      %v4759 = vadd.f32 %v4115, %v4745
      %v4760 = vadd.f32 %v4116, %v4747
      %v4761 = vadd.f32 %v4117, %v4751
      %v4762 = vadd.f32 %v4118, %v4753
      %4763 = vst [vmem:[%s268] sm:$0xff] %v4755
      %4764 = vst [vmem:[%s268 + $0x8] sm:$0xff] %v4756
      %4765 = vst [vmem:[%s268 + $0x10] sm:$0xff] %v4757
      %4766 = vst [vmem:[%s268 + $0x18] sm:$0xff] %v4758
      %4767 = vst [vmem:[%s268 + $0x20] sm:$0xff] %v4759
      %4768 = vst [vmem:[%s268 + $0x28] sm:$0xff] %v4760
      %4769 = vst [vmem:[%s268 + $0x30] sm:$0xff] %v4761
      %4770 = vst [vmem:[%s268 + $0x38] sm:$0xff] %v4762
      %p4771 = scmp.lt.s32.totalorder %s17, 1
      %s4772 = scalar_select %p4771, %s17, 1
      %s4773 = smul.addr %s4772, 8
      %s4774 = smul.addr %s4773, 8
      %s4775 = scalar_lea.vmem %s6, %s4774
      // Predicated region
      $region45: #{token_reconstruction_forward.1} parent=43 // pred_check
        %p4776 = pneg %p171
      $region46: #{token_reconstruction_forward.1} parent=43 // pred_check_branch
        %4778 = sbr.rel (%p4776) target = $region48
      $region47: #{token_reconstruction_forward.1} parent=43 // pred_region
        _
      $region48: #{token_reconstruction_forward.1} parent=43 // pred_fallthru
        _
    $region44: #{token_reconstruction_forward.1} parent=5 // pred_fallthru
      _
    %p4779 = scmp.le.s32.totalorder 2, %s12
    // Predicated region
    $region49: #{token_reconstruction_forward.1} parent=5 // pred_check
      %p4780 = pneg %p4779
    $region50: #{token_reconstruction_forward.1} parent=5 // pred_check_branch
      %4782 = sbr.rel (%p4780) target = $region52
    $region51: #{token_reconstruction_forward.1} parent=5 // pred_region
      %s4783 = ssub.s32 %s12, 2
      // Predicated region
      $region53: #{token_reconstruction_forward.1} parent=51 // pred_check
        %p4784 = pneg %p177
      $region54: #{token_reconstruction_forward.1} parent=51 // pred_check_branch
        %4786 = sbr.rel (%p4784) target = $region56
      $region55: #{token_reconstruction_forward.1} parent=51 // pred_region
        %p4787 = scmp.lt.s32.totalorder %s18, 1
        %s4788 = scalar_select %p4787, %s18, 1
        %s4789 = smul.addr %s4788, 8
        %s4790 = smul.addr %s4789, 8
        %s4791 = scalar_lea.vmem %s6, %s4790
      $region56: #{token_reconstruction_forward.1} parent=51 // pred_fallthru
        _
    $region52: #{token_reconstruction_forward.1} parent=5 // pred_fallthru
      _
  $region6: #{token_reconstruction_forward.1} parent=0 // loop_footer
    %s16 = sadd.s32 1, %s12
  $region7: #{token_reconstruction_forward.1} parent=0 // loop_footer_branch
    %11 = sbr.rel target = $region3
  $region8: #{token_reconstruction_forward.1} parent=0 // loop_exit
    _

</llo_original>
